<compile_context>
chip_gen: v6e
topology: v6e:2x2x1
jax: 0.10.0
libtpu: 0.0.40
codegen_flags: <defaults>
</compile_context>

<pallas_src>
import jax
import jax.numpy as jnp
from jax import lax
from jax.experimental import pallas as pl
from jax.experimental.pallas import tpu as pltpu

BN_EPS = 1e-5


def basic_block_kernel(x_ref, w1_ref, b1_ref, w2_ref, b2_ref, out_ref,
                       ypad_ref, slab_ref):
    """One (image, row-strip) per grid step.

    x_ref   : (1, H+4, W+2, Cp) bf16  input, spatially padded (2 rows / 1 col) + channel pad
    w1_ref  : (9*Cp, Cp)        bf16  BN-folded conv1 weights, im2col row order (kh, kw, ci)
    b1_ref  : (1, Cp)           f32   BN-folded conv1 bias
    w2_ref  : (9*Cp, Cp)        bf16  BN-folded conv2 weights
    b2_ref  : (1, Cp)           f32   BN-folded conv2 bias
    out_ref : (1, TH, W, Cp)    bf16  one output row strip
    ypad_ref: (TH+2, W+2, Cp)   bf16  scratch: spatially padded conv1 output strip
    slab_ref: (TH+2, W, 9*Cp)   bf16  scratch: im2col patch slab (reused by both convs)
    """
    _, _, Wp, Cp = x_ref.shape
    W = Wp - 2
    TH = out_ref.shape[1]
    Hc = TH + 2                                    # conv1 rows per strip (incl. 1-row halo)

    j = pl.program_id(1)
    n_strips = pl.num_programs(1)
    row0 = pl.multiple_of(j * TH, TH)              # first output row of this strip

    # ---- conv1 im2col slab: 9 shifted windows of the input strip -> (Hc, W, 9*Cp) ----
    for kh in range(3):
        for kw in range(3):
            k = kh * 3 + kw
            slab_ref[:, :, k * Cp:(k + 1) * Cp] = (
                x_ref[0, pl.ds(row0 + kh, Hc), kw:kw + W, :])
    patches1 = slab_ref[...].reshape(Hc * W, 9 * Cp)

    # ---- conv1 + folded BN + ReLU: a single deep-K MXU dot, f32 accumulation ----
    y1 = jnp.dot(patches1, w1_ref[...], preferred_element_type=jnp.float32)
    y1 = jnp.maximum(y1 + b1_ref[...], 0.0).astype(ypad_ref.dtype)

    # ---- stage the conv1 strip with a 1-pixel zero halo for conv2 ----
    ypad_ref[:, 1:W + 1, :] = y1.reshape(Hc, W, Cp)
    # column halo: two thin stores per step (kept unconditional: under megacore-parallel
    # grids a "only at step 0" guard would never run on the second core).
    ypad_ref[:, 0:1, :] = jnp.zeros((Hc, 1, Cp), ypad_ref.dtype)
    ypad_ref[:, W + 1:W + 2, :] = jnp.zeros((Hc, 1, Cp), ypad_ref.dtype)

    @pl.when(j == 0)                       # conv1 row "-1" does not exist -> conv2 zero pad
    def _():
        ypad_ref[0:1, :, :] = jnp.zeros((1, Wp, Cp), ypad_ref.dtype)

    @pl.when(j == n_strips - 1)            # conv1 row "H" does not exist -> conv2 zero pad
    def _():
        ypad_ref[Hc - 1:Hc, :, :] = jnp.zeros((1, Wp, Cp), ypad_ref.dtype)

    # ---- conv2 im2col slab (reuse the same scratch, first TH rows) ----
    for kh in range(3):
        for kw in range(3):
            k = kh * 3 + kw
            slab_ref[0:TH, :, k * Cp:(k + 1) * Cp] = ypad_ref[kh:kh + TH, kw:kw + W, :]
    patches2 = slab_ref[0:TH, :, :].reshape(TH * W, 9 * Cp)

    # ---- conv2 + folded BN: a single deep-K MXU dot ----
    y2 = jnp.dot(patches2, w2_ref[...], preferred_element_type=jnp.float32) + b2_ref[...]

    # ---- residual add (re-sliced from the resident input block) + ReLU ----
    xres = x_ref[0, pl.ds(row0 + 2, TH), 1:W + 1, :].reshape(TH * W, Cp)
    out = jnp.maximum(y2 + xres.astype(jnp.float32), 0.0)
    out_ref[...] = out.reshape(1, TH, W, Cp).astype(out_ref.dtype)


def _round_up(x, m):
    return ((x + m - 1) // m) * m


def _pick_strip_rows(h):
    for th in (8, 4, 2):
        if h % th == 0 and h >= th:
            return th
    return h


def _fold_bn(w_hwio, b, g, be, m, v):
    """Fold eval-mode BatchNorm into the conv:  bn(conv(x,w)+b) == conv(x,w') + b'."""
    scale = g * lax.rsqrt(v + BN_EPS)                  # (Cout,)
    return w_hwio * scale, (b - m) * scale + be


def basic_block_forward(x_nchw, params):
    """x_nchw: (N, C, H, W) float32 -> (N, C, H, W) float32."""
    N, C, H, W = x_nchw.shape
    assert params["w1"].shape[2] == C and params["w1"].shape[3] == C, (
        "BasicBlock residual requires inplanes == planes (stride == 1)")

    Cp = _round_up(C, 8)                               # modest channel pad (not 128!)
    TH = _pick_strip_rows(H)                           # output rows per strip
    S = H // TH

    # BN folding, im2col weight layout, channel padding, bf16 cast.
    w1f, b1f = _fold_bn(params["w1"], params["b1"], params["g1"], params["be1"],
                        params["m1"], params["v1"])
    w2f, b2f = _fold_bn(params["w2"], params["b2"], params["g2"], params["be2"],
                        params["m2"], params["v2"])

    def prep_w(w):      # (3,3,C,C) HWIO -> (9*Cp, Cp) bf16, rows ordered (kh, kw, ci)
        wp = jnp.pad(w, ((0, 0), (0, 0), (0, Cp - C), (0, Cp - C)))
        return wp.reshape(9 * Cp, Cp).astype(jnp.bfloat16)

    def prep_b(b):      # (C,) -> (1, Cp) f32, zero-filled (keeps padded channels at 0)
        return jnp.pad(b, (0, Cp - C)).reshape(1, Cp).astype(jnp.float32)

    w1p, b1p, w2p, b2p = prep_w(w1f), prep_b(b1f), prep_w(w2f), prep_b(b2f)

    # NCHW -> NHWC; 2-row / 1-col spatial halo (2 rows so boundary strips compute the
    # conv1 halo rows with the same static shapes as interior strips), channel pad, bf16.
    x_nhwc = jnp.transpose(x_nchw, (0, 2, 3, 1))
    x_pad = jnp.pad(x_nhwc, ((0, 0), (2, 2), (1, 1), (0, Cp - C))).astype(jnp.bfloat16)

    flops = 2 * 2 * 9 * N * H * W * Cp * Cp            # 2 convs, 2 flops / MAC
    bytes_accessed = (x_pad.size * 2 + (w1p.size + w2p.size) * 2
                      + (b1p.size + b2p.size) * 4 + N * H * W * Cp * 2)

    # Rough per-step VMEM budget (double-buffered blocks + scratch + temporaries).
    blk_bytes = (2 * (H + 4) * (W + 2) * Cp * 2
                 + 2 * 2 * (9 * Cp * Cp * 2 + Cp * 4)
                 + 2 * TH * W * Cp * 2
                 + (TH + 2) * (W + 2) * Cp * 2
                 + (TH + 2) * W * 9 * Cp * 2
                 + 4 * (TH + 2) * W * Cp * 4)
    vmem_limit = int(min(64 * 1024 * 1024, max(32 * 1024 * 1024, 2 * blk_bytes)))

    out_nhwc = pl.pallas_call(
        basic_block_kernel,
        out_shape=jax.ShapeDtypeStruct((N, H, W, Cp), jnp.bfloat16),
        grid_spec=pltpu.PrefetchScalarGridSpec(
            num_scalar_prefetch=0,
            grid=(N, S),
            in_specs=[
                pl.BlockSpec((1, H + 4, W + 2, Cp), lambda n, j: (n, 0, 0, 0)),
                pl.BlockSpec((9 * Cp, Cp), lambda n, j: (0, 0)),
                pl.BlockSpec((1, Cp), lambda n, j: (0, 0)),
                pl.BlockSpec((9 * Cp, Cp), lambda n, j: (0, 0)),
                pl.BlockSpec((1, Cp), lambda n, j: (0, 0)),
            ],
            out_specs=pl.BlockSpec((1, TH, W, Cp), lambda n, j: (n, j, 0, 0)),
            scratch_shapes=[
                pltpu.VMEM((TH + 2, W + 2, Cp), jnp.bfloat16),      # padded conv1 strip
                pltpu.VMEM((TH + 2, W, 9 * Cp), jnp.bfloat16),      # im2col slab
            ],
        ),
        compiler_params=pltpu.CompilerParams(
            dimension_semantics=("parallel", "parallel"),
            vmem_limit_bytes=vmem_limit,
        ),
        cost_estimate=pl.CostEstimate(
            flops=flops, transcendentals=0, bytes_accessed=bytes_accessed),
    )(x_pad, w1p, b1p, w2p, b2p)

    out = out_nhwc[..., :C].astype(jnp.float32)        # drop the padding channels
    return jnp.transpose(out, (0, 3, 1, 2))            # NHWC -> NCHW


def make_params(key, inplanes, planes):
    """Deterministic synthetic parameters matching nn.Conv2d / nn.BatchNorm2d shapes."""
    ks = jax.random.split(key, 8)
    # PyTorch conv weight is (Cout, Cin, 3, 3); kernel expects HWIO = (3, 3, Cin, Cout).
    w1 = 0.1 * jax.random.normal(ks[0], (planes, inplanes, 3, 3), jnp.float32)
    w2 = 0.1 * jax.random.normal(ks[1], (planes, planes, 3, 3), jnp.float32)
    return {
        "w1": jnp.transpose(w1, (2, 3, 1, 0)),
        "b1": 0.1 * jax.random.normal(ks[2], (planes,), jnp.float32),
        "g1": 1.0 + 0.1 * jax.random.normal(ks[3], (planes,), jnp.float32),
        "be1": 0.1 * jax.random.normal(ks[4], (planes,), jnp.float32),
        "m1": 0.05 * jax.random.normal(ks[5], (planes,), jnp.float32),
        "v1": 1.0 + 0.1 * jax.random.uniform(ks[6], (planes,), jnp.float32),
        "w2": jnp.transpose(w2, (2, 3, 1, 0)),
        "b2": 0.1 * jax.random.normal(ks[7], (planes,), jnp.float32),
        "g2": 1.0 + 0.05 * jax.random.normal(ks[3], (planes,), jnp.float32),
        "be2": 0.05 * jax.random.normal(ks[4], (planes,), jnp.float32),
        "m2": 0.05 * jax.random.normal(ks[5], (planes,), jnp.float32),
        "v2": 1.0 + 0.1 * jax.random.uniform(ks[6], (planes,), jnp.float32),
    }


def reference_forward(x_nchw, p):
    """Pure-JAX f32 reference (conv via lax.conv_general_dilated), original params."""
    x = jnp.transpose(x_nchw, (0, 2, 3, 1))
    dn = ("NHWC", "HWIO", "NHWC")

    def bn(y, g, be, m, v):
        return (y - m) * lax.rsqrt(v + BN_EPS) * g + be

    y = lax.conv_general_dilated(x, p["w1"], (1, 1), "SAME", dimension_numbers=dn) + p["b1"]
    y = jnp.maximum(bn(y, p["g1"], p["be1"], p["m1"], p["v1"]), 0.0)
    y = lax.conv_general_dilated(y, p["w2"], (1, 1), "SAME", dimension_numbers=dn) + p["b2"]
    y = bn(y, p["g2"], p["be2"], p["m2"], p["v2"])
    y = jnp.maximum(y + x, 0.0)
    return jnp.transpose(y, (0, 3, 1, 2))


if __name__ == "__main__":
    key = jax.random.PRNGKey(0)
    k_x, k_p = jax.random.split(key)

    N, C, H, W = 2, 4, 16, 16                          # inplanes == planes, stride == 1
    x = jax.random.normal(k_x, (N, C, H, W), jnp.float32)
    params = make_params(k_p, C, C)

    out = jax.block_until_ready(basic_block_forward(x, params))
    ref = jax.block_until_ready(reference_forward(x, params))

    assert out.shape == (N, C, H, W)
    # bf16 activations / weights / writeback with f32 accumulation -> loose comparison.
    assert jnp.allclose(out, ref, atol=5e-2, rtol=5e-2), "mismatch vs JAX reference"

    print("KERNEL_OK")
</pallas_src>

<mosaic_0001>
module attributes {stable_mosaic.version = 11 : i64} {
  func.func @basic_block_kernel(%arg0: i32, %arg1: i32, %arg2: memref<1x20x18x8xbf16, #tpu.memory_space<vmem>>, %arg3: memref<72x8xbf16, #tpu.memory_space<vmem>>, %arg4: memref<1x8xf32, #tpu.memory_space<vmem>>, %arg5: memref<72x8xbf16, #tpu.memory_space<vmem>>, %arg6: memref<1x8xf32, #tpu.memory_space<vmem>>, %arg7: memref<1x8x16x8xbf16, #tpu.memory_space<vmem>>, %arg8: memref<10x18x8xbf16, #tpu.memory_space<vmem>>, %arg9: memref<10x16x72xbf16, #tpu.memory_space<vmem>>) attributes {dimension_semantics = [#tpu.dimension_semantics<parallel>, #tpu.dimension_semantics<parallel>], iteration_bounds = array<i64: 2, 2>, scalar_prefetch = 0 : i64, scratch_operands = 2 : i64, tpu.core_type = #tpu.core_type<tc>, window_params = [{transform_indices = @transform_0, window_bounds = array<i64: 1, 20, 18, 8>}, {pipeline_mode = #tpu.pipeline_mode<synchronous>, transform_indices = @transform_1, window_bounds = array<i64: 72, 8>}, {pipeline_mode = #tpu.pipeline_mode<synchronous>, transform_indices = @transform_2, window_bounds = array<i64: 1, 8>}, {pipeline_mode = #tpu.pipeline_mode<synchronous>, transform_indices = @transform_3, window_bounds = array<i64: 72, 8>}, {pipeline_mode = #tpu.pipeline_mode<synchronous>, transform_indices = @transform_4, window_bounds = array<i64: 1, 8>}, {transform_indices = @transform_5, window_bounds = array<i64: 1, 8, 16, 8>}]} {
    %c8_i32 = arith.constant 8 : i32
    %0 = arith.muli %arg1, %c8_i32 : i32
    %1 = tpu.assume_multiple %0, 8 : i32
    %c0_i32 = arith.constant 0 : i32
    %2 = arith.addi %1, %c0_i32 : i32
    %c0 = arith.constant 0 : index
    %3 = arith.index_cast %2 : i32 to index
    %c0_0 = arith.constant 0 : index
    %c0_1 = arith.constant 0 : index
    %4 = vector.load %arg2[%c0, %3, %c0_0, %c0_1] : memref<1x20x18x8xbf16, #tpu.memory_space<vmem>>, vector<1x10x16x8xbf16>
    %5 = vector.shape_cast %4 : vector<1x10x16x8xbf16> to vector<10x16x8xbf16>
    %c0_2 = arith.constant 0 : index
    %c0_3 = arith.constant 0 : index
    %c0_4 = arith.constant 0 : index
    %6 = vector.load %arg9[%c0_2, %c0_3, %c0_4] : memref<10x16x72xbf16, #tpu.memory_space<vmem>>, vector<10x16x8xbf16>
    tpu.vector_store %arg9[%c0_2, %c0_3, %c0_4], %5 {strides = array<i32>} : memref<10x16x72xbf16, #tpu.memory_space<vmem>>, vector<10x16x8xbf16>,
    %c0_i32_5 = arith.constant 0 : i32
    %7 = arith.addi %1, %c0_i32_5 : i32
    %c0_6 = arith.constant 0 : index
    %8 = arith.index_cast %7 : i32 to index
    %c1 = arith.constant 1 : index
    %c0_7 = arith.constant 0 : index
    %9 = vector.load %arg2[%c0_6, %8, %c1, %c0_7] : memref<1x20x18x8xbf16, #tpu.memory_space<vmem>>, vector<1x10x16x8xbf16>
    %10 = vector.shape_cast %9 : vector<1x10x16x8xbf16> to vector<10x16x8xbf16>
    %c0_8 = arith.constant 0 : index
    %c0_9 = arith.constant 0 : index
    %c8 = arith.constant 8 : index
    %11 = vector.load %arg9[%c0_8, %c0_9, %c8] : memref<10x16x72xbf16, #tpu.memory_space<vmem>>, vector<10x16x8xbf16>
    tpu.vector_store %arg9[%c0_8, %c0_9, %c8], %10 {strides = array<i32>} : memref<10x16x72xbf16, #tpu.memory_space<vmem>>, vector<10x16x8xbf16>,
    %c0_i32_10 = arith.constant 0 : i32
    %12 = arith.addi %1, %c0_i32_10 : i32
    %c0_11 = arith.constant 0 : index
    %13 = arith.index_cast %12 : i32 to index
    %c2 = arith.constant 2 : index
    %c0_12 = arith.constant 0 : index
    %14 = vector.load %arg2[%c0_11, %13, %c2, %c0_12] : memref<1x20x18x8xbf16, #tpu.memory_space<vmem>>, vector<1x10x16x8xbf16>
    %15 = vector.shape_cast %14 : vector<1x10x16x8xbf16> to vector<10x16x8xbf16>
    %c0_13 = arith.constant 0 : index
    %c0_14 = arith.constant 0 : index
    %c16 = arith.constant 16 : index
    %16 = vector.load %arg9[%c0_13, %c0_14, %c16] : memref<10x16x72xbf16, #tpu.memory_space<vmem>>, vector<10x16x8xbf16>
    tpu.vector_store %arg9[%c0_13, %c0_14, %c16], %15 {strides = array<i32>} : memref<10x16x72xbf16, #tpu.memory_space<vmem>>, vector<10x16x8xbf16>,
    %c1_i32 = arith.constant 1 : i32
    %17 = arith.addi %1, %c1_i32 : i32
    %c0_15 = arith.constant 0 : index
    %18 = arith.index_cast %17 : i32 to index
    %c0_16 = arith.constant 0 : index
    %c0_17 = arith.constant 0 : index
    %19 = vector.load %arg2[%c0_15, %18, %c0_16, %c0_17] : memref<1x20x18x8xbf16, #tpu.memory_space<vmem>>, vector<1x10x16x8xbf16>
    %20 = vector.shape_cast %19 : vector<1x10x16x8xbf16> to vector<10x16x8xbf16>
    %c0_18 = arith.constant 0 : index
    %c0_19 = arith.constant 0 : index
    %c24 = arith.constant 24 : index
    %21 = vector.load %arg9[%c0_18, %c0_19, %c24] : memref<10x16x72xbf16, #tpu.memory_space<vmem>>, vector<10x16x8xbf16>
    tpu.vector_store %arg9[%c0_18, %c0_19, %c24], %20 {strides = array<i32>} : memref<10x16x72xbf16, #tpu.memory_space<vmem>>, vector<10x16x8xbf16>,
    %c1_i32_20 = arith.constant 1 : i32
    %22 = arith.addi %1, %c1_i32_20 : i32
    %c0_21 = arith.constant 0 : index
    %23 = arith.index_cast %22 : i32 to index
    %c1_22 = arith.constant 1 : index
    %c0_23 = arith.constant 0 : index
    %24 = vector.load %arg2[%c0_21, %23, %c1_22, %c0_23] : memref<1x20x18x8xbf16, #tpu.memory_space<vmem>>, vector<1x10x16x8xbf16>
    %25 = vector.shape_cast %24 : vector<1x10x16x8xbf16> to vector<10x16x8xbf16>
    %c0_24 = arith.constant 0 : index
    %c0_25 = arith.constant 0 : index
    %c32 = arith.constant 32 : index
    %26 = vector.load %arg9[%c0_24, %c0_25, %c32] : memref<10x16x72xbf16, #tpu.memory_space<vmem>>, vector<10x16x8xbf16>
    tpu.vector_store %arg9[%c0_24, %c0_25, %c32], %25 {strides = array<i32>} : memref<10x16x72xbf16, #tpu.memory_space<vmem>>, vector<10x16x8xbf16>,
    %c1_i32_26 = arith.constant 1 : i32
    %27 = arith.addi %1, %c1_i32_26 : i32
    %c0_27 = arith.constant 0 : index
    %28 = arith.index_cast %27 : i32 to index
    %c2_28 = arith.constant 2 : index
    %c0_29 = arith.constant 0 : index
    %29 = vector.load %arg2[%c0_27, %28, %c2_28, %c0_29] : memref<1x20x18x8xbf16, #tpu.memory_space<vmem>>, vector<1x10x16x8xbf16>
    %30 = vector.shape_cast %29 : vector<1x10x16x8xbf16> to vector<10x16x8xbf16>
    %c0_30 = arith.constant 0 : index
    %c0_31 = arith.constant 0 : index
    %c40 = arith.constant 40 : index
    %31 = vector.load %arg9[%c0_30, %c0_31, %c40] : memref<10x16x72xbf16, #tpu.memory_space<vmem>>, vector<10x16x8xbf16>
    tpu.vector_store %arg9[%c0_30, %c0_31, %c40], %30 {strides = array<i32>} : memref<10x16x72xbf16, #tpu.memory_space<vmem>>, vector<10x16x8xbf16>,
    %c2_i32 = arith.constant 2 : i32
    %32 = arith.addi %1, %c2_i32 : i32
    %c0_32 = arith.constant 0 : index
    %33 = arith.index_cast %32 : i32 to index
    %c0_33 = arith.constant 0 : index
    %c0_34 = arith.constant 0 : index
    %34 = vector.load %arg2[%c0_32, %33, %c0_33, %c0_34] : memref<1x20x18x8xbf16, #tpu.memory_space<vmem>>, vector<1x10x16x8xbf16>
    %35 = vector.shape_cast %34 : vector<1x10x16x8xbf16> to vector<10x16x8xbf16>
    %c0_35 = arith.constant 0 : index
    %c0_36 = arith.constant 0 : index
    %c48 = arith.constant 48 : index
    %36 = vector.load %arg9[%c0_35, %c0_36, %c48] : memref<10x16x72xbf16, #tpu.memory_space<vmem>>, vector<10x16x8xbf16>
    tpu.vector_store %arg9[%c0_35, %c0_36, %c48], %35 {strides = array<i32>} : memref<10x16x72xbf16, #tpu.memory_space<vmem>>, vector<10x16x8xbf16>,
    %c2_i32_37 = arith.constant 2 : i32
    %37 = arith.addi %1, %c2_i32_37 : i32
    %c0_38 = arith.constant 0 : index
    %38 = arith.index_cast %37 : i32 to index
    %c1_39 = arith.constant 1 : index
    %c0_40 = arith.constant 0 : index
    %39 = vector.load %arg2[%c0_38, %38, %c1_39, %c0_40] : memref<1x20x18x8xbf16, #tpu.memory_space<vmem>>, vector<1x10x16x8xbf16>
    %40 = vector.shape_cast %39 : vector<1x10x16x8xbf16> to vector<10x16x8xbf16>
    %c0_41 = arith.constant 0 : index
    %c0_42 = arith.constant 0 : index
    %c56 = arith.constant 56 : index
    %41 = vector.load %arg9[%c0_41, %c0_42, %c56] : memref<10x16x72xbf16, #tpu.memory_space<vmem>>, vector<10x16x8xbf16>
    tpu.vector_store %arg9[%c0_41, %c0_42, %c56], %40 {strides = array<i32>} : memref<10x16x72xbf16, #tpu.memory_space<vmem>>, vector<10x16x8xbf16>,
    %c2_i32_43 = arith.constant 2 : i32
    %42 = arith.addi %1, %c2_i32_43 : i32
    %c0_44 = arith.constant 0 : index
    %43 = arith.index_cast %42 : i32 to index
    %c2_45 = arith.constant 2 : index
    %c0_46 = arith.constant 0 : index
    %44 = vector.load %arg2[%c0_44, %43, %c2_45, %c0_46] : memref<1x20x18x8xbf16, #tpu.memory_space<vmem>>, vector<1x10x16x8xbf16>
    %45 = vector.shape_cast %44 : vector<1x10x16x8xbf16> to vector<10x16x8xbf16>
    %c0_47 = arith.constant 0 : index
    %c0_48 = arith.constant 0 : index
    %c64 = arith.constant 64 : index
    %46 = vector.load %arg9[%c0_47, %c0_48, %c64] : memref<10x16x72xbf16, #tpu.memory_space<vmem>>, vector<10x16x8xbf16>
    tpu.vector_store %arg9[%c0_47, %c0_48, %c64], %45 {strides = array<i32>} : memref<10x16x72xbf16, #tpu.memory_space<vmem>>, vector<10x16x8xbf16>,
    %c0_49 = arith.constant 0 : index
    %c0_50 = arith.constant 0 : index
    %c0_51 = arith.constant 0 : index
    %47 = vector.load %arg9[%c0_49, %c0_50, %c0_51] : memref<10x16x72xbf16, #tpu.memory_space<vmem>>, vector<10x16x72xbf16>
    %48 = vector.shape_cast %47 : vector<10x16x72xbf16> to vector<160x72xbf16>
    %c0_52 = arith.constant 0 : index
    %c0_53 = arith.constant 0 : index
    %49 = vector.load %arg3[%c0_52, %c0_53] : memref<72x8xbf16, #tpu.memory_space<vmem>>, vector<72x8xbf16>
    %cst = arith.constant dense<0.000000e+00> : vector<160x8xf32>
    %50 = tpu.matmul %48, %49, %cst {dimension_numbers = #tpu.dot_dimension_numbers<[1], [0], [0], [1], [0, 0, 1, 1], [], []>} : vector<160x72xbf16>, vector<72x8xbf16>, vector<160x8xf32> -> vector<160x8xf32>
    %c0_54 = arith.constant 0 : index
    %c0_55 = arith.constant 0 : index
    %51 = vector.load %arg4[%c0_54, %c0_55] : memref<1x8xf32, #tpu.memory_space<vmem>>, vector<1x8xf32>
    %52 = vector.broadcast %51 : vector<1x8xf32> to vector<160x8xf32>
    %53 = arith.addf %50, %52 : vector<160x8xf32>
    %cst_56 = arith.constant 0.000000e+00 : f32
    %54 = vector.broadcast %cst_56 : f32 to vector<160x8xf32>
    %55 = arith.maximumf %53, %54 : vector<160x8xf32>
    %56 = arith.truncf %55 : vector<160x8xf32> to vector<160x8xbf16>
    %57 = vector.shape_cast %56 : vector<160x8xbf16> to vector<10x16x8xbf16>
    %c0_57 = arith.constant 0 : index
    %c1_58 = arith.constant 1 : index
    %c0_59 = arith.constant 0 : index
    %58 = vector.load %arg8[%c0_57, %c1_58, %c0_59] : memref<10x18x8xbf16, #tpu.memory_space<vmem>>, vector<10x16x8xbf16>
    tpu.vector_store %arg8[%c0_57, %c1_58, %c0_59], %57 {strides = array<i32>} : memref<10x18x8xbf16, #tpu.memory_space<vmem>>, vector<10x16x8xbf16>,
    %cst_60 = arith.constant 0.000000e+00 : bf16
    %59 = vector.broadcast %cst_60 : bf16 to vector<10x1x8xbf16>
    %c0_61 = arith.constant 0 : index
    %c0_62 = arith.constant 0 : index
    %c0_63 = arith.constant 0 : index
    %60 = vector.load %arg8[%c0_61, %c0_62, %c0_63] : memref<10x18x8xbf16, #tpu.memory_space<vmem>>, vector<10x1x8xbf16>
    tpu.vector_store %arg8[%c0_61, %c0_62, %c0_63], %59 {strides = array<i32>} : memref<10x18x8xbf16, #tpu.memory_space<vmem>>, vector<10x1x8xbf16>,
    %cst_64 = arith.constant 0.000000e+00 : bf16
    %61 = vector.broadcast %cst_64 : bf16 to vector<10x1x8xbf16>
    %c0_65 = arith.constant 0 : index
    %c17 = arith.constant 17 : index
    %c0_66 = arith.constant 0 : index
    %62 = vector.load %arg8[%c0_65, %c17, %c0_66] : memref<10x18x8xbf16, #tpu.memory_space<vmem>>, vector<10x1x8xbf16>
    tpu.vector_store %arg8[%c0_65, %c17, %c0_66], %61 {strides = array<i32>} : memref<10x18x8xbf16, #tpu.memory_space<vmem>>, vector<10x1x8xbf16>,
    %c0_i32_67 = arith.constant 0 : i32
    %63 = arith.cmpi eq, %arg1, %c0_i32_67 : i32
    %64 = arith.extui %63 : i1 to i32
    %c0_i32_68 = arith.constant 0 : i32
    %65 = arith.cmpi ne, %64, %c0_i32_68 : i32
    scf.if %65 {
      %cst_142 = arith.constant 0.000000e+00 : bf16
      %106 = vector.broadcast %cst_142 : bf16 to vector<1x18x8xbf16>
      %c0_143 = arith.constant 0 : index
      %c0_144 = arith.constant 0 : index
      %c0_145 = arith.constant 0 : index
      %107 = vector.load %arg8[%c0_143, %c0_144, %c0_145] : memref<10x18x8xbf16, #tpu.memory_space<vmem>>, vector<1x18x8xbf16>
      tpu.vector_store %arg8[%c0_143, %c0_144, %c0_145], %106 {strides = array<i32>} : memref<10x18x8xbf16, #tpu.memory_space<vmem>>, vector<1x18x8xbf16>,
    } else {
    }
    %c1_i32_69 = arith.constant 1 : i32
    %66 = arith.cmpi eq, %arg1, %c1_i32_69 : i32
    %67 = arith.extui %66 : i1 to i32
    %c0_i32_70 = arith.constant 0 : i32
    %68 = arith.cmpi ne, %67, %c0_i32_70 : i32
    scf.if %68 {
      %cst_142 = arith.constant 0.000000e+00 : bf16
      %106 = vector.broadcast %cst_142 : bf16 to vector<1x18x8xbf16>
      %c9 = arith.constant 9 : index
      %c0_143 = arith.constant 0 : index
      %c0_144 = arith.constant 0 : index
      %107 = vector.load %arg8[%c9, %c0_143, %c0_144] : memref<10x18x8xbf16, #tpu.memory_space<vmem>>, vector<1x18x8xbf16>
      tpu.vector_store %arg8[%c9, %c0_143, %c0_144], %106 {strides = array<i32>} : memref<10x18x8xbf16, #tpu.memory_space<vmem>>, vector<1x18x8xbf16>,
    } else {
    }
    %c0_71 = arith.constant 0 : index
    %c0_72 = arith.constant 0 : index
    %c0_73 = arith.constant 0 : index
    %69 = vector.load %arg8[%c0_71, %c0_72, %c0_73] : memref<10x18x8xbf16, #tpu.memory_space<vmem>>, vector<8x16x8xbf16>
    %c0_74 = arith.constant 0 : index
    %c0_75 = arith.constant 0 : index
    %c0_76 = arith.constant 0 : index
    %70 = vector.load %arg9[%c0_74, %c0_75, %c0_76] : memref<10x16x72xbf16, #tpu.memory_space<vmem>>, vector<8x16x8xbf16>
    tpu.vector_store %arg9[%c0_74, %c0_75, %c0_76], %69 {strides = array<i32>} : memref<10x16x72xbf16, #tpu.memory_space<vmem>>, vector<8x16x8xbf16>,
    %c0_77 = arith.constant 0 : index
    %c1_78 = arith.constant 1 : index
    %c0_79 = arith.constant 0 : index
    %71 = vector.load %arg8[%c0_77, %c1_78, %c0_79] : memref<10x18x8xbf16, #tpu.memory_space<vmem>>, vector<8x16x8xbf16>
    %c0_80 = arith.constant 0 : index
    %c0_81 = arith.constant 0 : index
    %c8_82 = arith.constant 8 : index
    %72 = vector.load %arg9[%c0_80, %c0_81, %c8_82] : memref<10x16x72xbf16, #tpu.memory_space<vmem>>, vector<8x16x8xbf16>
    tpu.vector_store %arg9[%c0_80, %c0_81, %c8_82], %71 {strides = array<i32>} : memref<10x16x72xbf16, #tpu.memory_space<vmem>>, vector<8x16x8xbf16>,
    %c0_83 = arith.constant 0 : index
    %c2_84 = arith.constant 2 : index
    %c0_85 = arith.constant 0 : index
    %73 = vector.load %arg8[%c0_83, %c2_84, %c0_85] : memref<10x18x8xbf16, #tpu.memory_space<vmem>>, vector<8x16x8xbf16>
    %c0_86 = arith.constant 0 : index
    %c0_87 = arith.constant 0 : index
    %c16_88 = arith.constant 16 : index
    %74 = vector.load %arg9[%c0_86, %c0_87, %c16_88] : memref<10x16x72xbf16, #tpu.memory_space<vmem>>, vector<8x16x8xbf16>
    tpu.vector_store %arg9[%c0_86, %c0_87, %c16_88], %73 {strides = array<i32>} : memref<10x16x72xbf16, #tpu.memory_space<vmem>>, vector<8x16x8xbf16>,
    %c1_89 = arith.constant 1 : index
    %c0_90 = arith.constant 0 : index
    %c0_91 = arith.constant 0 : index
    %75 = vector.load %arg8[%c1_89, %c0_90, %c0_91] : memref<10x18x8xbf16, #tpu.memory_space<vmem>>, vector<8x16x8xbf16>
    %c0_92 = arith.constant 0 : index
    %c0_93 = arith.constant 0 : index
    %c24_94 = arith.constant 24 : index
    %76 = vector.load %arg9[%c0_92, %c0_93, %c24_94] : memref<10x16x72xbf16, #tpu.memory_space<vmem>>, vector<8x16x8xbf16>
    tpu.vector_store %arg9[%c0_92, %c0_93, %c24_94], %75 {strides = array<i32>} : memref<10x16x72xbf16, #tpu.memory_space<vmem>>, vector<8x16x8xbf16>,
    %c1_95 = arith.constant 1 : index
    %c1_96 = arith.constant 1 : index
    %c0_97 = arith.constant 0 : index
    %77 = vector.load %arg8[%c1_95, %c1_96, %c0_97] : memref<10x18x8xbf16, #tpu.memory_space<vmem>>, vector<8x16x8xbf16>
    %c0_98 = arith.constant 0 : index
    %c0_99 = arith.constant 0 : index
    %c32_100 = arith.constant 32 : index
    %78 = vector.load %arg9[%c0_98, %c0_99, %c32_100] : memref<10x16x72xbf16, #tpu.memory_space<vmem>>, vector<8x16x8xbf16>
    tpu.vector_store %arg9[%c0_98, %c0_99, %c32_100], %77 {strides = array<i32>} : memref<10x16x72xbf16, #tpu.memory_space<vmem>>, vector<8x16x8xbf16>,
    %c1_101 = arith.constant 1 : index
    %c2_102 = arith.constant 2 : index
    %c0_103 = arith.constant 0 : index
    %79 = vector.load %arg8[%c1_101, %c2_102, %c0_103] : memref<10x18x8xbf16, #tpu.memory_space<vmem>>, vector<8x16x8xbf16>
    %c0_104 = arith.constant 0 : index
    %c0_105 = arith.constant 0 : index
    %c40_106 = arith.constant 40 : index
    %80 = vector.load %arg9[%c0_104, %c0_105, %c40_106] : memref<10x16x72xbf16, #tpu.memory_space<vmem>>, vector<8x16x8xbf16>
    tpu.vector_store %arg9[%c0_104, %c0_105, %c40_106], %79 {strides = array<i32>} : memref<10x16x72xbf16, #tpu.memory_space<vmem>>, vector<8x16x8xbf16>,
    %c2_107 = arith.constant 2 : index
    %c0_108 = arith.constant 0 : index
    %c0_109 = arith.constant 0 : index
    %81 = vector.load %arg8[%c2_107, %c0_108, %c0_109] : memref<10x18x8xbf16, #tpu.memory_space<vmem>>, vector<8x16x8xbf16>
    %c0_110 = arith.constant 0 : index
    %c0_111 = arith.constant 0 : index
    %c48_112 = arith.constant 48 : index
    %82 = vector.load %arg9[%c0_110, %c0_111, %c48_112] : memref<10x16x72xbf16, #tpu.memory_space<vmem>>, vector<8x16x8xbf16>
    tpu.vector_store %arg9[%c0_110, %c0_111, %c48_112], %81 {strides = array<i32>} : memref<10x16x72xbf16, #tpu.memory_space<vmem>>, vector<8x16x8xbf16>,
    %c2_113 = arith.constant 2 : index
    %c1_114 = arith.constant 1 : index
    %c0_115 = arith.constant 0 : index
    %83 = vector.load %arg8[%c2_113, %c1_114, %c0_115] : memref<10x18x8xbf16, #tpu.memory_space<vmem>>, vector<8x16x8xbf16>
    %c0_116 = arith.constant 0 : index
    %c0_117 = arith.constant 0 : index
    %c56_118 = arith.constant 56 : index
    %84 = vector.load %arg9[%c0_116, %c0_117, %c56_118] : memref<10x16x72xbf16, #tpu.memory_space<vmem>>, vector<8x16x8xbf16>
    tpu.vector_store %arg9[%c0_116, %c0_117, %c56_118], %83 {strides = array<i32>} : memref<10x16x72xbf16, #tpu.memory_space<vmem>>, vector<8x16x8xbf16>,
    %c2_119 = arith.constant 2 : index
    %c2_120 = arith.constant 2 : index
    %c0_121 = arith.constant 0 : index
    %85 = vector.load %arg8[%c2_119, %c2_120, %c0_121] : memref<10x18x8xbf16, #tpu.memory_space<vmem>>, vector<8x16x8xbf16>
    %c0_122 = arith.constant 0 : index
    %c0_123 = arith.constant 0 : index
    %c64_124 = arith.constant 64 : index
    %86 = vector.load %arg9[%c0_122, %c0_123, %c64_124] : memref<10x16x72xbf16, #tpu.memory_space<vmem>>, vector<8x16x8xbf16>
    tpu.vector_store %arg9[%c0_122, %c0_123, %c64_124], %85 {strides = array<i32>} : memref<10x16x72xbf16, #tpu.memory_space<vmem>>, vector<8x16x8xbf16>,
    %c0_125 = arith.constant 0 : index
    %c0_126 = arith.constant 0 : index
    %c0_127 = arith.constant 0 : index
    %87 = vector.load %arg9[%c0_125, %c0_126, %c0_127] : memref<10x16x72xbf16, #tpu.memory_space<vmem>>, vector<8x16x72xbf16>
    %88 = vector.shape_cast %87 : vector<8x16x72xbf16> to vector<128x72xbf16>
    %c0_128 = arith.constant 0 : index
    %c0_129 = arith.constant 0 : index
    %89 = vector.load %arg5[%c0_128, %c0_129] : memref<72x8xbf16, #tpu.memory_space<vmem>>, vector<72x8xbf16>
    %cst_130 = arith.constant dense<0.000000e+00> : vector<128x8xf32>
    %90 = tpu.matmul %88, %89, %cst_130 {dimension_numbers = #tpu.dot_dimension_numbers<[1], [0], [0], [1], [0, 0, 1, 1], [], []>} : vector<128x72xbf16>, vector<72x8xbf16>, vector<128x8xf32> -> vector<128x8xf32>
    %c0_131 = arith.constant 0 : index
    %c0_132 = arith.constant 0 : index
    %91 = vector.load %arg6[%c0_131, %c0_132] : memref<1x8xf32, #tpu.memory_space<vmem>>, vector<1x8xf32>
    %92 = vector.broadcast %91 : vector<1x8xf32> to vector<128x8xf32>
    %93 = arith.addf %90, %92 : vector<128x8xf32>
    %c2_i32_133 = arith.constant 2 : i32
    %94 = arith.addi %1, %c2_i32_133 : i32
    %c0_134 = arith.constant 0 : index
    %95 = arith.index_cast %94 : i32 to index
    %c1_135 = arith.constant 1 : index
    %c0_136 = arith.constant 0 : index
    %96 = vector.load %arg2[%c0_134, %95, %c1_135, %c0_136] : memref<1x20x18x8xbf16, #tpu.memory_space<vmem>>, vector<1x8x16x8xbf16>
    %97 = vector.shape_cast %96 : vector<1x8x16x8xbf16> to vector<8x16x8xbf16>
    %98 = vector.shape_cast %97 : vector<8x16x8xbf16> to vector<128x8xbf16>
    %99 = arith.extf %98 : vector<128x8xbf16> to vector<128x8xf32>
    %100 = arith.addf %93, %99 : vector<128x8xf32>
    %cst_137 = arith.constant 0.000000e+00 : f32
    %101 = vector.broadcast %cst_137 : f32 to vector<128x8xf32>
    %102 = arith.maximumf %100, %101 : vector<128x8xf32>
    %103 = vector.shape_cast %102 : vector<128x8xf32> to vector<1x8x16x8xf32>
    %104 = arith.truncf %103 : vector<1x8x16x8xf32> to vector<1x8x16x8xbf16>
    %c0_138 = arith.constant 0 : index
    %c0_139 = arith.constant 0 : index
    %c0_140 = arith.constant 0 : index
    %c0_141 = arith.constant 0 : index
    %105 = vector.load %arg7[%c0_138, %c0_139, %c0_140, %c0_141] : memref<1x8x16x8xbf16, #tpu.memory_space<vmem>>, vector<1x8x16x8xbf16>
    tpu.vector_store %arg7[%c0_138, %c0_139, %c0_140, %c0_141], %104 {strides = array<i32>} : memref<1x8x16x8xbf16, #tpu.memory_space<vmem>>, vector<1x8x16x8xbf16>,
    return
  }
  func.func @transform_0(%arg0: i32, %arg1: i32) -> (i32, i32, i32, i32) {
    %c0_i32 = arith.constant 0 : i32
    %c0_i32_0 = arith.constant 0 : i32
    %c0_i32_1 = arith.constant 0 : i32
    %c0_i32_2 = arith.constant 0 : i32
    return %arg0, %c0_i32, %c0_i32_0, %c0_i32_1 : i32, i32, i32, i32
  }
  func.func @transform_1(%arg0: i32, %arg1: i32) -> (i32, i32) {
    %c0_i32 = arith.constant 0 : i32
    %c0_i32_0 = arith.constant 0 : i32
    %c0_i32_1 = arith.constant 0 : i32
    return %c0_i32, %c0_i32_0 : i32, i32
  }
  func.func @transform_2(%arg0: i32, %arg1: i32) -> (i32, i32) {
    %c0_i32 = arith.constant 0 : i32
    %c0_i32_0 = arith.constant 0 : i32
    %c0_i32_1 = arith.constant 0 : i32
    return %c0_i32, %c0_i32_0 : i32, i32
  }
  func.func @transform_3(%arg0: i32, %arg1: i32) -> (i32, i32) {
    %c0_i32 = arith.constant 0 : i32
    %c0_i32_0 = arith.constant 0 : i32
    %c0_i32_1 = arith.constant 0 : i32
    return %c0_i32, %c0_i32_0 : i32, i32
  }
  func.func @transform_4(%arg0: i32, %arg1: i32) -> (i32, i32) {
    %c0_i32 = arith.constant 0 : i32
    %c0_i32_0 = arith.constant 0 : i32
    %c0_i32_1 = arith.constant 0 : i32
    return %c0_i32, %c0_i32_0 : i32, i32
  }
  func.func @transform_5(%arg0: i32, %arg1: i32) -> (i32, i32, i32, i32) {
    %c0_i32 = arith.constant 0 : i32
    %c0_i32_0 = arith.constant 0 : i32
    %c0_i32_1 = arith.constant 0 : i32
    return %arg0, %arg1, %c0_i32, %c0_i32_0 : i32, i32, i32, i32
  }
}

</mosaic_0001>

<llo_original>
// kernel: tpu_custom_call.1
$region0: #{tpu_custom_call.1}
  #allocation0 [shape = 'u32[]', space=smem, size = 0x4, offset = 0x4, fixed_abs, tag = 'smem constant byte address 0x4 - core index']
  #allocation1 [shape = 'u32[144,128]{1,0:T(1,128)}', space=vmem, size = 0x12000, scoped, tag = 'internal scratch']
  #allocation2 [shape = 'bf16[10,18,8]{2,1,0:T(8,128)(2,1)}', space=vmem, size = 0xf000, scoped, tag = 'scratch operand']
  #allocation3 [shape = 'bf16[10,16,72]{2,1,0:T(8,128)(2,1)}', space=vmem, size = 0xa000, scoped, tag = 'scratch operand']
  %s0 = inlined_call_operand.vmem [shape: bf16[2,20,18,8], index: 0, kind: input, shape index: {}]
  %s1 = inlined_call_operand.vmem [shape: bf16[72,8], index: 1, kind: input, shape index: {}]
  %s2 = inlined_call_operand.vmem [shape: f32[1,8], index: 2, kind: input, shape index: {}]
  %s3 = inlined_call_operand.vmem [shape: bf16[72,8], index: 3, kind: input, shape index: {}]
  %s4 = inlined_call_operand.vmem [shape: f32[1,8], index: 4, kind: input, shape index: {}]
  %s5 = inlined_call_operand.vmem [shape: bf16[2,16,16,8], index: 5, kind: output, shape index: {}]
  %s6 = sld [smem:[#allocation0]]
  $region61: #{tpu_custom_call.1} parent=0
    _
  %s8 = ssub.s32 1, %s6
  %s9 = scalar_select 0, %s8, %s6
  loop: start=0, step=1, limit=6
  $region2: #{tpu_custom_call.1} parent=0 // loop_pre_header
    _
  $region3: #{tpu_custom_call.1} parent=0 // loop_header
    %s11 = sphi 0, %s15
    %p12 = scmp.ge.s32.totalorder %s11, 6
    %s18 = sphi 0, %s30
    %s19 = sphi 0, %s26
    %s20 = sphi 0, %s18
    %s21 = sphi 0, %s19
    %s22 = sphi 0, %s20
    %s23 = sphi 0, %s21
    %s33 = sphi 0, %s35
    %s36 = sphi 0, %s33
    %s37 = sphi 0, %s36
    %s53 = sphi 0, %s37
    %s57 = sphi 0, %s57
    %s59 = sphi 0, %s57
    %s60 = sphi 0, %s59
    %s74 = sphi 0, %s60
    %s78 = sphi 0, %s78
    %s80 = sphi 0, %s78
    %s81 = sphi 0, %s80
    %s95 = sphi 0, %s81
    %s99 = sphi 0, %s99
    %s101 = sphi 0, %s99
    %s102 = sphi 0, %s101
    %s116 = sphi 0, %s102
    %s120 = sphi 0, %s120
    %s122 = sphi 0, %s120
    %s123 = sphi 0, %s122
    %s137 = sphi 0, %s123
    %s145 = sphi 0, %s147
    %s148 = sphi 0, %s145
    %s149 = sphi 0, %s148
    %s165 = sphi 0, %s149
  $region4: #{tpu_custom_call.1} parent=0 // loop_header_branch
    %14 = sbr.rel (%p12) target = $region8
  $region5: #{tpu_custom_call.1} parent=0 // loop_body
    %s16 = ssub.s32 %s11, 1
    %s17 = ssub.s32 %s11, 2
    %s24 = sadd.s32 1, %s19
    %p25 = scmp.ge.s32.totalorder %s24, 2
    %s26 = scalar_select %p25, 0, %s24
    %s27 = sadd.s32 1, %s18
    %s28 = scalar_select %p25, %s27, %s18
    %p29 = scmp.ge.s32.totalorder %s28, 2
    %s30 = scalar_select %p29, 0, %s28
    %s31 = ssub.s32 %s18, %s30
    %p32 = scmp.eq.s32.totalorder %s31, 0
    %s34 = sadd.s32 %s33, 1
    %s35 = scalar_select %p32, %s33, %s34
    %p38 = pneg %p32
    %p39 = scmp.eq.s32.totalorder %s11, 3
    %p40 = por %p38, %p39
    %p41 = scmp.ne.s32.totalorder %s33, %s36
    %p42 = scmp.eq.s32.totalorder %s11, 0
    %p43 = por %p41, %p42
    %p44 = scmp.ne.s32.totalorder %s33, %s36
    %p45 = scmp.eq.s32.totalorder %s16, 3
    %p46 = por %p44, %p45
    %p47 = scmp.ne.s32.totalorder %s36, %s37
    %p48 = scmp.eq.s32.totalorder %s16, 0
    %p49 = por %p47, %p48
    %p50 = scmp.ne.s32.totalorder %s36, %s37
    %p51 = scmp.eq.s32.totalorder %s17, 3
    %p52 = por %p50, %p51
    %p54 = scmp.ne.s32.totalorder %s37, %s53
    %p55 = scmp.eq.s32.totalorder %s17, 0
    %p56 = por %p54, %p55
    %s58 = sadd.s32 %s57, 1
    %p61 = scmp.eq.s32.totalorder %s11, 3
    %p62 = scmp.ne.s32.totalorder %s57, %s59
    %p63 = scmp.eq.s32.totalorder %s11, 0
    %p64 = por %p62, %p63
    %p65 = scmp.ne.s32.totalorder %s57, %s59
    %p66 = scmp.eq.s32.totalorder %s16, 3
    %p67 = por %p65, %p66
    %p68 = scmp.ne.s32.totalorder %s59, %s60
    %p69 = scmp.eq.s32.totalorder %s16, 0
    %p70 = por %p68, %p69
    %p71 = scmp.ne.s32.totalorder %s59, %s60
    %p72 = scmp.eq.s32.totalorder %s17, 3
    %p73 = por %p71, %p72
    %p75 = scmp.ne.s32.totalorder %s60, %s74
    %p76 = scmp.eq.s32.totalorder %s17, 0
    %p77 = por %p75, %p76
    %s79 = sadd.s32 %s78, 1
    %p82 = scmp.eq.s32.totalorder %s11, 3
    %p83 = scmp.ne.s32.totalorder %s78, %s80
    %p84 = scmp.eq.s32.totalorder %s11, 0
    %p85 = por %p83, %p84
    %p86 = scmp.ne.s32.totalorder %s78, %s80
    %p87 = scmp.eq.s32.totalorder %s16, 3
    %p88 = por %p86, %p87
    %p89 = scmp.ne.s32.totalorder %s80, %s81
    %p90 = scmp.eq.s32.totalorder %s16, 0
    %p91 = por %p89, %p90
    %p92 = scmp.ne.s32.totalorder %s80, %s81
    %p93 = scmp.eq.s32.totalorder %s17, 3
    %p94 = por %p92, %p93
    %p96 = scmp.ne.s32.totalorder %s81, %s95
    %p97 = scmp.eq.s32.totalorder %s17, 0
    %p98 = por %p96, %p97
    %s100 = sadd.s32 %s99, 1
    %p103 = scmp.eq.s32.totalorder %s11, 3
    %p104 = scmp.ne.s32.totalorder %s99, %s101
    %p105 = scmp.eq.s32.totalorder %s11, 0
    %p106 = por %p104, %p105
    %p107 = scmp.ne.s32.totalorder %s99, %s101
    %p108 = scmp.eq.s32.totalorder %s16, 3
    %p109 = por %p107, %p108
    %p110 = scmp.ne.s32.totalorder %s101, %s102
    %p111 = scmp.eq.s32.totalorder %s16, 0
    %p112 = por %p110, %p111
    %p113 = scmp.ne.s32.totalorder %s101, %s102
    %p114 = scmp.eq.s32.totalorder %s17, 3
    %p115 = por %p113, %p114
    %p117 = scmp.ne.s32.totalorder %s102, %s116
    %p118 = scmp.eq.s32.totalorder %s17, 0
    %p119 = por %p117, %p118
    %s121 = sadd.s32 %s120, 1
    %p124 = scmp.eq.s32.totalorder %s11, 3
    %p125 = scmp.ne.s32.totalorder %s120, %s122
    %p126 = scmp.eq.s32.totalorder %s11, 0
    %p127 = por %p125, %p126
    %p128 = scmp.ne.s32.totalorder %s120, %s122
    %p129 = scmp.eq.s32.totalorder %s16, 3
    %p130 = por %p128, %p129
    %p131 = scmp.ne.s32.totalorder %s122, %s123
    %p132 = scmp.eq.s32.totalorder %s16, 0
    %p133 = por %p131, %p132
    %p134 = scmp.ne.s32.totalorder %s122, %s123
    %p135 = scmp.eq.s32.totalorder %s17, 3
    %p136 = por %p134, %p135
    %p138 = scmp.ne.s32.totalorder %s123, %s137
    %p139 = scmp.eq.s32.totalorder %s17, 0
    %p140 = por %p138, %p139
    %s141 = ssub.s32 %s18, %s30
    %s142 = ssub.s32 %s19, %s26
    %s143 = sor.u32 %s141, %s142
    %p144 = scmp.eq.s32.totalorder %s143, 0
    %s146 = sadd.s32 %s145, 1
    %s147 = scalar_select %p144, %s145, %s146
    %p150 = pneg %p144
    %p151 = scmp.eq.s32.totalorder %s11, 3
    %p152 = por %p150, %p151
    %p153 = scmp.ne.s32.totalorder %s145, %s148
    %p154 = scmp.eq.s32.totalorder %s11, 0
    %p155 = por %p153, %p154
    %p156 = scmp.ne.s32.totalorder %s145, %s148
    %p157 = scmp.eq.s32.totalorder %s16, 3
    %p158 = por %p156, %p157
    %p159 = scmp.ne.s32.totalorder %s148, %s149
    %p160 = scmp.eq.s32.totalorder %s16, 0
    %p161 = por %p159, %p160
    %p162 = scmp.ne.s32.totalorder %s148, %s149
    %p163 = scmp.eq.s32.totalorder %s17, 3
    %p164 = por %p162, %p163
    %p166 = scmp.ne.s32.totalorder %s149, %s165
    %p167 = scmp.eq.s32.totalorder %s17, 0
    %p168 = por %p166, %p167
    %p169 = scmp.le.s32.totalorder 1, %s11
    %p170 = scmp.lt.s32.totalorder %s11, 5
    %p171 = pnand %p169, %p170
    %p172 = pneg %p171
    // Predicated region
    $region9: #{tpu_custom_call.1} parent=5 // pred_check
      _
    $region10: #{tpu_custom_call.1} parent=5 // pred_check_branch
      %174 = sbr.rel (%p171) target = $region12
    $region11: #{tpu_custom_call.1} parent=5 // pred_region
      %s175 = ssub.s32 %s11, 1
      // Predicated region
      $region13: #{tpu_custom_call.1} parent=11 // pred_check
        %p176 = pneg %p70
      $region14: #{tpu_custom_call.1} parent=11 // pred_check_branch
        %178 = sbr.rel (%p176) target = $region16
      $region15: #{tpu_custom_call.1} parent=11 // pred_region
        _
      $region16: #{tpu_custom_call.1} parent=11 // pred_fallthru
        _
      // Predicated region
      $region17: #{tpu_custom_call.1} parent=11 // pred_check
        %p179 = pneg %p91
      $region18: #{tpu_custom_call.1} parent=11 // pred_check_branch
        %181 = sbr.rel (%p179) target = $region20
      $region19: #{tpu_custom_call.1} parent=11 // pred_region
        _
      $region20: #{tpu_custom_call.1} parent=11 // pred_fallthru
        _
      // Predicated region
      $region21: #{tpu_custom_call.1} parent=11 // pred_check
        %p182 = pneg %p112
      $region22: #{tpu_custom_call.1} parent=11 // pred_check_branch
        %184 = sbr.rel (%p182) target = $region24
      $region23: #{tpu_custom_call.1} parent=11 // pred_region
        _
      $region24: #{tpu_custom_call.1} parent=11 // pred_fallthru
        _
      // Predicated region
      $region25: #{tpu_custom_call.1} parent=11 // pred_check
        %p185 = pneg %p133
      $region26: #{tpu_custom_call.1} parent=11 // pred_check_branch
        %187 = sbr.rel (%p185) target = $region28
      $region27: #{tpu_custom_call.1} parent=11 // pred_region
        _
      $region28: #{tpu_custom_call.1} parent=11 // pred_fallthru
        _
    $region12: #{tpu_custom_call.1} parent=5 // pred_fallthru
      _
    %p188 = scmp.lt.s32.totalorder %s11, 4
    // Predicated region
    $region29: #{tpu_custom_call.1} parent=5 // pred_check
      %p189 = pneg %p188
    $region30: #{tpu_custom_call.1} parent=5 // pred_check_branch
      %191 = sbr.rel (%p189) target = $region32
    $region31: #{tpu_custom_call.1} parent=5 // pred_region
      // Predicated region
      $region33: #{tpu_custom_call.1} parent=31 // pred_check
        %p192 = pneg %p43
      $region34: #{tpu_custom_call.1} parent=31 // pred_check_branch
        %194 = sbr.rel (%p192) target = $region36
      $region35: #{tpu_custom_call.1} parent=31 // pred_region
        %p195 = scmp.lt.s32.totalorder %s18, 1
        %s196 = scalar_select %p195, %s18, 1
        %s197 = smul.addr %s196, 60
        %s198 = smul.addr %s197, 4
        %s199 = scalar_lea.vmem %s0, %s198
      $region36: #{tpu_custom_call.1} parent=31 // pred_fallthru
        _
    $region32: #{tpu_custom_call.1} parent=5 // pred_fallthru
      _
    %p200 = scmp.le.s32.totalorder 1, %s11
    %p201 = scmp.lt.s32.totalorder %s11, 5
    %p202 = pnand %p200, %p201
    %p203 = pneg %p202
    // Predicated region
    $region37: #{tpu_custom_call.1} parent=5 // pred_check
      _
    $region38: #{tpu_custom_call.1} parent=5 // pred_check_branch
      %205 = sbr.rel (%p202) target = $region40
    $region39: #{tpu_custom_call.1} parent=5 // pred_region
      %s206 = ssub.s32 %s11, 1
      %p207 = scmp.lt.s32.totalorder %s20, 1
      %s208 = scalar_select %p207, %s20, 1
      %s209 = smul.addr %s208, 60
      %s210 = smul.addr %s209, 4
      %s211 = scalar_lea.vmem %s0, %s210
      %p212 = pneg %p49
      %p213 = pneg %p46
      %p214 = pneg %p70
      %p215 = pneg %p67
      %p216 = pneg %p91
      %p217 = pneg %p88
      %p218 = pneg %p112
      %p219 = pneg %p109
      %p220 = pneg %p133
      %p221 = pneg %p130
      %p222 = pneg %p161
      %p223 = pneg %p158
      %s224 = smul.u32 8, %s21
      %p225 = scmp.lt.s32.totalorder %s20, 1
      %s226 = scalar_select %p225, %s20, 1
      %p227 = scmp.lt.s32.totalorder %s224, 15
      %s228 = scalar_select %p227, %s224, 15
      %s229 = smul.addr %s228, 2
      %s230 = smul.addr %s226, 32
      %s231 = sadd.s32 %s229, %s230
      %s232 = smul.addr %s231, 4
      %s233 = scalar_lea.vmem %s5, %s232
      %p234 = scmp.lt.s32.totalorder %s20, 1
      %s235 = scalar_select %p234, %s20, 1
      %s236 = smul.addr %s235, 60
      %s237 = smul.addr %s236, 4
      %s238 = scalar_lea.vmem %s0, %s237
      %s239 = smul.u32 8, %s21
      %p240 = scmp.lt.s32.totalorder %s20, 1
      %s241 = scalar_select %p240, %s20, 1
      %p242 = scmp.lt.s32.totalorder %s239, 15
      %s243 = scalar_select %p242, %s239, 15
      %s244 = smul.addr %s243, 2
      %s245 = smul.addr %s241, 32
      %s246 = sadd.s32 %s244, %s245
      %s247 = smul.addr %s246, 4
      %s248 = scalar_lea.vmem %s5, %s247
      %s249 = smul.u32 8, %s21
      %s251 = smul.u32 %s21, 8
      %s252 = smul.u32 %s251, 3
      %s253 = smul.addr %s252, 4
      %s254 = scalar_lea.vmem %s238, %s253
      %v255 = vld [vmem:[%s254] sm:$0xf]
      %v256 = vld [vmem:[%s254 + $0x4] sm:$0xf]
      %v257 = vld [vmem:[%s254 + $0xc] sm:$0xf]
      %v258 = vld [vmem:[%s254 + $0x10] sm:$0xf]
      %v259 = vld [vmem:[%s254 + $0x18] sm:$0xf]
      %v260 = vld [vmem:[%s254 + $0x1c] sm:$0xf]
      %v261 = vld [vmem:[%s254 + $0x24] sm:$0xf]
      %v262 = vld [vmem:[%s254 + $0x28] sm:$0xf]
      %v263 = vld [vmem:[%s254 + $0x30] sm:$0xf]
      %v264 = vld [vmem:[%s254 + $0x34] sm:$0xf]
      %v265 = vld [vmem:[%s254 + $0x3c] sm:$0xf]
      %v266 = vld [vmem:[%s254 + $0x40] sm:$0xf]
      %v267 = vld [vmem:[%s254 + $0x48] sm:$0xf]
      %v268 = vld [vmem:[%s254 + $0x4c] sm:$0xf]
      %v269 = vld [vmem:[%s254 + $0x54] sm:$0xf]
      %v270 = vld [vmem:[%s254 + $0x58] sm:$0xf]
      %v271 = vld [vmem:[%s254 + $0x60] sm:$0xf]
      %v272 = vld [vmem:[%s254 + $0x64] sm:$0xf]
      %v273 = vld [vmem:[%s254 + $0x6c] sm:$0xf]
      %v274 = vld [vmem:[%s254 + $0x70] sm:$0xf]
      %vm275 = vcmask 60416
      %276 = vst.msk [vmem:[#allocation3] sm:$0xf] %vm275, %v255
      %277 = vst.msk [vmem:[#allocation3 + $0x4] sm:$0xf] %vm275, %v256
      %278 = vst.msk [vmem:[#allocation3 + $0x8] sm:$0xf] %vm275, %v257
      %279 = vst.msk [vmem:[#allocation3 + $0xc] sm:$0xf] %vm275, %v258
      %280 = vst.msk [vmem:[#allocation3 + $0x10] sm:$0xf] %vm275, %v259
      %281 = vst.msk [vmem:[#allocation3 + $0x14] sm:$0xf] %vm275, %v260
      %282 = vst.msk [vmem:[#allocation3 + $0x18] sm:$0xf] %vm275, %v261
      %283 = vst.msk [vmem:[#allocation3 + $0x1c] sm:$0xf] %vm275, %v262
      %284 = vst.msk [vmem:[#allocation3 + $0x20] sm:$0xf] %vm275, %v263
      %285 = vst.msk [vmem:[#allocation3 + $0x24] sm:$0xf] %vm275, %v264
      %286 = vst.msk [vmem:[#allocation3 + $0x28] sm:$0xf] %vm275, %v265
      %287 = vst.msk [vmem:[#allocation3 + $0x2c] sm:$0xf] %vm275, %v266
      %288 = vst.msk [vmem:[#allocation3 + $0x30] sm:$0xf] %vm275, %v267
      %289 = vst.msk [vmem:[#allocation3 + $0x34] sm:$0xf] %vm275, %v268
      %290 = vst.msk [vmem:[#allocation3 + $0x38] sm:$0xf] %vm275, %v269
      %291 = vst.msk [vmem:[#allocation3 + $0x3c] sm:$0xf] %vm275, %v270
      %292 = vst.msk [vmem:[#allocation3 + $0x40] sm:$0xf] %vm275, %v271
      %293 = vst.msk [vmem:[#allocation3 + $0x44] sm:$0xf] %vm275, %v272
      %294 = vst.msk [vmem:[#allocation3 + $0x48] sm:$0xf] %vm275, %v273
      %295 = vst.msk [vmem:[#allocation3 + $0x4c] sm:$0xf] %vm275, %v274
      %v296 = vld [vmem:[%s254] sm:$0xf]
      %v297 = vld [vmem:[%s254 + $0x4] sm:$0xf]
      %v298 = vld [vmem:[%s254 + $0x8] sm:$0x1]
      %v299 = vld [vmem:[%s254 + $0xc] sm:$0xf]
      %v300 = vld [vmem:[%s254 + $0x10] sm:$0xf]
      %v301 = vld [vmem:[%s254 + $0x14] sm:$0x1]
      %v302 = vld [vmem:[%s254 + $0x18] sm:$0xf]
      %v303 = vld [vmem:[%s254 + $0x1c] sm:$0xf]
      %v304 = vld [vmem:[%s254 + $0x20] sm:$0x1]
      %v305 = vld [vmem:[%s254 + $0x24] sm:$0xf]
      %v306 = vld [vmem:[%s254 + $0x28] sm:$0xf]
      %v307 = vld [vmem:[%s254 + $0x2c] sm:$0x1]
      %v308 = vld [vmem:[%s254 + $0x30] sm:$0xf]
      %v309 = vld [vmem:[%s254 + $0x34] sm:$0xf]
      %v310 = vld [vmem:[%s254 + $0x38] sm:$0x1]
      %v311 = vld [vmem:[%s254 + $0x3c] sm:$0xf]
      %v312 = vld [vmem:[%s254 + $0x40] sm:$0xf]
      %v313 = vld [vmem:[%s254 + $0x44] sm:$0x1]
      %v314 = vld [vmem:[%s254 + $0x48] sm:$0xf]
      %v315 = vld [vmem:[%s254 + $0x4c] sm:$0xf]
      %v316 = vld [vmem:[%s254 + $0x50] sm:$0x1]
      %v317 = vld [vmem:[%s254 + $0x54] sm:$0xf]
      %v318 = vld [vmem:[%s254 + $0x58] sm:$0xf]
      %v319 = vld [vmem:[%s254 + $0x5c] sm:$0x1]
      %v320 = vld [vmem:[%s254 + $0x60] sm:$0xf]
      %v321 = vld [vmem:[%s254 + $0x64] sm:$0xf]
      %v322 = vld [vmem:[%s254 + $0x68] sm:$0x1]
      %v323 = vld [vmem:[%s254 + $0x6c] sm:$0xf]
      %v324 = vld [vmem:[%s254 + $0x70] sm:$0xf]
      %v325 = vld [vmem:[%s254 + $0x74] sm:$0x1]
      %vm326 = vsmask.f32 3328
      %vm327 = vsmask.f32 7440
      %vm328 = vmor %vm326, %vm327
      %v330 = vshrl.u32 %v296, 16
      %v332 = vrot.slane %v330, 4
      %v333 = vshll.u32 %v296, 16
      %v335 = vrot.slane %v333, 5
      %v336 = vor.u32 %v332, %v335
      %v337 = vrot.slane %v336, 4
      %v339 = vshll.u32 %v297, 16
      %v341 = vrot.slane %v339, 5
      %v342 = vsel %vm328, %v337, %v341
      %v343 = vshrl.u32 %v297, 16
      %v345 = vrot.slane %v343, 4
      %v346 = vor.u32 %v345, %v341
      %v347 = vrot.slane %v346, 4
      %v349 = vshll.u32 %v298, 16
      %v351 = vrot.slane %v349, 5
      %v352 = vsel %vm328, %v347, %v351
      %v354 = vshrl.u32 %v299, 16
      %v356 = vrot.slane %v354, 4
      %v357 = vshll.u32 %v299, 16
      %v359 = vrot.slane %v357, 5
      %v360 = vor.u32 %v356, %v359
      %v361 = vrot.slane %v360, 4
      %v363 = vshll.u32 %v300, 16
      %v365 = vrot.slane %v363, 5
      %v366 = vsel %vm328, %v361, %v365
      %v367 = vshrl.u32 %v300, 16
      %v369 = vrot.slane %v367, 4
      %v370 = vor.u32 %v369, %v365
      %v371 = vrot.slane %v370, 4
      %v373 = vshll.u32 %v301, 16
      %v375 = vrot.slane %v373, 5
      %v376 = vsel %vm328, %v371, %v375
      %v378 = vshrl.u32 %v302, 16
      %v380 = vrot.slane %v378, 4
      %v381 = vshll.u32 %v302, 16
      %v383 = vrot.slane %v381, 5
      %v384 = vor.u32 %v380, %v383
      %v385 = vrot.slane %v384, 4
      %v387 = vshll.u32 %v303, 16
      %v389 = vrot.slane %v387, 5
      %v390 = vsel %vm328, %v385, %v389
      %v391 = vshrl.u32 %v303, 16
      %v393 = vrot.slane %v391, 4
      %v394 = vor.u32 %v393, %v389
      %v395 = vrot.slane %v394, 4
      %v397 = vshll.u32 %v304, 16
      %v399 = vrot.slane %v397, 5
      %v400 = vsel %vm328, %v395, %v399
      %v402 = vshrl.u32 %v305, 16
      %v404 = vrot.slane %v402, 4
      %v405 = vshll.u32 %v305, 16
      %v407 = vrot.slane %v405, 5
      %v408 = vor.u32 %v404, %v407
      %v409 = vrot.slane %v408, 4
      %v411 = vshll.u32 %v306, 16
      %v413 = vrot.slane %v411, 5
      %v414 = vsel %vm328, %v409, %v413
      %v415 = vshrl.u32 %v306, 16
      %v417 = vrot.slane %v415, 4
      %v418 = vor.u32 %v417, %v413
      %v419 = vrot.slane %v418, 4
      %v421 = vshll.u32 %v307, 16
      %v423 = vrot.slane %v421, 5
      %v424 = vsel %vm328, %v419, %v423
      %v426 = vshrl.u32 %v308, 16
      %v428 = vrot.slane %v426, 4
      %v429 = vshll.u32 %v308, 16
      %v431 = vrot.slane %v429, 5
      %v432 = vor.u32 %v428, %v431
      %v433 = vrot.slane %v432, 4
      %v435 = vshll.u32 %v309, 16
      %v437 = vrot.slane %v435, 5
      %v438 = vsel %vm328, %v433, %v437
      %v439 = vshrl.u32 %v309, 16
      %v441 = vrot.slane %v439, 4
      %v442 = vor.u32 %v441, %v437
      %v443 = vrot.slane %v442, 4
      %v445 = vshll.u32 %v310, 16
      %v447 = vrot.slane %v445, 5
      %v448 = vsel %vm328, %v443, %v447
      %v450 = vshrl.u32 %v311, 16
      %v452 = vrot.slane %v450, 4
      %v453 = vshll.u32 %v311, 16
      %v455 = vrot.slane %v453, 5
      %v456 = vor.u32 %v452, %v455
      %v457 = vrot.slane %v456, 4
      %v459 = vshll.u32 %v312, 16
      %v461 = vrot.slane %v459, 5
      %v462 = vsel %vm328, %v457, %v461
      %v463 = vshrl.u32 %v312, 16
      %v465 = vrot.slane %v463, 4
      %v466 = vor.u32 %v465, %v461
      %v467 = vrot.slane %v466, 4
      %v469 = vshll.u32 %v313, 16
      %v471 = vrot.slane %v469, 5
      %v472 = vsel %vm328, %v467, %v471
      %v474 = vshrl.u32 %v314, 16
      %v476 = vrot.slane %v474, 4
      %v477 = vshll.u32 %v314, 16
      %v479 = vrot.slane %v477, 5
      %v480 = vor.u32 %v476, %v479
      %v481 = vrot.slane %v480, 4
      %v483 = vshll.u32 %v315, 16
      %v485 = vrot.slane %v483, 5
      %v486 = vsel %vm328, %v481, %v485
      %v487 = vshrl.u32 %v315, 16
      %v489 = vrot.slane %v487, 4
      %v490 = vor.u32 %v489, %v485
      %v491 = vrot.slane %v490, 4
      %v493 = vshll.u32 %v316, 16
      %v495 = vrot.slane %v493, 5
      %v496 = vsel %vm328, %v491, %v495
      %v498 = vshrl.u32 %v317, 16
      %v500 = vrot.slane %v498, 4
      %v501 = vshll.u32 %v317, 16
      %v503 = vrot.slane %v501, 5
      %v504 = vor.u32 %v500, %v503
      %v505 = vrot.slane %v504, 4
      %v507 = vshll.u32 %v318, 16
      %v509 = vrot.slane %v507, 5
      %v510 = vsel %vm328, %v505, %v509
      %v511 = vshrl.u32 %v318, 16
      %v513 = vrot.slane %v511, 4
      %v514 = vor.u32 %v513, %v509
      %v515 = vrot.slane %v514, 4
      %v517 = vshll.u32 %v319, 16
      %v519 = vrot.slane %v517, 5
      %v520 = vsel %vm328, %v515, %v519
      %v522 = vshrl.u32 %v320, 16
      %v524 = vrot.slane %v522, 4
      %v525 = vshll.u32 %v320, 16
      %v527 = vrot.slane %v525, 5
      %v528 = vor.u32 %v524, %v527
      %v529 = vrot.slane %v528, 4
      %v531 = vshll.u32 %v321, 16
      %v533 = vrot.slane %v531, 5
      %v534 = vsel %vm328, %v529, %v533
      %v535 = vshrl.u32 %v321, 16
      %v537 = vrot.slane %v535, 4
      %v538 = vor.u32 %v537, %v533
      %v539 = vrot.slane %v538, 4
      %v541 = vshll.u32 %v322, 16
      %v543 = vrot.slane %v541, 5
      %v544 = vsel %vm328, %v539, %v543
      %v546 = vshrl.u32 %v323, 16
      %v548 = vrot.slane %v546, 4
      %v549 = vshll.u32 %v323, 16
      %v551 = vrot.slane %v549, 5
      %v552 = vor.u32 %v548, %v551
      %v553 = vrot.slane %v552, 4
      %v555 = vshll.u32 %v324, 16
      %v557 = vrot.slane %v555, 5
      %v558 = vsel %vm328, %v553, %v557
      %v559 = vshrl.u32 %v324, 16
      %v561 = vrot.slane %v559, 4
      %v562 = vor.u32 %v561, %v557
      %v563 = vrot.slane %v562, 4
      %v565 = vshll.u32 %v325, 16
      %v567 = vrot.slane %v565, 5
      %v568 = vsel %vm328, %v563, %v567
      %569 = vrot.lane.b32.xlu0 %v342, 8
      %v570 = vpop.permute.xlu0 %569
      %571 = vrot.lane.b32.xlu0 %v352, 8
      %v572 = vpop.permute.xlu0 %571
      %573 = vrot.lane.b32.xlu0 %v366, 8
      %v574 = vpop.permute.xlu0 %573
      %575 = vrot.lane.b32.xlu0 %v376, 8
      %v576 = vpop.permute.xlu0 %575
      %577 = vrot.lane.b32.xlu0 %v390, 8
      %v578 = vpop.permute.xlu0 %577
      %579 = vrot.lane.b32.xlu0 %v400, 8
      %v580 = vpop.permute.xlu0 %579
      %581 = vrot.lane.b32.xlu0 %v414, 8
      %v582 = vpop.permute.xlu0 %581
      %583 = vrot.lane.b32.xlu0 %v424, 8
      %v584 = vpop.permute.xlu0 %583
      %585 = vrot.lane.b32.xlu0 %v438, 8
      %v586 = vpop.permute.xlu0 %585
      %587 = vrot.lane.b32.xlu0 %v448, 8
      %v588 = vpop.permute.xlu0 %587
      %589 = vrot.lane.b32.xlu0 %v462, 8
      %v590 = vpop.permute.xlu0 %589
      %591 = vrot.lane.b32.xlu0 %v472, 8
      %v592 = vpop.permute.xlu0 %591
      %593 = vrot.lane.b32.xlu0 %v486, 8
      %v594 = vpop.permute.xlu0 %593
      %595 = vrot.lane.b32.xlu0 %v496, 8
      %v596 = vpop.permute.xlu0 %595
      %597 = vrot.lane.b32.xlu0 %v510, 8
      %v598 = vpop.permute.xlu0 %597
      %599 = vrot.lane.b32.xlu0 %v520, 8
      %v600 = vpop.permute.xlu0 %599
      %601 = vrot.lane.b32.xlu0 %v534, 8
      %v602 = vpop.permute.xlu0 %601
      %603 = vrot.lane.b32.xlu0 %v544, 8
      %v604 = vpop.permute.xlu0 %603
      %605 = vrot.lane.b32.xlu0 %v558, 8
      %v606 = vpop.permute.xlu0 %605
      %607 = vrot.lane.b32.xlu0 %v568, 8
      %v608 = vpop.permute.xlu0 %607
      %vm629 = vcmask 126016
      %630 = vst.msk [vmem:[#allocation3] sm:$0xf] %vm629, %v570
      %631 = vst.msk [vmem:[#allocation3 + $0x4] sm:$0xf] %vm629, %v572
      %632 = vst.msk [vmem:[#allocation3 + $0x8] sm:$0xf] %vm629, %v574
      %633 = vst.msk [vmem:[#allocation3 + $0xc] sm:$0xf] %vm629, %v576
      %634 = vst.msk [vmem:[#allocation3 + $0x10] sm:$0xf] %vm629, %v578
      %635 = vst.msk [vmem:[#allocation3 + $0x14] sm:$0xf] %vm629, %v580
      %636 = vst.msk [vmem:[#allocation3 + $0x18] sm:$0xf] %vm629, %v582
      %637 = vst.msk [vmem:[#allocation3 + $0x1c] sm:$0xf] %vm629, %v584
      %638 = vst.msk [vmem:[#allocation3 + $0x20] sm:$0xf] %vm629, %v586
      %639 = vst.msk [vmem:[#allocation3 + $0x24] sm:$0xf] %vm629, %v588
      %640 = vst.msk [vmem:[#allocation3 + $0x28] sm:$0xf] %vm629, %v590
      %641 = vst.msk [vmem:[#allocation3 + $0x2c] sm:$0xf] %vm629, %v592
      %642 = vst.msk [vmem:[#allocation3 + $0x30] sm:$0xf] %vm629, %v594
      %643 = vst.msk [vmem:[#allocation3 + $0x34] sm:$0xf] %vm629, %v596
      %644 = vst.msk [vmem:[#allocation3 + $0x38] sm:$0xf] %vm629, %v598
      %645 = vst.msk [vmem:[#allocation3 + $0x3c] sm:$0xf] %vm629, %v600
      %646 = vst.msk [vmem:[#allocation3 + $0x40] sm:$0xf] %vm629, %v602
      %647 = vst.msk [vmem:[#allocation3 + $0x44] sm:$0xf] %vm629, %v604
      %648 = vst.msk [vmem:[#allocation3 + $0x48] sm:$0xf] %vm629, %v606
      %649 = vst.msk [vmem:[#allocation3 + $0x4c] sm:$0xf] %vm629, %v608
      %v650 = vld [vmem:[%s254] sm:$0xe]
      %v651 = vld [vmem:[%s254 + $0x4] sm:$0xf]
      %v652 = vld [vmem:[%s254 + $0x8] sm:$0x1]
      %v653 = vld [vmem:[%s254 + $0xc] sm:$0xe]
      %v654 = vld [vmem:[%s254 + $0x10] sm:$0xf]
      %v655 = vld [vmem:[%s254 + $0x14] sm:$0x1]
      %v656 = vld [vmem:[%s254 + $0x18] sm:$0xe]
      %v657 = vld [vmem:[%s254 + $0x1c] sm:$0xf]
      %v658 = vld [vmem:[%s254 + $0x20] sm:$0x1]
      %v659 = vld [vmem:[%s254 + $0x24] sm:$0xe]
      %v660 = vld [vmem:[%s254 + $0x28] sm:$0xf]
      %v661 = vld [vmem:[%s254 + $0x2c] sm:$0x1]
      %v662 = vld [vmem:[%s254 + $0x30] sm:$0xe]
      %v663 = vld [vmem:[%s254 + $0x34] sm:$0xf]
      %v664 = vld [vmem:[%s254 + $0x38] sm:$0x1]
      %v665 = vld [vmem:[%s254 + $0x3c] sm:$0xe]
      %v666 = vld [vmem:[%s254 + $0x40] sm:$0xf]
      %v667 = vld [vmem:[%s254 + $0x44] sm:$0x1]
      %v668 = vld [vmem:[%s254 + $0x48] sm:$0xe]
      %v669 = vld [vmem:[%s254 + $0x4c] sm:$0xf]
      %v670 = vld [vmem:[%s254 + $0x50] sm:$0x1]
      %v671 = vld [vmem:[%s254 + $0x54] sm:$0xe]
      %v672 = vld [vmem:[%s254 + $0x58] sm:$0xf]
      %v673 = vld [vmem:[%s254 + $0x5c] sm:$0x1]
      %v674 = vld [vmem:[%s254 + $0x60] sm:$0xe]
      %v675 = vld [vmem:[%s254 + $0x64] sm:$0xf]
      %v676 = vld [vmem:[%s254 + $0x68] sm:$0x1]
      %v677 = vld [vmem:[%s254 + $0x6c] sm:$0xe]
      %v678 = vld [vmem:[%s254 + $0x70] sm:$0xf]
      %v679 = vld [vmem:[%s254 + $0x74] sm:$0x1]
      %vm710 = vcmask 1042432
      %vm711 = vcmask 1046532
      %vm712 = vmor %vm710, %vm711
      %v713 = vrot.slane %v650, 5
      %v714 = vrot.slane %v713, 4
      %v715 = vrot.slane %v651, 5
      %v716 = vsel %vm712, %v714, %v715
      %v717 = vrot.slane %v715, 4
      %v718 = vrot.slane %v652, 5
      %v719 = vsel %vm712, %v717, %v718
      %v720 = vrot.slane %v653, 5
      %v721 = vrot.slane %v720, 4
      %v722 = vrot.slane %v654, 5
      %v723 = vsel %vm712, %v721, %v722
      %v724 = vrot.slane %v722, 4
      %v725 = vrot.slane %v655, 5
      %v726 = vsel %vm712, %v724, %v725
      %v727 = vrot.slane %v656, 5
      %v728 = vrot.slane %v727, 4
      %v729 = vrot.slane %v657, 5
      %v730 = vsel %vm712, %v728, %v729
      %v731 = vrot.slane %v729, 4
      %v732 = vrot.slane %v658, 5
      %v733 = vsel %vm712, %v731, %v732
      %v734 = vrot.slane %v659, 5
      %v735 = vrot.slane %v734, 4
      %v736 = vrot.slane %v660, 5
      %v737 = vsel %vm712, %v735, %v736
      %v738 = vrot.slane %v736, 4
      %v739 = vrot.slane %v661, 5
      %v740 = vsel %vm712, %v738, %v739
      %v741 = vrot.slane %v662, 5
      %v742 = vrot.slane %v741, 4
      %v743 = vrot.slane %v663, 5
      %v744 = vsel %vm712, %v742, %v743
      %v745 = vrot.slane %v743, 4
      %v746 = vrot.slane %v664, 5
      %v747 = vsel %vm712, %v745, %v746
      %v748 = vrot.slane %v665, 5
      %v749 = vrot.slane %v748, 4
      %v750 = vrot.slane %v666, 5
      %v751 = vsel %vm712, %v749, %v750
      %v752 = vrot.slane %v750, 4
      %v753 = vrot.slane %v667, 5
      %v754 = vsel %vm712, %v752, %v753
      %v755 = vrot.slane %v668, 5
      %v756 = vrot.slane %v755, 4
      %v757 = vrot.slane %v669, 5
      %v758 = vsel %vm712, %v756, %v757
      %v759 = vrot.slane %v757, 4
      %v760 = vrot.slane %v670, 5
      %v761 = vsel %vm712, %v759, %v760
      %v762 = vrot.slane %v671, 5
      %v763 = vrot.slane %v762, 4
      %v764 = vrot.slane %v672, 5
      %v765 = vsel %vm712, %v763, %v764
      %v766 = vrot.slane %v764, 4
      %v767 = vrot.slane %v673, 5
      %v768 = vsel %vm712, %v766, %v767
      %v769 = vrot.slane %v674, 5
      %v770 = vrot.slane %v769, 4
      %v771 = vrot.slane %v675, 5
      %v772 = vsel %vm712, %v770, %v771
      %v773 = vrot.slane %v771, 4
      %v774 = vrot.slane %v676, 5
      %v775 = vsel %vm712, %v773, %v774
      %v776 = vrot.slane %v677, 5
      %v777 = vrot.slane %v776, 4
      %v778 = vrot.slane %v678, 5
      %v779 = vsel %vm712, %v777, %v778
      %v780 = vrot.slane %v778, 4
      %v781 = vrot.slane %v679, 5
      %v782 = vsel %vm712, %v780, %v781
      %783 = vrot.lane.b32.xlu0 %v716, 16
      %v784 = vpop.permute.xlu0 %783
      %785 = vrot.lane.b32.xlu0 %v719, 16
      %v786 = vpop.permute.xlu0 %785
      %787 = vrot.lane.b32.xlu0 %v723, 16
      %v788 = vpop.permute.xlu0 %787
      %789 = vrot.lane.b32.xlu0 %v726, 16
      %v790 = vpop.permute.xlu0 %789
      %791 = vrot.lane.b32.xlu0 %v730, 16
      %v792 = vpop.permute.xlu0 %791
      %793 = vrot.lane.b32.xlu0 %v733, 16
      %v794 = vpop.permute.xlu0 %793
      %795 = vrot.lane.b32.xlu0 %v737, 16
      %v796 = vpop.permute.xlu0 %795
      %797 = vrot.lane.b32.xlu0 %v740, 16
      %v798 = vpop.permute.xlu0 %797
      %799 = vrot.lane.b32.xlu0 %v744, 16
      %v800 = vpop.permute.xlu0 %799
      %801 = vrot.lane.b32.xlu0 %v747, 16
      %v802 = vpop.permute.xlu0 %801
      %803 = vrot.lane.b32.xlu0 %v751, 16
      %v804 = vpop.permute.xlu0 %803
      %805 = vrot.lane.b32.xlu0 %v754, 16
      %v806 = vpop.permute.xlu0 %805
      %807 = vrot.lane.b32.xlu0 %v758, 16
      %v808 = vpop.permute.xlu0 %807
      %809 = vrot.lane.b32.xlu0 %v761, 16
      %v810 = vpop.permute.xlu0 %809
      %811 = vrot.lane.b32.xlu0 %v765, 16
      %v812 = vpop.permute.xlu0 %811
      %813 = vrot.lane.b32.xlu0 %v768, 16
      %v814 = vpop.permute.xlu0 %813
      %815 = vrot.lane.b32.xlu0 %v772, 16
      %v816 = vpop.permute.xlu0 %815
      %817 = vrot.lane.b32.xlu0 %v775, 16
      %v818 = vpop.permute.xlu0 %817
      %819 = vrot.lane.b32.xlu0 %v779, 16
      %v820 = vpop.permute.xlu0 %819
      %821 = vrot.lane.b32.xlu0 %v782, 16
      %v822 = vpop.permute.xlu0 %821
      %vm843 = vcmask 191616
      %844 = vst.msk [vmem:[#allocation3] sm:$0xf] %vm843, %v784
      %845 = vst.msk [vmem:[#allocation3 + $0x4] sm:$0xf] %vm843, %v786
      %846 = vst.msk [vmem:[#allocation3 + $0x8] sm:$0xf] %vm843, %v788
      %847 = vst.msk [vmem:[#allocation3 + $0xc] sm:$0xf] %vm843, %v790
      %848 = vst.msk [vmem:[#allocation3 + $0x10] sm:$0xf] %vm843, %v792
      %849 = vst.msk [vmem:[#allocation3 + $0x14] sm:$0xf] %vm843, %v794
      %850 = vst.msk [vmem:[#allocation3 + $0x18] sm:$0xf] %vm843, %v796
      %851 = vst.msk [vmem:[#allocation3 + $0x1c] sm:$0xf] %vm843, %v798
      %852 = vst.msk [vmem:[#allocation3 + $0x20] sm:$0xf] %vm843, %v800
      %853 = vst.msk [vmem:[#allocation3 + $0x24] sm:$0xf] %vm843, %v802
      %854 = vst.msk [vmem:[#allocation3 + $0x28] sm:$0xf] %vm843, %v804
      %855 = vst.msk [vmem:[#allocation3 + $0x2c] sm:$0xf] %vm843, %v806
      %856 = vst.msk [vmem:[#allocation3 + $0x30] sm:$0xf] %vm843, %v808
      %857 = vst.msk [vmem:[#allocation3 + $0x34] sm:$0xf] %vm843, %v810
      %858 = vst.msk [vmem:[#allocation3 + $0x38] sm:$0xf] %vm843, %v812
      %859 = vst.msk [vmem:[#allocation3 + $0x3c] sm:$0xf] %vm843, %v814
      %860 = vst.msk [vmem:[#allocation3 + $0x40] sm:$0xf] %vm843, %v816
      %861 = vst.msk [vmem:[#allocation3 + $0x44] sm:$0xf] %vm843, %v818
      %862 = vst.msk [vmem:[#allocation3 + $0x48] sm:$0xf] %vm843, %v820
      %863 = vst.msk [vmem:[#allocation3 + $0x4c] sm:$0xf] %vm843, %v822
      %s864 = sadd.s32 %s251, 1
      %s865 = smul.u32 %s864, 3
      %s866 = smul.addr %s865, 4
      %s867 = scalar_lea.vmem %s238, %s866
      %v868 = vld [vmem:[%s867] sm:$0xf]
      %v869 = vld [vmem:[%s867 + $0x4] sm:$0xf]
      %v870 = vld [vmem:[%s867 + $0xc] sm:$0xf]
      %v871 = vld [vmem:[%s867 + $0x10] sm:$0xf]
      %v872 = vld [vmem:[%s867 + $0x18] sm:$0xf]
      %v873 = vld [vmem:[%s867 + $0x1c] sm:$0xf]
      %v874 = vld [vmem:[%s867 + $0x24] sm:$0xf]
      %v875 = vld [vmem:[%s867 + $0x28] sm:$0xf]
      %v876 = vld [vmem:[%s867 + $0x30] sm:$0xf]
      %v877 = vld [vmem:[%s867 + $0x34] sm:$0xf]
      %v878 = vld [vmem:[%s867 + $0x3c] sm:$0xf]
      %v879 = vld [vmem:[%s867 + $0x40] sm:$0xf]
      %v880 = vld [vmem:[%s867 + $0x48] sm:$0xf]
      %v881 = vld [vmem:[%s867 + $0x4c] sm:$0xf]
      %v882 = vld [vmem:[%s867 + $0x54] sm:$0xf]
      %v883 = vld [vmem:[%s867 + $0x58] sm:$0xf]
      %v884 = vld [vmem:[%s867 + $0x60] sm:$0xf]
      %v885 = vld [vmem:[%s867 + $0x64] sm:$0xf]
      %v886 = vld [vmem:[%s867 + $0x6c] sm:$0xf]
      %v887 = vld [vmem:[%s867 + $0x70] sm:$0xf]
      %908 = vrot.lane.b32.xlu0 %v868, 24
      %v909 = vpop.permute.xlu0 %908
      %910 = vrot.lane.b32.xlu0 %v869, 24
      %v911 = vpop.permute.xlu0 %910
      %912 = vrot.lane.b32.xlu0 %v870, 24
      %v913 = vpop.permute.xlu0 %912
      %914 = vrot.lane.b32.xlu0 %v871, 24
      %v915 = vpop.permute.xlu0 %914
      %916 = vrot.lane.b32.xlu0 %v872, 24
      %v917 = vpop.permute.xlu0 %916
      %918 = vrot.lane.b32.xlu0 %v873, 24
      %v919 = vpop.permute.xlu0 %918
      %920 = vrot.lane.b32.xlu0 %v874, 24
      %v921 = vpop.permute.xlu0 %920
      %922 = vrot.lane.b32.xlu0 %v875, 24
      %v923 = vpop.permute.xlu0 %922
      %924 = vrot.lane.b32.xlu0 %v876, 24
      %v925 = vpop.permute.xlu0 %924
      %926 = vrot.lane.b32.xlu0 %v877, 24
      %v927 = vpop.permute.xlu0 %926
      %928 = vrot.lane.b32.xlu0 %v878, 24
      %v929 = vpop.permute.xlu0 %928
      %930 = vrot.lane.b32.xlu0 %v879, 24
      %v931 = vpop.permute.xlu0 %930
      %932 = vrot.lane.b32.xlu0 %v880, 24
      %v933 = vpop.permute.xlu0 %932
      %934 = vrot.lane.b32.xlu0 %v881, 24
      %v935 = vpop.permute.xlu0 %934
      %936 = vrot.lane.b32.xlu0 %v882, 24
      %v937 = vpop.permute.xlu0 %936
      %938 = vrot.lane.b32.xlu0 %v883, 24
      %v939 = vpop.permute.xlu0 %938
      %940 = vrot.lane.b32.xlu0 %v884, 24
      %v941 = vpop.permute.xlu0 %940
      %942 = vrot.lane.b32.xlu0 %v885, 24
      %v943 = vpop.permute.xlu0 %942
      %944 = vrot.lane.b32.xlu0 %v886, 24
      %v945 = vpop.permute.xlu0 %944
      %946 = vrot.lane.b32.xlu0 %v887, 24
      %v947 = vpop.permute.xlu0 %946
      %vm968 = vcmask 257216
      %969 = vst.msk [vmem:[#allocation3] sm:$0xf] %vm968, %v909
      %970 = vst.msk [vmem:[#allocation3 + $0x4] sm:$0xf] %vm968, %v911
      %971 = vst.msk [vmem:[#allocation3 + $0x8] sm:$0xf] %vm968, %v913
      %972 = vst.msk [vmem:[#allocation3 + $0xc] sm:$0xf] %vm968, %v915
      %973 = vst.msk [vmem:[#allocation3 + $0x10] sm:$0xf] %vm968, %v917
      %974 = vst.msk [vmem:[#allocation3 + $0x14] sm:$0xf] %vm968, %v919
      %975 = vst.msk [vmem:[#allocation3 + $0x18] sm:$0xf] %vm968, %v921
      %976 = vst.msk [vmem:[#allocation3 + $0x1c] sm:$0xf] %vm968, %v923
      %977 = vst.msk [vmem:[#allocation3 + $0x20] sm:$0xf] %vm968, %v925
      %978 = vst.msk [vmem:[#allocation3 + $0x24] sm:$0xf] %vm968, %v927
      %979 = vst.msk [vmem:[#allocation3 + $0x28] sm:$0xf] %vm968, %v929
      %980 = vst.msk [vmem:[#allocation3 + $0x2c] sm:$0xf] %vm968, %v931
      %981 = vst.msk [vmem:[#allocation3 + $0x30] sm:$0xf] %vm968, %v933
      %982 = vst.msk [vmem:[#allocation3 + $0x34] sm:$0xf] %vm968, %v935
      %983 = vst.msk [vmem:[#allocation3 + $0x38] sm:$0xf] %vm968, %v937
      %984 = vst.msk [vmem:[#allocation3 + $0x3c] sm:$0xf] %vm968, %v939
      %985 = vst.msk [vmem:[#allocation3 + $0x40] sm:$0xf] %vm968, %v941
      %986 = vst.msk [vmem:[#allocation3 + $0x44] sm:$0xf] %vm968, %v943
      %987 = vst.msk [vmem:[#allocation3 + $0x48] sm:$0xf] %vm968, %v945
      %988 = vst.msk [vmem:[#allocation3 + $0x4c] sm:$0xf] %vm968, %v947
      %v989 = vld [vmem:[%s867] sm:$0xf]
      %v990 = vld [vmem:[%s867 + $0x4] sm:$0xf]
      %v991 = vld [vmem:[%s867 + $0x8] sm:$0x1]
      %v992 = vld [vmem:[%s867 + $0xc] sm:$0xf]
      %v993 = vld [vmem:[%s867 + $0x10] sm:$0xf]
      %v994 = vld [vmem:[%s867 + $0x14] sm:$0x1]
      %v995 = vld [vmem:[%s867 + $0x18] sm:$0xf]
      %v996 = vld [vmem:[%s867 + $0x1c] sm:$0xf]
      %v997 = vld [vmem:[%s867 + $0x20] sm:$0x1]
      %v998 = vld [vmem:[%s867 + $0x24] sm:$0xf]
      %v999 = vld [vmem:[%s867 + $0x28] sm:$0xf]
      %v1000 = vld [vmem:[%s867 + $0x2c] sm:$0x1]
      %v1001 = vld [vmem:[%s867 + $0x30] sm:$0xf]
      %v1002 = vld [vmem:[%s867 + $0x34] sm:$0xf]
      %v1003 = vld [vmem:[%s867 + $0x38] sm:$0x1]
      %v1004 = vld [vmem:[%s867 + $0x3c] sm:$0xf]
      %v1005 = vld [vmem:[%s867 + $0x40] sm:$0xf]
      %v1006 = vld [vmem:[%s867 + $0x44] sm:$0x1]
      %v1007 = vld [vmem:[%s867 + $0x48] sm:$0xf]
      %v1008 = vld [vmem:[%s867 + $0x4c] sm:$0xf]
      %v1009 = vld [vmem:[%s867 + $0x50] sm:$0x1]
      %v1010 = vld [vmem:[%s867 + $0x54] sm:$0xf]
      %v1011 = vld [vmem:[%s867 + $0x58] sm:$0xf]
      %v1012 = vld [vmem:[%s867 + $0x5c] sm:$0x1]
      %v1013 = vld [vmem:[%s867 + $0x60] sm:$0xf]
      %v1014 = vld [vmem:[%s867 + $0x64] sm:$0xf]
      %v1015 = vld [vmem:[%s867 + $0x68] sm:$0x1]
      %v1016 = vld [vmem:[%s867 + $0x6c] sm:$0xf]
      %v1017 = vld [vmem:[%s867 + $0x70] sm:$0xf]
      %v1018 = vld [vmem:[%s867 + $0x74] sm:$0x1]
      %v1020 = vshrl.u32 %v989, 16
      %v1022 = vrot.slane %v1020, 4
      %v1023 = vshll.u32 %v989, 16
      %v1025 = vrot.slane %v1023, 5
      %v1026 = vor.u32 %v1022, %v1025
      %v1027 = vrot.slane %v1026, 4
      %v1029 = vshll.u32 %v990, 16
      %v1031 = vrot.slane %v1029, 5
      %v1032 = vsel %vm328, %v1027, %v1031
      %v1033 = vshrl.u32 %v990, 16
      %v1035 = vrot.slane %v1033, 4
      %v1036 = vor.u32 %v1035, %v1031
      %v1037 = vrot.slane %v1036, 4
      %v1039 = vshll.u32 %v991, 16
      %v1041 = vrot.slane %v1039, 5
      %v1042 = vsel %vm328, %v1037, %v1041
      %v1044 = vshrl.u32 %v992, 16
      %v1046 = vrot.slane %v1044, 4
      %v1047 = vshll.u32 %v992, 16
      %v1049 = vrot.slane %v1047, 5
      %v1050 = vor.u32 %v1046, %v1049
      %v1051 = vrot.slane %v1050, 4
      %v1053 = vshll.u32 %v993, 16
      %v1055 = vrot.slane %v1053, 5
      %v1056 = vsel %vm328, %v1051, %v1055
      %v1057 = vshrl.u32 %v993, 16
      %v1059 = vrot.slane %v1057, 4
      %v1060 = vor.u32 %v1059, %v1055
      %v1061 = vrot.slane %v1060, 4
      %v1063 = vshll.u32 %v994, 16
      %v1065 = vrot.slane %v1063, 5
      %v1066 = vsel %vm328, %v1061, %v1065
      %v1068 = vshrl.u32 %v995, 16
      %v1070 = vrot.slane %v1068, 4
      %v1071 = vshll.u32 %v995, 16
      %v1073 = vrot.slane %v1071, 5
      %v1074 = vor.u32 %v1070, %v1073
      %v1075 = vrot.slane %v1074, 4
      %v1077 = vshll.u32 %v996, 16
      %v1079 = vrot.slane %v1077, 5
      %v1080 = vsel %vm328, %v1075, %v1079
      %v1081 = vshrl.u32 %v996, 16
      %v1083 = vrot.slane %v1081, 4
      %v1084 = vor.u32 %v1083, %v1079
      %v1085 = vrot.slane %v1084, 4
      %v1087 = vshll.u32 %v997, 16
      %v1089 = vrot.slane %v1087, 5
      %v1090 = vsel %vm328, %v1085, %v1089
      %v1092 = vshrl.u32 %v998, 16
      %v1094 = vrot.slane %v1092, 4
      %v1095 = vshll.u32 %v998, 16
      %v1097 = vrot.slane %v1095, 5
      %v1098 = vor.u32 %v1094, %v1097
      %v1099 = vrot.slane %v1098, 4
      %v1101 = vshll.u32 %v999, 16
      %v1103 = vrot.slane %v1101, 5
      %v1104 = vsel %vm328, %v1099, %v1103
      %v1105 = vshrl.u32 %v999, 16
      %v1107 = vrot.slane %v1105, 4
      %v1108 = vor.u32 %v1107, %v1103
      %v1109 = vrot.slane %v1108, 4
      %v1111 = vshll.u32 %v1000, 16
      %v1113 = vrot.slane %v1111, 5
      %v1114 = vsel %vm328, %v1109, %v1113
      %v1116 = vshrl.u32 %v1001, 16
      %v1118 = vrot.slane %v1116, 4
      %v1119 = vshll.u32 %v1001, 16
      %v1121 = vrot.slane %v1119, 5
      %v1122 = vor.u32 %v1118, %v1121
      %v1123 = vrot.slane %v1122, 4
      %v1125 = vshll.u32 %v1002, 16
      %v1127 = vrot.slane %v1125, 5
      %v1128 = vsel %vm328, %v1123, %v1127
      %v1129 = vshrl.u32 %v1002, 16
      %v1131 = vrot.slane %v1129, 4
      %v1132 = vor.u32 %v1131, %v1127
      %v1133 = vrot.slane %v1132, 4
      %v1135 = vshll.u32 %v1003, 16
      %v1137 = vrot.slane %v1135, 5
      %v1138 = vsel %vm328, %v1133, %v1137
      %v1140 = vshrl.u32 %v1004, 16
      %v1142 = vrot.slane %v1140, 4
      %v1143 = vshll.u32 %v1004, 16
      %v1145 = vrot.slane %v1143, 5
      %v1146 = vor.u32 %v1142, %v1145
      %v1147 = vrot.slane %v1146, 4
      %v1149 = vshll.u32 %v1005, 16
      %v1151 = vrot.slane %v1149, 5
      %v1152 = vsel %vm328, %v1147, %v1151
      %v1153 = vshrl.u32 %v1005, 16
      %v1155 = vrot.slane %v1153, 4
      %v1156 = vor.u32 %v1155, %v1151
      %v1157 = vrot.slane %v1156, 4
      %v1159 = vshll.u32 %v1006, 16
      %v1161 = vrot.slane %v1159, 5
      %v1162 = vsel %vm328, %v1157, %v1161
      %v1164 = vshrl.u32 %v1007, 16
      %v1166 = vrot.slane %v1164, 4
      %v1167 = vshll.u32 %v1007, 16
      %v1169 = vrot.slane %v1167, 5
      %v1170 = vor.u32 %v1166, %v1169
      %v1171 = vrot.slane %v1170, 4
      %v1173 = vshll.u32 %v1008, 16
      %v1175 = vrot.slane %v1173, 5
      %v1176 = vsel %vm328, %v1171, %v1175
      %v1177 = vshrl.u32 %v1008, 16
      %v1179 = vrot.slane %v1177, 4
      %v1180 = vor.u32 %v1179, %v1175
      %v1181 = vrot.slane %v1180, 4
      %v1183 = vshll.u32 %v1009, 16
      %v1185 = vrot.slane %v1183, 5
      %v1186 = vsel %vm328, %v1181, %v1185
      %v1188 = vshrl.u32 %v1010, 16
      %v1190 = vrot.slane %v1188, 4
      %v1191 = vshll.u32 %v1010, 16
      %v1193 = vrot.slane %v1191, 5
      %v1194 = vor.u32 %v1190, %v1193
      %v1195 = vrot.slane %v1194, 4
      %v1197 = vshll.u32 %v1011, 16
      %v1199 = vrot.slane %v1197, 5
      %v1200 = vsel %vm328, %v1195, %v1199
      %v1201 = vshrl.u32 %v1011, 16
      %v1203 = vrot.slane %v1201, 4
      %v1204 = vor.u32 %v1203, %v1199
      %v1205 = vrot.slane %v1204, 4
      %v1207 = vshll.u32 %v1012, 16
      %v1209 = vrot.slane %v1207, 5
      %v1210 = vsel %vm328, %v1205, %v1209
      %v1212 = vshrl.u32 %v1013, 16
      %v1214 = vrot.slane %v1212, 4
      %v1215 = vshll.u32 %v1013, 16
      %v1217 = vrot.slane %v1215, 5
      %v1218 = vor.u32 %v1214, %v1217
      %v1219 = vrot.slane %v1218, 4
      %v1221 = vshll.u32 %v1014, 16
      %v1223 = vrot.slane %v1221, 5
      %v1224 = vsel %vm328, %v1219, %v1223
      %v1225 = vshrl.u32 %v1014, 16
      %v1227 = vrot.slane %v1225, 4
      %v1228 = vor.u32 %v1227, %v1223
      %v1229 = vrot.slane %v1228, 4
      %v1231 = vshll.u32 %v1015, 16
      %v1233 = vrot.slane %v1231, 5
      %v1234 = vsel %vm328, %v1229, %v1233
      %v1236 = vshrl.u32 %v1016, 16
      %v1238 = vrot.slane %v1236, 4
      %v1239 = vshll.u32 %v1016, 16
      %v1241 = vrot.slane %v1239, 5
      %v1242 = vor.u32 %v1238, %v1241
      %v1243 = vrot.slane %v1242, 4
      %v1245 = vshll.u32 %v1017, 16
      %v1247 = vrot.slane %v1245, 5
      %v1248 = vsel %vm328, %v1243, %v1247
      %v1249 = vshrl.u32 %v1017, 16
      %v1251 = vrot.slane %v1249, 4
      %v1252 = vor.u32 %v1251, %v1247
      %v1253 = vrot.slane %v1252, 4
      %v1255 = vshll.u32 %v1018, 16
      %v1257 = vrot.slane %v1255, 5
      %v1258 = vsel %vm328, %v1253, %v1257
      %1259 = vrot.lane.b32.xlu0 %v1032, 32
      %v1260 = vpop.permute.xlu0 %1259
      %1261 = vrot.lane.b32.xlu0 %v1042, 32
      %v1262 = vpop.permute.xlu0 %1261
      %1263 = vrot.lane.b32.xlu0 %v1056, 32
      %v1264 = vpop.permute.xlu0 %1263
      %1265 = vrot.lane.b32.xlu0 %v1066, 32
      %v1266 = vpop.permute.xlu0 %1265
      %1267 = vrot.lane.b32.xlu0 %v1080, 32
      %v1268 = vpop.permute.xlu0 %1267
      %1269 = vrot.lane.b32.xlu0 %v1090, 32
      %v1270 = vpop.permute.xlu0 %1269
      %1271 = vrot.lane.b32.xlu0 %v1104, 32
      %v1272 = vpop.permute.xlu0 %1271
      %1273 = vrot.lane.b32.xlu0 %v1114, 32
      %v1274 = vpop.permute.xlu0 %1273
      %1275 = vrot.lane.b32.xlu0 %v1128, 32
      %v1276 = vpop.permute.xlu0 %1275
      %1277 = vrot.lane.b32.xlu0 %v1138, 32
      %v1278 = vpop.permute.xlu0 %1277
      %1279 = vrot.lane.b32.xlu0 %v1152, 32
      %v1280 = vpop.permute.xlu0 %1279
      %1281 = vrot.lane.b32.xlu0 %v1162, 32
      %v1282 = vpop.permute.xlu0 %1281
      %1283 = vrot.lane.b32.xlu0 %v1176, 32
      %v1284 = vpop.permute.xlu0 %1283
      %1285 = vrot.lane.b32.xlu0 %v1186, 32
      %v1286 = vpop.permute.xlu0 %1285
      %1287 = vrot.lane.b32.xlu0 %v1200, 32
      %v1288 = vpop.permute.xlu0 %1287
      %1289 = vrot.lane.b32.xlu0 %v1210, 32
      %v1290 = vpop.permute.xlu0 %1289
      %1291 = vrot.lane.b32.xlu0 %v1224, 32
      %v1292 = vpop.permute.xlu0 %1291
      %1293 = vrot.lane.b32.xlu0 %v1234, 32
      %v1294 = vpop.permute.xlu0 %1293
      %1295 = vrot.lane.b32.xlu0 %v1248, 32
      %v1296 = vpop.permute.xlu0 %1295
      %1297 = vrot.lane.b32.xlu0 %v1258, 32
      %v1298 = vpop.permute.xlu0 %1297
      %vm1319 = vcmask 322816
      %1320 = vst.msk [vmem:[#allocation3] sm:$0xf] %vm1319, %v1260
      %1321 = vst.msk [vmem:[#allocation3 + $0x4] sm:$0xf] %vm1319, %v1262
      %1322 = vst.msk [vmem:[#allocation3 + $0x8] sm:$0xf] %vm1319, %v1264
      %1323 = vst.msk [vmem:[#allocation3 + $0xc] sm:$0xf] %vm1319, %v1266
      %1324 = vst.msk [vmem:[#allocation3 + $0x10] sm:$0xf] %vm1319, %v1268
      %1325 = vst.msk [vmem:[#allocation3 + $0x14] sm:$0xf] %vm1319, %v1270
      %1326 = vst.msk [vmem:[#allocation3 + $0x18] sm:$0xf] %vm1319, %v1272
      %1327 = vst.msk [vmem:[#allocation3 + $0x1c] sm:$0xf] %vm1319, %v1274
      %1328 = vst.msk [vmem:[#allocation3 + $0x20] sm:$0xf] %vm1319, %v1276
      %1329 = vst.msk [vmem:[#allocation3 + $0x24] sm:$0xf] %vm1319, %v1278
      %1330 = vst.msk [vmem:[#allocation3 + $0x28] sm:$0xf] %vm1319, %v1280
      %1331 = vst.msk [vmem:[#allocation3 + $0x2c] sm:$0xf] %vm1319, %v1282
      %1332 = vst.msk [vmem:[#allocation3 + $0x30] sm:$0xf] %vm1319, %v1284
      %1333 = vst.msk [vmem:[#allocation3 + $0x34] sm:$0xf] %vm1319, %v1286
      %1334 = vst.msk [vmem:[#allocation3 + $0x38] sm:$0xf] %vm1319, %v1288
      %1335 = vst.msk [vmem:[#allocation3 + $0x3c] sm:$0xf] %vm1319, %v1290
      %1336 = vst.msk [vmem:[#allocation3 + $0x40] sm:$0xf] %vm1319, %v1292
      %1337 = vst.msk [vmem:[#allocation3 + $0x44] sm:$0xf] %vm1319, %v1294
      %1338 = vst.msk [vmem:[#allocation3 + $0x48] sm:$0xf] %vm1319, %v1296
      %1339 = vst.msk [vmem:[#allocation3 + $0x4c] sm:$0xf] %vm1319, %v1298
      %v1340 = vld [vmem:[%s867] sm:$0xe]
      %v1341 = vld [vmem:[%s867 + $0x4] sm:$0xf]
      %v1342 = vld [vmem:[%s867 + $0x8] sm:$0x1]
      %v1343 = vld [vmem:[%s867 + $0xc] sm:$0xe]
      %v1344 = vld [vmem:[%s867 + $0x10] sm:$0xf]
      %v1345 = vld [vmem:[%s867 + $0x14] sm:$0x1]
      %v1346 = vld [vmem:[%s867 + $0x18] sm:$0xe]
      %v1347 = vld [vmem:[%s867 + $0x1c] sm:$0xf]
      %v1348 = vld [vmem:[%s867 + $0x20] sm:$0x1]
      %v1349 = vld [vmem:[%s867 + $0x24] sm:$0xe]
      %v1350 = vld [vmem:[%s867 + $0x28] sm:$0xf]
      %v1351 = vld [vmem:[%s867 + $0x2c] sm:$0x1]
      %v1352 = vld [vmem:[%s867 + $0x30] sm:$0xe]
      %v1353 = vld [vmem:[%s867 + $0x34] sm:$0xf]
      %v1354 = vld [vmem:[%s867 + $0x38] sm:$0x1]
      %v1355 = vld [vmem:[%s867 + $0x3c] sm:$0xe]
      %v1356 = vld [vmem:[%s867 + $0x40] sm:$0xf]
      %v1357 = vld [vmem:[%s867 + $0x44] sm:$0x1]
      %v1358 = vld [vmem:[%s867 + $0x48] sm:$0xe]
      %v1359 = vld [vmem:[%s867 + $0x4c] sm:$0xf]
      %v1360 = vld [vmem:[%s867 + $0x50] sm:$0x1]
      %v1361 = vld [vmem:[%s867 + $0x54] sm:$0xe]
      %v1362 = vld [vmem:[%s867 + $0x58] sm:$0xf]
      %v1363 = vld [vmem:[%s867 + $0x5c] sm:$0x1]
      %v1364 = vld [vmem:[%s867 + $0x60] sm:$0xe]
      %v1365 = vld [vmem:[%s867 + $0x64] sm:$0xf]
      %v1366 = vld [vmem:[%s867 + $0x68] sm:$0x1]
      %v1367 = vld [vmem:[%s867 + $0x6c] sm:$0xe]
      %v1368 = vld [vmem:[%s867 + $0x70] sm:$0xf]
      %v1369 = vld [vmem:[%s867 + $0x74] sm:$0x1]
      %v1400 = vrot.slane %v1340, 5
      %v1401 = vrot.slane %v1400, 4
      %v1402 = vrot.slane %v1341, 5
      %v1403 = vsel %vm712, %v1401, %v1402
      %v1404 = vrot.slane %v1402, 4
      %v1405 = vrot.slane %v1342, 5
      %v1406 = vsel %vm712, %v1404, %v1405
      %v1407 = vrot.slane %v1343, 5
      %v1408 = vrot.slane %v1407, 4
      %v1409 = vrot.slane %v1344, 5
      %v1410 = vsel %vm712, %v1408, %v1409
      %v1411 = vrot.slane %v1409, 4
      %v1412 = vrot.slane %v1345, 5
      %v1413 = vsel %vm712, %v1411, %v1412
      %v1414 = vrot.slane %v1346, 5
      %v1415 = vrot.slane %v1414, 4
      %v1416 = vrot.slane %v1347, 5
      %v1417 = vsel %vm712, %v1415, %v1416
      %v1418 = vrot.slane %v1416, 4
      %v1419 = vrot.slane %v1348, 5
      %v1420 = vsel %vm712, %v1418, %v1419
      %v1421 = vrot.slane %v1349, 5
      %v1422 = vrot.slane %v1421, 4
      %v1423 = vrot.slane %v1350, 5
      %v1424 = vsel %vm712, %v1422, %v1423
      %v1425 = vrot.slane %v1423, 4
      %v1426 = vrot.slane %v1351, 5
      %v1427 = vsel %vm712, %v1425, %v1426
      %v1428 = vrot.slane %v1352, 5
      %v1429 = vrot.slane %v1428, 4
      %v1430 = vrot.slane %v1353, 5
      %v1431 = vsel %vm712, %v1429, %v1430
      %v1432 = vrot.slane %v1430, 4
      %v1433 = vrot.slane %v1354, 5
      %v1434 = vsel %vm712, %v1432, %v1433
      %v1435 = vrot.slane %v1355, 5
      %v1436 = vrot.slane %v1435, 4
      %v1437 = vrot.slane %v1356, 5
      %v1438 = vsel %vm712, %v1436, %v1437
      %v1439 = vrot.slane %v1437, 4
      %v1440 = vrot.slane %v1357, 5
      %v1441 = vsel %vm712, %v1439, %v1440
      %v1442 = vrot.slane %v1358, 5
      %v1443 = vrot.slane %v1442, 4
      %v1444 = vrot.slane %v1359, 5
      %v1445 = vsel %vm712, %v1443, %v1444
      %v1446 = vrot.slane %v1444, 4
      %v1447 = vrot.slane %v1360, 5
      %v1448 = vsel %vm712, %v1446, %v1447
      %v1449 = vrot.slane %v1361, 5
      %v1450 = vrot.slane %v1449, 4
      %v1451 = vrot.slane %v1362, 5
      %v1452 = vsel %vm712, %v1450, %v1451
      %v1453 = vrot.slane %v1451, 4
      %v1454 = vrot.slane %v1363, 5
      %v1455 = vsel %vm712, %v1453, %v1454
      %v1456 = vrot.slane %v1364, 5
      %v1457 = vrot.slane %v1456, 4
      %v1458 = vrot.slane %v1365, 5
      %v1459 = vsel %vm712, %v1457, %v1458
      %v1460 = vrot.slane %v1458, 4
      %v1461 = vrot.slane %v1366, 5
      %v1462 = vsel %vm712, %v1460, %v1461
      %v1463 = vrot.slane %v1367, 5
      %v1464 = vrot.slane %v1463, 4
      %v1465 = vrot.slane %v1368, 5
      %v1466 = vsel %vm712, %v1464, %v1465
      %v1467 = vrot.slane %v1465, 4
      %v1468 = vrot.slane %v1369, 5
      %v1469 = vsel %vm712, %v1467, %v1468
      %1470 = vrot.lane.b32.xlu0 %v1403, 40
      %v1471 = vpop.permute.xlu0 %1470
      %1472 = vrot.lane.b32.xlu0 %v1406, 40
      %v1473 = vpop.permute.xlu0 %1472
      %1474 = vrot.lane.b32.xlu0 %v1410, 40
      %v1475 = vpop.permute.xlu0 %1474
      %1476 = vrot.lane.b32.xlu0 %v1413, 40
      %v1477 = vpop.permute.xlu0 %1476
      %1478 = vrot.lane.b32.xlu0 %v1417, 40
      %v1479 = vpop.permute.xlu0 %1478
      %1480 = vrot.lane.b32.xlu0 %v1420, 40
      %v1481 = vpop.permute.xlu0 %1480
      %1482 = vrot.lane.b32.xlu0 %v1424, 40
      %v1483 = vpop.permute.xlu0 %1482
      %1484 = vrot.lane.b32.xlu0 %v1427, 40
      %v1485 = vpop.permute.xlu0 %1484
      %1486 = vrot.lane.b32.xlu0 %v1431, 40
      %v1487 = vpop.permute.xlu0 %1486
      %1488 = vrot.lane.b32.xlu0 %v1434, 40
      %v1489 = vpop.permute.xlu0 %1488
      %1490 = vrot.lane.b32.xlu0 %v1438, 40
      %v1491 = vpop.permute.xlu0 %1490
      %1492 = vrot.lane.b32.xlu0 %v1441, 40
      %v1493 = vpop.permute.xlu0 %1492
      %1494 = vrot.lane.b32.xlu0 %v1445, 40
      %v1495 = vpop.permute.xlu0 %1494
      %1496 = vrot.lane.b32.xlu0 %v1448, 40
      %v1497 = vpop.permute.xlu0 %1496
      %1498 = vrot.lane.b32.xlu0 %v1452, 40
      %v1499 = vpop.permute.xlu0 %1498
      %1500 = vrot.lane.b32.xlu0 %v1455, 40
      %v1501 = vpop.permute.xlu0 %1500
      %1502 = vrot.lane.b32.xlu0 %v1459, 40
      %v1503 = vpop.permute.xlu0 %1502
      %1504 = vrot.lane.b32.xlu0 %v1462, 40
      %v1505 = vpop.permute.xlu0 %1504
      %1506 = vrot.lane.b32.xlu0 %v1466, 40
      %v1507 = vpop.permute.xlu0 %1506
      %1508 = vrot.lane.b32.xlu0 %v1469, 40
      %v1509 = vpop.permute.xlu0 %1508
      %vm1530 = vcmask 388416
      %1531 = vst.msk [vmem:[#allocation3] sm:$0xf] %vm1530, %v1471
      %1532 = vst.msk [vmem:[#allocation3 + $0x4] sm:$0xf] %vm1530, %v1473
      %1533 = vst.msk [vmem:[#allocation3 + $0x8] sm:$0xf] %vm1530, %v1475
      %1534 = vst.msk [vmem:[#allocation3 + $0xc] sm:$0xf] %vm1530, %v1477
      %1535 = vst.msk [vmem:[#allocation3 + $0x10] sm:$0xf] %vm1530, %v1479
      %1536 = vst.msk [vmem:[#allocation3 + $0x14] sm:$0xf] %vm1530, %v1481
      %1537 = vst.msk [vmem:[#allocation3 + $0x18] sm:$0xf] %vm1530, %v1483
      %1538 = vst.msk [vmem:[#allocation3 + $0x1c] sm:$0xf] %vm1530, %v1485
      %1539 = vst.msk [vmem:[#allocation3 + $0x20] sm:$0xf] %vm1530, %v1487
      %1540 = vst.msk [vmem:[#allocation3 + $0x24] sm:$0xf] %vm1530, %v1489
      %1541 = vst.msk [vmem:[#allocation3 + $0x28] sm:$0xf] %vm1530, %v1491
      %1542 = vst.msk [vmem:[#allocation3 + $0x2c] sm:$0xf] %vm1530, %v1493
      %1543 = vst.msk [vmem:[#allocation3 + $0x30] sm:$0xf] %vm1530, %v1495
      %1544 = vst.msk [vmem:[#allocation3 + $0x34] sm:$0xf] %vm1530, %v1497
      %1545 = vst.msk [vmem:[#allocation3 + $0x38] sm:$0xf] %vm1530, %v1499
      %1546 = vst.msk [vmem:[#allocation3 + $0x3c] sm:$0xf] %vm1530, %v1501
      %1547 = vst.msk [vmem:[#allocation3 + $0x40] sm:$0xf] %vm1530, %v1503
      %1548 = vst.msk [vmem:[#allocation3 + $0x44] sm:$0xf] %vm1530, %v1505
      %1549 = vst.msk [vmem:[#allocation3 + $0x48] sm:$0xf] %vm1530, %v1507
      %1550 = vst.msk [vmem:[#allocation3 + $0x4c] sm:$0xf] %vm1530, %v1509
      %s1551 = sadd.s32 %s251, 2
      %s1552 = smul.u32 %s1551, 3
      %s1553 = smul.addr %s1552, 4
      %s1554 = scalar_lea.vmem %s238, %s1553
      %v1555 = vld [vmem:[%s1554] sm:$0xf]
      %v1556 = vld [vmem:[%s1554 + $0x4] sm:$0xf]
      %v1557 = vld [vmem:[%s1554 + $0xc] sm:$0xf]
      %v1558 = vld [vmem:[%s1554 + $0x10] sm:$0xf]
      %v1559 = vld [vmem:[%s1554 + $0x18] sm:$0xf]
      %v1560 = vld [vmem:[%s1554 + $0x1c] sm:$0xf]
      %v1561 = vld [vmem:[%s1554 + $0x24] sm:$0xf]
      %v1562 = vld [vmem:[%s1554 + $0x28] sm:$0xf]
      %v1563 = vld [vmem:[%s1554 + $0x30] sm:$0xf]
      %v1564 = vld [vmem:[%s1554 + $0x34] sm:$0xf]
      %v1565 = vld [vmem:[%s1554 + $0x3c] sm:$0xf]
      %v1566 = vld [vmem:[%s1554 + $0x40] sm:$0xf]
      %v1567 = vld [vmem:[%s1554 + $0x48] sm:$0xf]
      %v1568 = vld [vmem:[%s1554 + $0x4c] sm:$0xf]
      %v1569 = vld [vmem:[%s1554 + $0x54] sm:$0xf]
      %v1570 = vld [vmem:[%s1554 + $0x58] sm:$0xf]
      %v1571 = vld [vmem:[%s1554 + $0x60] sm:$0xf]
      %v1572 = vld [vmem:[%s1554 + $0x64] sm:$0xf]
      %v1573 = vld [vmem:[%s1554 + $0x6c] sm:$0xf]
      %v1574 = vld [vmem:[%s1554 + $0x70] sm:$0xf]
      %1595 = vrot.lane.b32.xlu0 %v1555, 48
      %v1596 = vpop.permute.xlu0 %1595
      %1597 = vrot.lane.b32.xlu0 %v1556, 48
      %v1598 = vpop.permute.xlu0 %1597
      %1599 = vrot.lane.b32.xlu0 %v1557, 48
      %v1600 = vpop.permute.xlu0 %1599
      %1601 = vrot.lane.b32.xlu0 %v1558, 48
      %v1602 = vpop.permute.xlu0 %1601
      %1603 = vrot.lane.b32.xlu0 %v1559, 48
      %v1604 = vpop.permute.xlu0 %1603
      %1605 = vrot.lane.b32.xlu0 %v1560, 48
      %v1606 = vpop.permute.xlu0 %1605
      %1607 = vrot.lane.b32.xlu0 %v1561, 48
      %v1608 = vpop.permute.xlu0 %1607
      %1609 = vrot.lane.b32.xlu0 %v1562, 48
      %v1610 = vpop.permute.xlu0 %1609
      %1611 = vrot.lane.b32.xlu0 %v1563, 48
      %v1612 = vpop.permute.xlu0 %1611
      %1613 = vrot.lane.b32.xlu0 %v1564, 48
      %v1614 = vpop.permute.xlu0 %1613
      %1615 = vrot.lane.b32.xlu0 %v1565, 48
      %v1616 = vpop.permute.xlu0 %1615
      %1617 = vrot.lane.b32.xlu0 %v1566, 48
      %v1618 = vpop.permute.xlu0 %1617
      %1619 = vrot.lane.b32.xlu0 %v1567, 48
      %v1620 = vpop.permute.xlu0 %1619
      %1621 = vrot.lane.b32.xlu0 %v1568, 48
      %v1622 = vpop.permute.xlu0 %1621
      %1623 = vrot.lane.b32.xlu0 %v1569, 48
      %v1624 = vpop.permute.xlu0 %1623
      %1625 = vrot.lane.b32.xlu0 %v1570, 48
      %v1626 = vpop.permute.xlu0 %1625
      %1627 = vrot.lane.b32.xlu0 %v1571, 48
      %v1628 = vpop.permute.xlu0 %1627
      %1629 = vrot.lane.b32.xlu0 %v1572, 48
      %v1630 = vpop.permute.xlu0 %1629
      %1631 = vrot.lane.b32.xlu0 %v1573, 48
      %v1632 = vpop.permute.xlu0 %1631
      %1633 = vrot.lane.b32.xlu0 %v1574, 48
      %v1634 = vpop.permute.xlu0 %1633
      %vm1655 = vcmask 454016
      %1656 = vst.msk [vmem:[#allocation3] sm:$0xf] %vm1655, %v1596
      %1657 = vst.msk [vmem:[#allocation3 + $0x4] sm:$0xf] %vm1655, %v1598
      %1658 = vst.msk [vmem:[#allocation3 + $0x8] sm:$0xf] %vm1655, %v1600
      %1659 = vst.msk [vmem:[#allocation3 + $0xc] sm:$0xf] %vm1655, %v1602
      %1660 = vst.msk [vmem:[#allocation3 + $0x10] sm:$0xf] %vm1655, %v1604
      %1661 = vst.msk [vmem:[#allocation3 + $0x14] sm:$0xf] %vm1655, %v1606
      %1662 = vst.msk [vmem:[#allocation3 + $0x18] sm:$0xf] %vm1655, %v1608
      %1663 = vst.msk [vmem:[#allocation3 + $0x1c] sm:$0xf] %vm1655, %v1610
      %1664 = vst.msk [vmem:[#allocation3 + $0x20] sm:$0xf] %vm1655, %v1612
      %1665 = vst.msk [vmem:[#allocation3 + $0x24] sm:$0xf] %vm1655, %v1614
      %1666 = vst.msk [vmem:[#allocation3 + $0x28] sm:$0xf] %vm1655, %v1616
      %1667 = vst.msk [vmem:[#allocation3 + $0x2c] sm:$0xf] %vm1655, %v1618
      %1668 = vst.msk [vmem:[#allocation3 + $0x30] sm:$0xf] %vm1655, %v1620
      %1669 = vst.msk [vmem:[#allocation3 + $0x34] sm:$0xf] %vm1655, %v1622
      %1670 = vst.msk [vmem:[#allocation3 + $0x38] sm:$0xf] %vm1655, %v1624
      %1671 = vst.msk [vmem:[#allocation3 + $0x3c] sm:$0xf] %vm1655, %v1626
      %1672 = vst.msk [vmem:[#allocation3 + $0x40] sm:$0xf] %vm1655, %v1628
      %1673 = vst.msk [vmem:[#allocation3 + $0x44] sm:$0xf] %vm1655, %v1630
      %1674 = vst.msk [vmem:[#allocation3 + $0x48] sm:$0xf] %vm1655, %v1632
      %1675 = vst.msk [vmem:[#allocation3 + $0x4c] sm:$0xf] %vm1655, %v1634
      %v1676 = vld [vmem:[%s1554] sm:$0xf]
      %v1677 = vld [vmem:[%s1554 + $0x4] sm:$0xf]
      %v1678 = vld [vmem:[%s1554 + $0x8] sm:$0x1]
      %v1679 = vld [vmem:[%s1554 + $0xc] sm:$0xf]
      %v1680 = vld [vmem:[%s1554 + $0x10] sm:$0xf]
      %v1681 = vld [vmem:[%s1554 + $0x14] sm:$0x1]
      %v1682 = vld [vmem:[%s1554 + $0x18] sm:$0xf]
      %v1683 = vld [vmem:[%s1554 + $0x1c] sm:$0xf]
      %v1684 = vld [vmem:[%s1554 + $0x20] sm:$0x1]
      %v1685 = vld [vmem:[%s1554 + $0x24] sm:$0xf]
      %v1686 = vld [vmem:[%s1554 + $0x28] sm:$0xf]
      %v1687 = vld [vmem:[%s1554 + $0x2c] sm:$0x1]
      %v1688 = vld [vmem:[%s1554 + $0x30] sm:$0xf]
      %v1689 = vld [vmem:[%s1554 + $0x34] sm:$0xf]
      %v1690 = vld [vmem:[%s1554 + $0x38] sm:$0x1]
      %v1691 = vld [vmem:[%s1554 + $0x3c] sm:$0xf]
      %v1692 = vld [vmem:[%s1554 + $0x40] sm:$0xf]
      %v1693 = vld [vmem:[%s1554 + $0x44] sm:$0x1]
      %v1694 = vld [vmem:[%s1554 + $0x48] sm:$0xf]
      %v1695 = vld [vmem:[%s1554 + $0x4c] sm:$0xf]
      %v1696 = vld [vmem:[%s1554 + $0x50] sm:$0x1]
      %v1697 = vld [vmem:[%s1554 + $0x54] sm:$0xf]
      %v1698 = vld [vmem:[%s1554 + $0x58] sm:$0xf]
      %v1699 = vld [vmem:[%s1554 + $0x5c] sm:$0x1]
      %v1700 = vld [vmem:[%s1554 + $0x60] sm:$0xf]
      %v1701 = vld [vmem:[%s1554 + $0x64] sm:$0xf]
      %v1702 = vld [vmem:[%s1554 + $0x68] sm:$0x1]
      %v1703 = vld [vmem:[%s1554 + $0x6c] sm:$0xf]
      %v1704 = vld [vmem:[%s1554 + $0x70] sm:$0xf]
      %v1705 = vld [vmem:[%s1554 + $0x74] sm:$0x1]
      %v1707 = vshrl.u32 %v1676, 16
      %v1709 = vrot.slane %v1707, 4
      %v1710 = vshll.u32 %v1676, 16
      %v1712 = vrot.slane %v1710, 5
      %v1713 = vor.u32 %v1709, %v1712
      %v1714 = vrot.slane %v1713, 4
      %v1716 = vshll.u32 %v1677, 16
      %v1718 = vrot.slane %v1716, 5
      %v1719 = vsel %vm328, %v1714, %v1718
      %v1720 = vshrl.u32 %v1677, 16
      %v1722 = vrot.slane %v1720, 4
      %v1723 = vor.u32 %v1722, %v1718
      %v1724 = vrot.slane %v1723, 4
      %v1726 = vshll.u32 %v1678, 16
      %v1728 = vrot.slane %v1726, 5
      %v1729 = vsel %vm328, %v1724, %v1728
      %v1731 = vshrl.u32 %v1679, 16
      %v1733 = vrot.slane %v1731, 4
      %v1734 = vshll.u32 %v1679, 16
      %v1736 = vrot.slane %v1734, 5
      %v1737 = vor.u32 %v1733, %v1736
      %v1738 = vrot.slane %v1737, 4
      %v1740 = vshll.u32 %v1680, 16
      %v1742 = vrot.slane %v1740, 5
      %v1743 = vsel %vm328, %v1738, %v1742
      %v1744 = vshrl.u32 %v1680, 16
      %v1746 = vrot.slane %v1744, 4
      %v1747 = vor.u32 %v1746, %v1742
      %v1748 = vrot.slane %v1747, 4
      %v1750 = vshll.u32 %v1681, 16
      %v1752 = vrot.slane %v1750, 5
      %v1753 = vsel %vm328, %v1748, %v1752
      %v1755 = vshrl.u32 %v1682, 16
      %v1757 = vrot.slane %v1755, 4
      %v1758 = vshll.u32 %v1682, 16
      %v1760 = vrot.slane %v1758, 5
      %v1761 = vor.u32 %v1757, %v1760
      %v1762 = vrot.slane %v1761, 4
      %v1764 = vshll.u32 %v1683, 16
      %v1766 = vrot.slane %v1764, 5
      %v1767 = vsel %vm328, %v1762, %v1766
      %v1768 = vshrl.u32 %v1683, 16
      %v1770 = vrot.slane %v1768, 4
      %v1771 = vor.u32 %v1770, %v1766
      %v1772 = vrot.slane %v1771, 4
      %v1774 = vshll.u32 %v1684, 16
      %v1776 = vrot.slane %v1774, 5
      %v1777 = vsel %vm328, %v1772, %v1776
      %v1779 = vshrl.u32 %v1685, 16
      %v1781 = vrot.slane %v1779, 4
      %v1782 = vshll.u32 %v1685, 16
      %v1784 = vrot.slane %v1782, 5
      %v1785 = vor.u32 %v1781, %v1784
      %v1786 = vrot.slane %v1785, 4
      %v1788 = vshll.u32 %v1686, 16
      %v1790 = vrot.slane %v1788, 5
      %v1791 = vsel %vm328, %v1786, %v1790
      %v1792 = vshrl.u32 %v1686, 16
      %v1794 = vrot.slane %v1792, 4
      %v1795 = vor.u32 %v1794, %v1790
      %v1796 = vrot.slane %v1795, 4
      %v1798 = vshll.u32 %v1687, 16
      %v1800 = vrot.slane %v1798, 5
      %v1801 = vsel %vm328, %v1796, %v1800
      %v1803 = vshrl.u32 %v1688, 16
      %v1805 = vrot.slane %v1803, 4
      %v1806 = vshll.u32 %v1688, 16
      %v1808 = vrot.slane %v1806, 5
      %v1809 = vor.u32 %v1805, %v1808
      %v1810 = vrot.slane %v1809, 4
      %v1812 = vshll.u32 %v1689, 16
      %v1814 = vrot.slane %v1812, 5
      %v1815 = vsel %vm328, %v1810, %v1814
      %v1816 = vshrl.u32 %v1689, 16
      %v1818 = vrot.slane %v1816, 4
      %v1819 = vor.u32 %v1818, %v1814
      %v1820 = vrot.slane %v1819, 4
      %v1822 = vshll.u32 %v1690, 16
      %v1824 = vrot.slane %v1822, 5
      %v1825 = vsel %vm328, %v1820, %v1824
      %v1827 = vshrl.u32 %v1691, 16
      %v1829 = vrot.slane %v1827, 4
      %v1830 = vshll.u32 %v1691, 16
      %v1832 = vrot.slane %v1830, 5
      %v1833 = vor.u32 %v1829, %v1832
      %v1834 = vrot.slane %v1833, 4
      %v1836 = vshll.u32 %v1692, 16
      %v1838 = vrot.slane %v1836, 5
      %v1839 = vsel %vm328, %v1834, %v1838
      %v1840 = vshrl.u32 %v1692, 16
      %v1842 = vrot.slane %v1840, 4
      %v1843 = vor.u32 %v1842, %v1838
      %v1844 = vrot.slane %v1843, 4
      %v1846 = vshll.u32 %v1693, 16
      %v1848 = vrot.slane %v1846, 5
      %v1849 = vsel %vm328, %v1844, %v1848
      %v1851 = vshrl.u32 %v1694, 16
      %v1853 = vrot.slane %v1851, 4
      %v1854 = vshll.u32 %v1694, 16
      %v1856 = vrot.slane %v1854, 5
      %v1857 = vor.u32 %v1853, %v1856
      %v1858 = vrot.slane %v1857, 4
      %v1860 = vshll.u32 %v1695, 16
      %v1862 = vrot.slane %v1860, 5
      %v1863 = vsel %vm328, %v1858, %v1862
      %v1864 = vshrl.u32 %v1695, 16
      %v1866 = vrot.slane %v1864, 4
      %v1867 = vor.u32 %v1866, %v1862
      %v1868 = vrot.slane %v1867, 4
      %v1870 = vshll.u32 %v1696, 16
      %v1872 = vrot.slane %v1870, 5
      %v1873 = vsel %vm328, %v1868, %v1872
      %v1875 = vshrl.u32 %v1697, 16
      %v1877 = vrot.slane %v1875, 4
      %v1878 = vshll.u32 %v1697, 16
      %v1880 = vrot.slane %v1878, 5
      %v1881 = vor.u32 %v1877, %v1880
      %v1882 = vrot.slane %v1881, 4
      %v1884 = vshll.u32 %v1698, 16
      %v1886 = vrot.slane %v1884, 5
      %v1887 = vsel %vm328, %v1882, %v1886
      %v1888 = vshrl.u32 %v1698, 16
      %v1890 = vrot.slane %v1888, 4
      %v1891 = vor.u32 %v1890, %v1886
      %v1892 = vrot.slane %v1891, 4
      %v1894 = vshll.u32 %v1699, 16
      %v1896 = vrot.slane %v1894, 5
      %v1897 = vsel %vm328, %v1892, %v1896
      %v1899 = vshrl.u32 %v1700, 16
      %v1901 = vrot.slane %v1899, 4
      %v1902 = vshll.u32 %v1700, 16
      %v1904 = vrot.slane %v1902, 5
      %v1905 = vor.u32 %v1901, %v1904
      %v1906 = vrot.slane %v1905, 4
      %v1908 = vshll.u32 %v1701, 16
      %v1910 = vrot.slane %v1908, 5
      %v1911 = vsel %vm328, %v1906, %v1910
      %v1912 = vshrl.u32 %v1701, 16
      %v1914 = vrot.slane %v1912, 4
      %v1915 = vor.u32 %v1914, %v1910
      %v1916 = vrot.slane %v1915, 4
      %v1918 = vshll.u32 %v1702, 16
      %v1920 = vrot.slane %v1918, 5
      %v1921 = vsel %vm328, %v1916, %v1920
      %v1923 = vshrl.u32 %v1703, 16
      %v1925 = vrot.slane %v1923, 4
      %v1926 = vshll.u32 %v1703, 16
      %v1928 = vrot.slane %v1926, 5
      %v1929 = vor.u32 %v1925, %v1928
      %v1930 = vrot.slane %v1929, 4
      %v1932 = vshll.u32 %v1704, 16
      %v1934 = vrot.slane %v1932, 5
      %v1935 = vsel %vm328, %v1930, %v1934
      %v1936 = vshrl.u32 %v1704, 16
      %v1938 = vrot.slane %v1936, 4
      %v1939 = vor.u32 %v1938, %v1934
      %v1940 = vrot.slane %v1939, 4
      %v1942 = vshll.u32 %v1705, 16
      %v1944 = vrot.slane %v1942, 5
      %v1945 = vsel %vm328, %v1940, %v1944
      %1946 = vrot.lane.b32.xlu0 %v1719, 56
      %v1947 = vpop.permute.xlu0 %1946
      %1948 = vrot.lane.b32.xlu0 %v1729, 56
      %v1949 = vpop.permute.xlu0 %1948
      %1950 = vrot.lane.b32.xlu0 %v1743, 56
      %v1951 = vpop.permute.xlu0 %1950
      %1952 = vrot.lane.b32.xlu0 %v1753, 56
      %v1953 = vpop.permute.xlu0 %1952
      %1954 = vrot.lane.b32.xlu0 %v1767, 56
      %v1955 = vpop.permute.xlu0 %1954
      %1956 = vrot.lane.b32.xlu0 %v1777, 56
      %v1957 = vpop.permute.xlu0 %1956
      %1958 = vrot.lane.b32.xlu0 %v1791, 56
      %v1959 = vpop.permute.xlu0 %1958
      %1960 = vrot.lane.b32.xlu0 %v1801, 56
      %v1961 = vpop.permute.xlu0 %1960
      %1962 = vrot.lane.b32.xlu0 %v1815, 56
      %v1963 = vpop.permute.xlu0 %1962
      %1964 = vrot.lane.b32.xlu0 %v1825, 56
      %v1965 = vpop.permute.xlu0 %1964
      %1966 = vrot.lane.b32.xlu0 %v1839, 56
      %v1967 = vpop.permute.xlu0 %1966
      %1968 = vrot.lane.b32.xlu0 %v1849, 56
      %v1969 = vpop.permute.xlu0 %1968
      %1970 = vrot.lane.b32.xlu0 %v1863, 56
      %v1971 = vpop.permute.xlu0 %1970
      %1972 = vrot.lane.b32.xlu0 %v1873, 56
      %v1973 = vpop.permute.xlu0 %1972
      %1974 = vrot.lane.b32.xlu0 %v1887, 56
      %v1975 = vpop.permute.xlu0 %1974
      %1976 = vrot.lane.b32.xlu0 %v1897, 56
      %v1977 = vpop.permute.xlu0 %1976
      %1978 = vrot.lane.b32.xlu0 %v1911, 56
      %v1979 = vpop.permute.xlu0 %1978
      %1980 = vrot.lane.b32.xlu0 %v1921, 56
      %v1981 = vpop.permute.xlu0 %1980
      %1982 = vrot.lane.b32.xlu0 %v1935, 56
      %v1983 = vpop.permute.xlu0 %1982
      %1984 = vrot.lane.b32.xlu0 %v1945, 56
      %v1985 = vpop.permute.xlu0 %1984
      %vm2006 = vcmask 519616
      %2007 = vst.msk [vmem:[#allocation3] sm:$0xf] %vm2006, %v1947
      %2008 = vst.msk [vmem:[#allocation3 + $0x4] sm:$0xf] %vm2006, %v1949
      %2009 = vst.msk [vmem:[#allocation3 + $0x8] sm:$0xf] %vm2006, %v1951
      %2010 = vst.msk [vmem:[#allocation3 + $0xc] sm:$0xf] %vm2006, %v1953
      %2011 = vst.msk [vmem:[#allocation3 + $0x10] sm:$0xf] %vm2006, %v1955
      %2012 = vst.msk [vmem:[#allocation3 + $0x14] sm:$0xf] %vm2006, %v1957
      %2013 = vst.msk [vmem:[#allocation3 + $0x18] sm:$0xf] %vm2006, %v1959
      %2014 = vst.msk [vmem:[#allocation3 + $0x1c] sm:$0xf] %vm2006, %v1961
      %2015 = vst.msk [vmem:[#allocation3 + $0x20] sm:$0xf] %vm2006, %v1963
      %2016 = vst.msk [vmem:[#allocation3 + $0x24] sm:$0xf] %vm2006, %v1965
      %2017 = vst.msk [vmem:[#allocation3 + $0x28] sm:$0xf] %vm2006, %v1967
      %2018 = vst.msk [vmem:[#allocation3 + $0x2c] sm:$0xf] %vm2006, %v1969
      %2019 = vst.msk [vmem:[#allocation3 + $0x30] sm:$0xf] %vm2006, %v1971
      %2020 = vst.msk [vmem:[#allocation3 + $0x34] sm:$0xf] %vm2006, %v1973
      %2021 = vst.msk [vmem:[#allocation3 + $0x38] sm:$0xf] %vm2006, %v1975
      %2022 = vst.msk [vmem:[#allocation3 + $0x3c] sm:$0xf] %vm2006, %v1977
      %2023 = vst.msk [vmem:[#allocation3 + $0x40] sm:$0xf] %vm2006, %v1979
      %2024 = vst.msk [vmem:[#allocation3 + $0x44] sm:$0xf] %vm2006, %v1981
      %2025 = vst.msk [vmem:[#allocation3 + $0x48] sm:$0xf] %vm2006, %v1983
      %2026 = vst.msk [vmem:[#allocation3 + $0x4c] sm:$0xf] %vm2006, %v1985
      %v2027 = vld [vmem:[%s1554] sm:$0xe]
      %v2028 = vld [vmem:[%s1554 + $0x4] sm:$0xf]
      %v2029 = vld [vmem:[%s1554 + $0x8] sm:$0x1]
      %v2030 = vld [vmem:[%s1554 + $0xc] sm:$0xe]
      %v2031 = vld [vmem:[%s1554 + $0x10] sm:$0xf]
      %v2032 = vld [vmem:[%s1554 + $0x14] sm:$0x1]
      %v2033 = vld [vmem:[%s1554 + $0x18] sm:$0xe]
      %v2034 = vld [vmem:[%s1554 + $0x1c] sm:$0xf]
      %v2035 = vld [vmem:[%s1554 + $0x20] sm:$0x1]
      %v2036 = vld [vmem:[%s1554 + $0x24] sm:$0xe]
      %v2037 = vld [vmem:[%s1554 + $0x28] sm:$0xf]
      %v2038 = vld [vmem:[%s1554 + $0x2c] sm:$0x1]
      %v2039 = vld [vmem:[%s1554 + $0x30] sm:$0xe]
      %v2040 = vld [vmem:[%s1554 + $0x34] sm:$0xf]
      %v2041 = vld [vmem:[%s1554 + $0x38] sm:$0x1]
      %v2042 = vld [vmem:[%s1554 + $0x3c] sm:$0xe]
      %v2043 = vld [vmem:[%s1554 + $0x40] sm:$0xf]
      %v2044 = vld [vmem:[%s1554 + $0x44] sm:$0x1]
      %v2045 = vld [vmem:[%s1554 + $0x48] sm:$0xe]
      %v2046 = vld [vmem:[%s1554 + $0x4c] sm:$0xf]
      %v2047 = vld [vmem:[%s1554 + $0x50] sm:$0x1]
      %v2048 = vld [vmem:[%s1554 + $0x54] sm:$0xe]
      %v2049 = vld [vmem:[%s1554 + $0x58] sm:$0xf]
      %v2050 = vld [vmem:[%s1554 + $0x5c] sm:$0x1]
      %v2051 = vld [vmem:[%s1554 + $0x60] sm:$0xe]
      %v2052 = vld [vmem:[%s1554 + $0x64] sm:$0xf]
      %v2053 = vld [vmem:[%s1554 + $0x68] sm:$0x1]
      %v2054 = vld [vmem:[%s1554 + $0x6c] sm:$0xe]
      %v2055 = vld [vmem:[%s1554 + $0x70] sm:$0xf]
      %v2056 = vld [vmem:[%s1554 + $0x74] sm:$0x1]
      %v2087 = vrot.slane %v2027, 5
      %v2088 = vrot.slane %v2087, 4
      %v2089 = vrot.slane %v2028, 5
      %v2090 = vsel %vm712, %v2088, %v2089
      %v2091 = vrot.slane %v2089, 4
      %v2092 = vrot.slane %v2029, 5
      %v2093 = vsel %vm712, %v2091, %v2092
      %v2094 = vrot.slane %v2030, 5
      %v2095 = vrot.slane %v2094, 4
      %v2096 = vrot.slane %v2031, 5
      %v2097 = vsel %vm712, %v2095, %v2096
      %v2098 = vrot.slane %v2096, 4
      %v2099 = vrot.slane %v2032, 5
      %v2100 = vsel %vm712, %v2098, %v2099
      %v2101 = vrot.slane %v2033, 5
      %v2102 = vrot.slane %v2101, 4
      %v2103 = vrot.slane %v2034, 5
      %v2104 = vsel %vm712, %v2102, %v2103
      %v2105 = vrot.slane %v2103, 4
      %v2106 = vrot.slane %v2035, 5
      %v2107 = vsel %vm712, %v2105, %v2106
      %v2108 = vrot.slane %v2036, 5
      %v2109 = vrot.slane %v2108, 4
      %v2110 = vrot.slane %v2037, 5
      %v2111 = vsel %vm712, %v2109, %v2110
      %v2112 = vrot.slane %v2110, 4
      %v2113 = vrot.slane %v2038, 5
      %v2114 = vsel %vm712, %v2112, %v2113
      %v2115 = vrot.slane %v2039, 5
      %v2116 = vrot.slane %v2115, 4
      %v2117 = vrot.slane %v2040, 5
      %v2118 = vsel %vm712, %v2116, %v2117
      %v2119 = vrot.slane %v2117, 4
      %v2120 = vrot.slane %v2041, 5
      %v2121 = vsel %vm712, %v2119, %v2120
      %v2122 = vrot.slane %v2042, 5
      %v2123 = vrot.slane %v2122, 4
      %v2124 = vrot.slane %v2043, 5
      %v2125 = vsel %vm712, %v2123, %v2124
      %v2126 = vrot.slane %v2124, 4
      %v2127 = vrot.slane %v2044, 5
      %v2128 = vsel %vm712, %v2126, %v2127
      %v2129 = vrot.slane %v2045, 5
      %v2130 = vrot.slane %v2129, 4
      %v2131 = vrot.slane %v2046, 5
      %v2132 = vsel %vm712, %v2130, %v2131
      %v2133 = vrot.slane %v2131, 4
      %v2134 = vrot.slane %v2047, 5
      %v2135 = vsel %vm712, %v2133, %v2134
      %v2136 = vrot.slane %v2048, 5
      %v2137 = vrot.slane %v2136, 4
      %v2138 = vrot.slane %v2049, 5
      %v2139 = vsel %vm712, %v2137, %v2138
      %v2140 = vrot.slane %v2138, 4
      %v2141 = vrot.slane %v2050, 5
      %v2142 = vsel %vm712, %v2140, %v2141
      %v2143 = vrot.slane %v2051, 5
      %v2144 = vrot.slane %v2143, 4
      %v2145 = vrot.slane %v2052, 5
      %v2146 = vsel %vm712, %v2144, %v2145
      %v2147 = vrot.slane %v2145, 4
      %v2148 = vrot.slane %v2053, 5
      %v2149 = vsel %vm712, %v2147, %v2148
      %v2150 = vrot.slane %v2054, 5
      %v2151 = vrot.slane %v2150, 4
      %v2152 = vrot.slane %v2055, 5
      %v2153 = vsel %vm712, %v2151, %v2152
      %v2154 = vrot.slane %v2152, 4
      %v2155 = vrot.slane %v2056, 5
      %v2156 = vsel %vm712, %v2154, %v2155
      %2157 = vrot.lane.b32.xlu0 %v2090, 64
      %v2158 = vpop.permute.xlu0 %2157
      %2159 = vrot.lane.b32.xlu0 %v2093, 64
      %v2160 = vpop.permute.xlu0 %2159
      %2161 = vrot.lane.b32.xlu0 %v2097, 64
      %v2162 = vpop.permute.xlu0 %2161
      %2163 = vrot.lane.b32.xlu0 %v2100, 64
      %v2164 = vpop.permute.xlu0 %2163
      %2165 = vrot.lane.b32.xlu0 %v2104, 64
      %v2166 = vpop.permute.xlu0 %2165
      %2167 = vrot.lane.b32.xlu0 %v2107, 64
      %v2168 = vpop.permute.xlu0 %2167
      %2169 = vrot.lane.b32.xlu0 %v2111, 64
      %v2170 = vpop.permute.xlu0 %2169
      %2171 = vrot.lane.b32.xlu0 %v2114, 64
      %v2172 = vpop.permute.xlu0 %2171
      %2173 = vrot.lane.b32.xlu0 %v2118, 64
      %v2174 = vpop.permute.xlu0 %2173
      %2175 = vrot.lane.b32.xlu0 %v2121, 64
      %v2176 = vpop.permute.xlu0 %2175
      %2177 = vrot.lane.b32.xlu0 %v2125, 64
      %v2178 = vpop.permute.xlu0 %2177
      %2179 = vrot.lane.b32.xlu0 %v2128, 64
      %v2180 = vpop.permute.xlu0 %2179
      %2181 = vrot.lane.b32.xlu0 %v2132, 64
      %v2182 = vpop.permute.xlu0 %2181
      %2183 = vrot.lane.b32.xlu0 %v2135, 64
      %v2184 = vpop.permute.xlu0 %2183
      %2185 = vrot.lane.b32.xlu0 %v2139, 64
      %v2186 = vpop.permute.xlu0 %2185
      %2187 = vrot.lane.b32.xlu0 %v2142, 64
      %v2188 = vpop.permute.xlu0 %2187
      %2189 = vrot.lane.b32.xlu0 %v2146, 64
      %v2190 = vpop.permute.xlu0 %2189
      %2191 = vrot.lane.b32.xlu0 %v2149, 64
      %v2192 = vpop.permute.xlu0 %2191
      %2193 = vrot.lane.b32.xlu0 %v2153, 64
      %v2194 = vpop.permute.xlu0 %2193
      %2195 = vrot.lane.b32.xlu0 %v2156, 64
      %v2196 = vpop.permute.xlu0 %2195
      %vm2217 = vcmask 585216
      %2218 = vst.msk [vmem:[#allocation3] sm:$0xf] %vm2217, %v2158
      %2219 = vst.msk [vmem:[#allocation3 + $0x4] sm:$0xf] %vm2217, %v2160
      %2220 = vst.msk [vmem:[#allocation3 + $0x8] sm:$0xf] %vm2217, %v2162
      %2221 = vst.msk [vmem:[#allocation3 + $0xc] sm:$0xf] %vm2217, %v2164
      %2222 = vst.msk [vmem:[#allocation3 + $0x10] sm:$0xf] %vm2217, %v2166
      %2223 = vst.msk [vmem:[#allocation3 + $0x14] sm:$0xf] %vm2217, %v2168
      %2224 = vst.msk [vmem:[#allocation3 + $0x18] sm:$0xf] %vm2217, %v2170
      %2225 = vst.msk [vmem:[#allocation3 + $0x1c] sm:$0xf] %vm2217, %v2172
      %2226 = vst.msk [vmem:[#allocation3 + $0x20] sm:$0xf] %vm2217, %v2174
      %2227 = vst.msk [vmem:[#allocation3 + $0x24] sm:$0xf] %vm2217, %v2176
      %2228 = vst.msk [vmem:[#allocation3 + $0x28] sm:$0xf] %vm2217, %v2178
      %2229 = vst.msk [vmem:[#allocation3 + $0x2c] sm:$0xf] %vm2217, %v2180
      %2230 = vst.msk [vmem:[#allocation3 + $0x30] sm:$0xf] %vm2217, %v2182
      %2231 = vst.msk [vmem:[#allocation3 + $0x34] sm:$0xf] %vm2217, %v2184
      %2232 = vst.msk [vmem:[#allocation3 + $0x38] sm:$0xf] %vm2217, %v2186
      %2233 = vst.msk [vmem:[#allocation3 + $0x3c] sm:$0xf] %vm2217, %v2188
      %2234 = vst.msk [vmem:[#allocation3 + $0x40] sm:$0xf] %vm2217, %v2190
      %2235 = vst.msk [vmem:[#allocation3 + $0x44] sm:$0xf] %vm2217, %v2192
      %2236 = vst.msk [vmem:[#allocation3 + $0x48] sm:$0xf] %vm2217, %v2194
      %2237 = vst.msk [vmem:[#allocation3 + $0x4c] sm:$0xf] %vm2217, %v2196
      %v2238 = vld [vmem:[#allocation3] sm:$0xf]
      %v2239 = vld [vmem:[#allocation3 + $0x4] sm:$0xf]
      %v2240 = vld [vmem:[#allocation3 + $0x8] sm:$0xf]
      %v2241 = vld [vmem:[#allocation3 + $0xc] sm:$0xf]
      %v2242 = vld [vmem:[#allocation3 + $0x10] sm:$0xf]
      %v2243 = vld [vmem:[#allocation3 + $0x14] sm:$0xf]
      %v2244 = vld [vmem:[#allocation3 + $0x18] sm:$0xf]
      %v2245 = vld [vmem:[#allocation3 + $0x1c] sm:$0xf]
      %v2246 = vld [vmem:[#allocation3 + $0x20] sm:$0xf]
      %v2247 = vld [vmem:[#allocation3 + $0x24] sm:$0xf]
      %v2248 = vld [vmem:[#allocation3 + $0x28] sm:$0xf]
      %v2249 = vld [vmem:[#allocation3 + $0x2c] sm:$0xf]
      %v2250 = vld [vmem:[#allocation3 + $0x30] sm:$0xf]
      %v2251 = vld [vmem:[#allocation3 + $0x34] sm:$0xf]
      %v2252 = vld [vmem:[#allocation3 + $0x38] sm:$0xf]
      %v2253 = vld [vmem:[#allocation3 + $0x3c] sm:$0xf]
      %v2254 = vld [vmem:[#allocation3 + $0x40] sm:$0xf]
      %v2255 = vld [vmem:[#allocation3 + $0x44] sm:$0xf]
      %v2256 = vld [vmem:[#allocation3 + $0x48] sm:$0xf]
      %v2257 = vld [vmem:[#allocation3 + $0x4c] sm:$0xf]
      %v2258 = vld [vmem:[%s1] sm:$0xf]
      %v2259 = vld [vmem:[%s1 + $0x4] sm:$0xf]
      %v2260 = vld [vmem:[%s1 + $0x8] sm:$0xf]
      %v2261 = vld [vmem:[%s1 + $0xc] sm:$0xf]
      %v2262 = vld [vmem:[%s1 + $0x10] sm:$0xf]
      %v2263 = vld [vmem:[%s1 + $0x14] sm:$0xf]
      %v2264 = vld [vmem:[%s1 + $0x18] sm:$0xf]
      %v2265 = vld [vmem:[%s1 + $0x1c] sm:$0xf]
      %v2266 = vld [vmem:[%s1 + $0x20] sm:$0xf]
      %v2267 = vld [vmem:[%s2] sm:$0x1]
      %v2269 = vlaneseq
      %v2270 = vshrl.u32 %v2269, 7
      %v2271 = vsub.s32 0, %v2270
      %v2272 = vrot.slane %v2267, %v2271
      %v2294 = vunpack.c.l.b16 %v2238
      %v2295 = vunpack.c.l.b16 %v2239
      %v2296 = vunpack.c.l.b16 %v2240
      %v2297 = vunpack.c.l.b16 %v2241
      %v2298 = vunpack.c.l.b16 %v2242
      %v2299 = vunpack.c.l.b16 %v2243
      %v2300 = vunpack.c.l.b16 %v2244
      %v2301 = vunpack.c.l.b16 %v2245
      %v2302 = vunpack.c.l.b16 %v2246
      %v2303 = vunpack.c.l.b16 %v2247
      %v2304 = vunpack.c.l.b16 %v2248
      %v2305 = vunpack.c.l.b16 %v2249
      %v2306 = vunpack.c.l.b16 %v2250
      %v2307 = vunpack.c.l.b16 %v2251
      %v2308 = vunpack.c.l.b16 %v2252
      %v2309 = vunpack.c.l.b16 %v2253
      %v2310 = vunpack.c.l.b16 %v2254
      %v2311 = vunpack.c.l.b16 %v2255
      %v2312 = vunpack.c.l.b16 %v2256
      %v2313 = vunpack.c.l.b16 %v2257
      %v2314 = vpack.c.b16 %v2295, %v2294
      %v2315 = vpack.c.b16 %v2297, %v2296
      %v2316 = vpack.c.b16 %v2299, %v2298
      %v2317 = vpack.c.b16 %v2301, %v2300
      %v2318 = vpack.c.b16 %v2303, %v2302
      %v2319 = vpack.c.b16 %v2305, %v2304
      %v2320 = vpack.c.b16 %v2307, %v2306
      %v2321 = vpack.c.b16 %v2309, %v2308
      %v2322 = vpack.c.b16 %v2311, %v2310
      %v2323 = vpack.c.b16 %v2313, %v2312
      %v2333 = vunpack.c.l.b16 %v2258
      %v2334 = vunpack.c.l.b16 %v2259
      %v2335 = vunpack.c.l.b16 %v2260
      %v2336 = vunpack.c.l.b16 %v2261
      %v2337 = vunpack.c.l.b16 %v2262
      %v2338 = vunpack.c.l.b16 %v2263
      %v2339 = vunpack.c.l.b16 %v2264
      %v2340 = vunpack.c.l.b16 %v2265
      %v2341 = vunpack.c.l.b16 %v2266
      %v2342 = vpack.c.b16 %v2334, %v2333
      %v2343 = vpack.c.b16 %v2336, %v2335
      %v2344 = vpack.c.b16 %v2338, %v2337
      %v2345 = vpack.c.b16 %v2340, %v2339
      %v2346 = vpack.c.b16 %v2341, %v2341
      %vm2351 = vcmask 588800
      %v2353 = vsel %vm2351, %v2314, 0
      %v2356 = vsel %vm2351, %v2315, 0
      %v2359 = vsel %vm2351, %v2316, 0
      %v2362 = vsel %vm2351, %v2317, 0
      %v2365 = vsel %vm2351, %v2318, 0
      %v2368 = vsel %vm2351, %v2319, 0
      %v2371 = vsel %vm2351, %v2320, 0
      %v2374 = vsel %vm2351, %v2321, 0
      %v2377 = vsel %vm2351, %v2322, 0
      %v2380 = vsel %vm2351, %v2323, 0
      %vm2382 = vcmask 1043456
      %v2384 = vsel %vm2382, %v2346, 0
      %2386 = vmatprep.subr.bf16.mxu0 0
      %2387 = vmatpush1.bf16.msra.mxu0 0
      %2388 = vmatprep.subr.bf16.mxu0 0
      %2389 = vmatpush1.bf16.msra.mxu0 0
      %2390 = vmatprep.subr.bf16.mxu0 0
      %2391 = vmatpush1.bf16.msra.mxu0 0
      %2392 = vmatprep.subr.bf16.mxu0 0
      %2393 = vmatpush1.bf16.msra.mxu0 %v2384
      %2394 = vmatprep.subr.bf16.mxu0 0
      %2395 = vmatpush1.bf16.msra.mxu0 %v2345
      %2396 = vmatprep.subr.bf16.mxu0 0
      %2397 = vmatpush1.bf16.msra.mxu0 %v2344
      %2398 = vmatprep.subr.bf16.mxu0 0
      %2399 = vmatpush1.bf16.msra.mxu0 %v2343
      %2400 = vmatprep.subr.bf16.mxu0 0
      %2401 = vmatpush1.bf16.msra.mxu0 %v2342
      %2402 = vmatprep.subr.bf16.mxu0 0
      %2403 = vmatpush2.bf16.msra.mxu0 0
      %2404 = vmatprep.subr.bf16.mxu0 0
      %2405 = vmatpush2.bf16.msra.mxu0 0
      %2406 = vmatprep.subr.bf16.mxu0 0
      %2407 = vmatpush2.bf16.msra.mxu0 0
      %2408 = vmatprep.subr.bf16.mxu0 0
      %2409 = vmatpush2.bf16.msra.mxu0 0
      %2410 = vmatprep.subr.bf16.mxu0 0
      %2411 = vmatpush2.bf16.msra.mxu0 0
      %2412 = vmatprep.subr.bf16.mxu0 0
      %2413 = vmatpush2.bf16.msra.mxu0 0
      %2414 = vmatprep.subr.bf16.mxu0 0
      %2415 = vmatpush2.bf16.msra.mxu0 0
      %2416 = vmatprep.subr.bf16.mxu0 0
      %2417 = vmatpush2.bf16.msra.mxu0 0
      %2418 = vmatprep.mubr.bf16.mxu0 0
      %2419 = vmatmul.mubr.bf16.gmra.mxu0 %v2353
      %v2420 = vpop.f32.mrf.mxu0
      %v2421 = vadd.f32 %v2272, %v2420
      %v2422 = vpop.f32.mrf.mxu0
      %v2423 = vpop.f32.mrf.mxu0
      %v2424 = vadd.f32 %v2272, %v2423
      %v2425 = vpop.f32.mrf.mxu0
      %2426 = vmatprep.mubr.bf16.mxu0 0
      %2427 = vmatmul.mubr.bf16.gmra.mxu0 %v2356
      %v2428 = vpop.f32.mrf.mxu0
      %v2429 = vadd.f32 %v2272, %v2428
      %v2430 = vpop.f32.mrf.mxu0
      %v2431 = vpop.f32.mrf.mxu0
      %v2432 = vadd.f32 %v2272, %v2431
      %v2433 = vpop.f32.mrf.mxu0
      %2434 = vmatprep.mubr.bf16.mxu0 0
      %2435 = vmatmul.mubr.bf16.gmra.mxu0 %v2359
      %v2436 = vpop.f32.mrf.mxu0
      %v2437 = vadd.f32 %v2272, %v2436
      %v2438 = vpop.f32.mrf.mxu0
      %v2439 = vpop.f32.mrf.mxu0
      %v2440 = vadd.f32 %v2272, %v2439
      %v2441 = vpop.f32.mrf.mxu0
      %2442 = vmatprep.mubr.bf16.mxu0 0
      %2443 = vmatmul.mubr.bf16.gmra.mxu0 %v2362
      %v2444 = vpop.f32.mrf.mxu0
      %v2445 = vadd.f32 %v2272, %v2444
      %v2446 = vpop.f32.mrf.mxu0
      %v2447 = vpop.f32.mrf.mxu0
      %v2448 = vadd.f32 %v2272, %v2447
      %v2449 = vpop.f32.mrf.mxu0
      %2450 = vmatprep.mubr.bf16.mxu0 0
      %2451 = vmatmul.mubr.bf16.gmra.mxu0 %v2365
      %v2452 = vpop.f32.mrf.mxu0
      %v2453 = vadd.f32 %v2272, %v2452
      %v2454 = vpop.f32.mrf.mxu0
      %v2455 = vpop.f32.mrf.mxu0
      %v2456 = vadd.f32 %v2272, %v2455
      %v2457 = vpop.f32.mrf.mxu0
      %2458 = vmatprep.mubr.bf16.mxu0 0
      %2459 = vmatmul.mubr.bf16.gmra.mxu0 %v2368
      %v2460 = vpop.f32.mrf.mxu0
      %v2461 = vadd.f32 %v2272, %v2460
      %v2462 = vpop.f32.mrf.mxu0
      %v2463 = vpop.f32.mrf.mxu0
      %v2464 = vadd.f32 %v2272, %v2463
      %v2465 = vpop.f32.mrf.mxu0
      %2466 = vmatprep.mubr.bf16.mxu0 0
      %2467 = vmatmul.mubr.bf16.gmra.mxu0 %v2371
      %v2468 = vpop.f32.mrf.mxu0
      %v2469 = vadd.f32 %v2272, %v2468
      %v2470 = vpop.f32.mrf.mxu0
      %v2471 = vpop.f32.mrf.mxu0
      %v2472 = vadd.f32 %v2272, %v2471
      %v2473 = vpop.f32.mrf.mxu0
      %2474 = vmatprep.mubr.bf16.mxu0 0
      %2475 = vmatmul.mubr.bf16.gmra.mxu0 %v2374
      %v2476 = vpop.f32.mrf.mxu0
      %v2477 = vadd.f32 %v2272, %v2476
      %v2478 = vpop.f32.mrf.mxu0
      %v2479 = vpop.f32.mrf.mxu0
      %v2480 = vadd.f32 %v2272, %v2479
      %v2481 = vpop.f32.mrf.mxu0
      %2482 = vmatprep.mubr.bf16.mxu0 0
      %2483 = vmatmul.mubr.bf16.gmra.mxu0 %v2377
      %v2484 = vpop.f32.mrf.mxu0
      %v2485 = vadd.f32 %v2272, %v2484
      %v2486 = vpop.f32.mrf.mxu0
      %v2487 = vpop.f32.mrf.mxu0
      %v2488 = vadd.f32 %v2272, %v2487
      %v2489 = vpop.f32.mrf.mxu0
      %2490 = vmatprep.mubr.bf16.mxu0 0
      %2491 = vmatmul.mubr.bf16.gmra.mxu0 %v2380
      %v2492 = vpop.f32.mrf.mxu0
      %v2493 = vadd.f32 %v2272, %v2492
      %v2494 = vpop.f32.mrf.mxu0
      %v2495 = vpop.f32.mrf.mxu0
      %v2496 = vadd.f32 %v2272, %v2495
      %v2497 = vpop.f32.mrf.mxu0
      %2498 = vdwg.mxu0
      %v2499 = vmax.f32 %v2421, 0.0
      %v2500 = vmax.f32 %v2424, 0.0
      %v2501 = vmax.f32 %v2429, 0.0
      %v2502 = vmax.f32 %v2432, 0.0
      %v2503 = vmax.f32 %v2437, 0.0
      %v2504 = vmax.f32 %v2440, 0.0
      %v2505 = vmax.f32 %v2445, 0.0
      %v2506 = vmax.f32 %v2448, 0.0
      %v2507 = vmax.f32 %v2453, 0.0
      %v2508 = vmax.f32 %v2456, 0.0
      %v2509 = vmax.f32 %v2461, 0.0
      %v2510 = vmax.f32 %v2464, 0.0
      %v2511 = vmax.f32 %v2469, 0.0
      %v2512 = vmax.f32 %v2472, 0.0
      %v2513 = vmax.f32 %v2477, 0.0
      %v2514 = vmax.f32 %v2480, 0.0
      %v2515 = vmax.f32 %v2485, 0.0
      %v2516 = vmax.f32 %v2488, 0.0
      %v2517 = vmax.f32 %v2493, 0.0
      %v2518 = vmax.f32 %v2496, 0.0
      %v2519 = vpack.c.bf16 %v2500, %v2499
      %v2520 = vpack.c.bf16 %v2502, %v2501
      %v2521 = vpack.c.bf16 %v2504, %v2503
      %v2522 = vpack.c.bf16 %v2506, %v2505
      %v2523 = vpack.c.bf16 %v2508, %v2507
      %v2524 = vpack.c.bf16 %v2510, %v2509
      %v2525 = vpack.c.bf16 %v2512, %v2511
      %v2526 = vpack.c.bf16 %v2514, %v2513
      %v2527 = vpack.c.bf16 %v2516, %v2515
      %v2528 = vpack.c.bf16 %v2518, %v2517
      %v2539 = vunpack.c.l.b16 %v2519
      %v2540 = vunpack.c.h.b16 %v2519
      %v2541 = vunpack.c.l.b16 %v2520
      %v2542 = vunpack.c.h.b16 %v2520
      %v2543 = vunpack.c.l.b16 %v2521
      %v2544 = vunpack.c.h.b16 %v2521
      %v2545 = vunpack.c.l.b16 %v2522
      %v2546 = vunpack.c.h.b16 %v2522
      %v2547 = vunpack.c.l.b16 %v2523
      %v2548 = vunpack.c.h.b16 %v2523
      %v2549 = vunpack.c.l.b16 %v2524
      %v2550 = vunpack.c.h.b16 %v2524
      %v2551 = vunpack.c.l.b16 %v2525
      %v2552 = vunpack.c.h.b16 %v2525
      %v2553 = vunpack.c.l.b16 %v2526
      %v2554 = vunpack.c.h.b16 %v2526
      %v2555 = vunpack.c.l.b16 %v2527
      %v2556 = vunpack.c.h.b16 %v2527
      %v2557 = vunpack.c.l.b16 %v2528
      %v2558 = vunpack.c.h.b16 %v2528
      %v2559 = vpack.c.b16 %v2539, %v2539
      %v2560 = vpack.c.b16 %v2540, %v2540
      %v2561 = vpack.c.b16 %v2541, %v2541
      %v2562 = vpack.c.b16 %v2542, %v2542
      %v2563 = vpack.c.b16 %v2543, %v2543
      %v2564 = vpack.c.b16 %v2544, %v2544
      %v2565 = vpack.c.b16 %v2545, %v2545
      %v2566 = vpack.c.b16 %v2546, %v2546
      %v2567 = vpack.c.b16 %v2547, %v2547
      %v2568 = vpack.c.b16 %v2548, %v2548
      %v2569 = vpack.c.b16 %v2549, %v2549
      %v2570 = vpack.c.b16 %v2550, %v2550
      %v2571 = vpack.c.b16 %v2551, %v2551
      %v2572 = vpack.c.b16 %v2552, %v2552
      %v2573 = vpack.c.b16 %v2553, %v2553
      %v2574 = vpack.c.b16 %v2554, %v2554
      %v2575 = vpack.c.b16 %v2555, %v2555
      %v2576 = vpack.c.b16 %v2556, %v2556
      %v2577 = vpack.c.b16 %v2557, %v2557
      %v2578 = vpack.c.b16 %v2558, %v2558
      %vm2579 = vsmask.f32 256
      %vm2580 = vsmask.f32 4368
      %vm2581 = vmor %vm2579, %vm2580
      %v2583 = vshrl.u32 %v2559, 16
      %v2585 = vrot.slane %v2583, 7
      %v2586 = vshll.u32 %v2559, 16
      %v2588 = vor.u32 %v2585, %v2586
      %v2589 = vrot.slane %v2585, 4
      %v2591 = vshrl.u32 %v2560, 16
      %v2593 = vrot.slane %v2591, 7
      %v2594 = vshll.u32 %v2560, 16
      %v2596 = vor.u32 %v2593, %v2594
      %v2597 = vsel %vm2581, %v2589, %v2596
      %v2598 = vrot.slane %v2593, 4
      %v2600 = vshrl.u32 %v2561, 16
      %v2602 = vrot.slane %v2600, 7
      %v2603 = vshll.u32 %v2561, 16
      %v2605 = vor.u32 %v2602, %v2603
      %v2606 = vrot.slane %v2602, 4
      %v2608 = vshrl.u32 %v2562, 16
      %v2610 = vrot.slane %v2608, 7
      %v2611 = vshll.u32 %v2562, 16
      %v2613 = vor.u32 %v2610, %v2611
      %v2614 = vsel %vm2581, %v2606, %v2613
      %v2615 = vrot.slane %v2610, 4
      %v2617 = vshrl.u32 %v2563, 16
      %v2619 = vrot.slane %v2617, 7
      %v2620 = vshll.u32 %v2563, 16
      %v2622 = vor.u32 %v2619, %v2620
      %v2623 = vrot.slane %v2619, 4
      %v2625 = vshrl.u32 %v2564, 16
      %v2627 = vrot.slane %v2625, 7
      %v2628 = vshll.u32 %v2564, 16
      %v2630 = vor.u32 %v2627, %v2628
      %v2631 = vsel %vm2581, %v2623, %v2630
      %v2632 = vrot.slane %v2627, 4
      %v2634 = vshrl.u32 %v2565, 16
      %v2636 = vrot.slane %v2634, 7
      %v2637 = vshll.u32 %v2565, 16
      %v2639 = vor.u32 %v2636, %v2637
      %v2640 = vrot.slane %v2636, 4
      %v2642 = vshrl.u32 %v2566, 16
      %v2644 = vrot.slane %v2642, 7
      %v2645 = vshll.u32 %v2566, 16
      %v2647 = vor.u32 %v2644, %v2645
      %v2648 = vsel %vm2581, %v2640, %v2647
      %v2649 = vrot.slane %v2644, 4
      %v2651 = vshrl.u32 %v2567, 16
      %v2653 = vrot.slane %v2651, 7
      %v2654 = vshll.u32 %v2567, 16
      %v2656 = vor.u32 %v2653, %v2654
      %v2657 = vrot.slane %v2653, 4
      %v2659 = vshrl.u32 %v2568, 16
      %v2661 = vrot.slane %v2659, 7
      %v2662 = vshll.u32 %v2568, 16
      %v2664 = vor.u32 %v2661, %v2662
      %v2665 = vsel %vm2581, %v2657, %v2664
      %v2666 = vrot.slane %v2661, 4
      %v2668 = vshrl.u32 %v2569, 16
      %v2670 = vrot.slane %v2668, 7
      %v2671 = vshll.u32 %v2569, 16
      %v2673 = vor.u32 %v2670, %v2671
      %v2674 = vrot.slane %v2670, 4
      %v2676 = vshrl.u32 %v2570, 16
      %v2678 = vrot.slane %v2676, 7
      %v2679 = vshll.u32 %v2570, 16
      %v2681 = vor.u32 %v2678, %v2679
      %v2682 = vsel %vm2581, %v2674, %v2681
      %v2683 = vrot.slane %v2678, 4
      %v2685 = vshrl.u32 %v2571, 16
      %v2687 = vrot.slane %v2685, 7
      %v2688 = vshll.u32 %v2571, 16
      %v2690 = vor.u32 %v2687, %v2688
      %v2691 = vrot.slane %v2687, 4
      %v2693 = vshrl.u32 %v2572, 16
      %v2695 = vrot.slane %v2693, 7
      %v2696 = vshll.u32 %v2572, 16
      %v2698 = vor.u32 %v2695, %v2696
      %v2699 = vsel %vm2581, %v2691, %v2698
      %v2700 = vrot.slane %v2695, 4
      %v2702 = vshrl.u32 %v2573, 16
      %v2704 = vrot.slane %v2702, 7
      %v2705 = vshll.u32 %v2573, 16
      %v2707 = vor.u32 %v2704, %v2705
      %v2708 = vrot.slane %v2704, 4
      %v2710 = vshrl.u32 %v2574, 16
      %v2712 = vrot.slane %v2710, 7
      %v2713 = vshll.u32 %v2574, 16
      %v2715 = vor.u32 %v2712, %v2713
      %v2716 = vsel %vm2581, %v2708, %v2715
      %v2717 = vrot.slane %v2712, 4
      %v2719 = vshrl.u32 %v2575, 16
      %v2721 = vrot.slane %v2719, 7
      %v2722 = vshll.u32 %v2575, 16
      %v2724 = vor.u32 %v2721, %v2722
      %v2725 = vrot.slane %v2721, 4
      %v2727 = vshrl.u32 %v2576, 16
      %v2729 = vrot.slane %v2727, 7
      %v2730 = vshll.u32 %v2576, 16
      %v2732 = vor.u32 %v2729, %v2730
      %v2733 = vsel %vm2581, %v2725, %v2732
      %v2734 = vrot.slane %v2729, 4
      %v2736 = vshrl.u32 %v2577, 16
      %v2738 = vrot.slane %v2736, 7
      %v2739 = vshll.u32 %v2577, 16
      %v2741 = vor.u32 %v2738, %v2739
      %v2742 = vrot.slane %v2738, 4
      %v2744 = vshrl.u32 %v2578, 16
      %v2746 = vrot.slane %v2744, 7
      %v2747 = vshll.u32 %v2578, 16
      %v2749 = vor.u32 %v2746, %v2747
      %v2750 = vsel %vm2581, %v2742, %v2749
      %v2751 = vrot.slane %v2746, 4
      %vm2782 = vcmask 60416
      %vm2783 = vsmask.f32 7938
      %vm2784 = vmand %vm2782, %vm2783
      %v2785 = vld [vmem:[#allocation2] sm:$0xf]
      %v2786 = vsel %vm2784, %v2588, %v2785
      %2787 = vst [vmem:[#allocation2] sm:$0xf] %v2786
      %2788 = vst.msk [vmem:[#allocation2 + $0x4] sm:$0xf] %vm275, %v2597
      %vm2789 = vcmask 57344
      %vm2790 = vmand %vm2789, %vm2579
      %v2791 = vld [vmem:[#allocation2 + $0x8] sm:$0x1]
      %v2792 = vsel %vm2790, %v2598, %v2791
      %2793 = vst [vmem:[#allocation2 + $0x8] sm:$0x1] %v2792
      %v2794 = vld [vmem:[#allocation2 + $0xc] sm:$0xf]
      %v2795 = vsel %vm2784, %v2605, %v2794
      %2796 = vst [vmem:[#allocation2 + $0xc] sm:$0xf] %v2795
      %2797 = vst.msk [vmem:[#allocation2 + $0x10] sm:$0xf] %vm275, %v2614
      %v2798 = vld [vmem:[#allocation2 + $0x14] sm:$0x1]
      %v2799 = vsel %vm2790, %v2615, %v2798
      %2800 = vst [vmem:[#allocation2 + $0x14] sm:$0x1] %v2799
      %v2801 = vld [vmem:[#allocation2 + $0x18] sm:$0xf]
      %v2802 = vsel %vm2784, %v2622, %v2801
      %2803 = vst [vmem:[#allocation2 + $0x18] sm:$0xf] %v2802
      %2804 = vst.msk [vmem:[#allocation2 + $0x1c] sm:$0xf] %vm275, %v2631
      %v2805 = vld [vmem:[#allocation2 + $0x20] sm:$0x1]
      %v2806 = vsel %vm2790, %v2632, %v2805
      %2807 = vst [vmem:[#allocation2 + $0x20] sm:$0x1] %v2806
      %v2808 = vld [vmem:[#allocation2 + $0x24] sm:$0xf]
      %v2809 = vsel %vm2784, %v2639, %v2808
      %2810 = vst [vmem:[#allocation2 + $0x24] sm:$0xf] %v2809
      %2811 = vst.msk [vmem:[#allocation2 + $0x28] sm:$0xf] %vm275, %v2648
      %v2812 = vld [vmem:[#allocation2 + $0x2c] sm:$0x1]
      %v2813 = vsel %vm2790, %v2649, %v2812
      %2814 = vst [vmem:[#allocation2 + $0x2c] sm:$0x1] %v2813
      %v2815 = vld [vmem:[#allocation2 + $0x30] sm:$0xf]
      %v2816 = vsel %vm2784, %v2656, %v2815
      %2817 = vst [vmem:[#allocation2 + $0x30] sm:$0xf] %v2816
      %2818 = vst.msk [vmem:[#allocation2 + $0x34] sm:$0xf] %vm275, %v2665
      %v2819 = vld [vmem:[#allocation2 + $0x38] sm:$0x1]
      %v2820 = vsel %vm2790, %v2666, %v2819
      %2821 = vst [vmem:[#allocation2 + $0x38] sm:$0x1] %v2820
      %v2822 = vld [vmem:[#allocation2 + $0x3c] sm:$0xf]
      %v2823 = vsel %vm2784, %v2673, %v2822
      %2824 = vst [vmem:[#allocation2 + $0x3c] sm:$0xf] %v2823
      %2825 = vst.msk [vmem:[#allocation2 + $0x40] sm:$0xf] %vm275, %v2682
      %v2826 = vld [vmem:[#allocation2 + $0x44] sm:$0x1]
      %v2827 = vsel %vm2790, %v2683, %v2826
      %2828 = vst [vmem:[#allocation2 + $0x44] sm:$0x1] %v2827
      %v2829 = vld [vmem:[#allocation2 + $0x48] sm:$0xf]
      %v2830 = vsel %vm2784, %v2690, %v2829
      %2831 = vst [vmem:[#allocation2 + $0x48] sm:$0xf] %v2830
      %2832 = vst.msk [vmem:[#allocation2 + $0x4c] sm:$0xf] %vm275, %v2699
      %v2833 = vld [vmem:[#allocation2 + $0x50] sm:$0x1]
      %v2834 = vsel %vm2790, %v2700, %v2833
      %2835 = vst [vmem:[#allocation2 + $0x50] sm:$0x1] %v2834
      %v2836 = vld [vmem:[#allocation2 + $0x54] sm:$0xf]
      %v2837 = vsel %vm2784, %v2707, %v2836
      %2838 = vst [vmem:[#allocation2 + $0x54] sm:$0xf] %v2837
      %2839 = vst.msk [vmem:[#allocation2 + $0x58] sm:$0xf] %vm275, %v2716
      %v2840 = vld [vmem:[#allocation2 + $0x5c] sm:$0x1]
      %v2841 = vsel %vm2790, %v2717, %v2840
      %2842 = vst [vmem:[#allocation2 + $0x5c] sm:$0x1] %v2841
      %v2843 = vld [vmem:[#allocation2 + $0x60] sm:$0xf]
      %v2844 = vsel %vm2784, %v2724, %v2843
      %2845 = vst [vmem:[#allocation2 + $0x60] sm:$0xf] %v2844
      %2846 = vst.msk [vmem:[#allocation2 + $0x64] sm:$0xf] %vm275, %v2733
      %v2847 = vld [vmem:[#allocation2 + $0x68] sm:$0x1]
      %v2848 = vsel %vm2790, %v2734, %v2847
      %2849 = vst [vmem:[#allocation2 + $0x68] sm:$0x1] %v2848
      %v2850 = vld [vmem:[#allocation2 + $0x6c] sm:$0xf]
      %v2851 = vsel %vm2784, %v2741, %v2850
      %2852 = vst [vmem:[#allocation2 + $0x6c] sm:$0xf] %v2851
      %2853 = vst.msk [vmem:[#allocation2 + $0x70] sm:$0xf] %vm275, %v2750
      %v2854 = vld [vmem:[#allocation2 + $0x74] sm:$0x1]
      %v2855 = vsel %vm2790, %v2751, %v2854
      %2856 = vst [vmem:[#allocation2 + $0x74] sm:$0x1] %v2855
      %v2857 = vld [vmem:[#allocation2] sm:$0x1]
      %v2858 = vsel %vm2790, 0, %v2857
      %2859 = vst [vmem:[#allocation2] sm:$0x1] %v2858
      %v2860 = vld [vmem:[#allocation2 + $0xc] sm:$0x1]
      %v2861 = vsel %vm2790, 0, %v2860
      %2862 = vst [vmem:[#allocation2 + $0xc] sm:$0x1] %v2861
      %v2863 = vld [vmem:[#allocation2 + $0x18] sm:$0x1]
      %v2864 = vsel %vm2790, 0, %v2863
      %2865 = vst [vmem:[#allocation2 + $0x18] sm:$0x1] %v2864
      %v2866 = vld [vmem:[#allocation2 + $0x24] sm:$0x1]
      %v2867 = vsel %vm2790, 0, %v2866
      %2868 = vst [vmem:[#allocation2 + $0x24] sm:$0x1] %v2867
      %v2869 = vld [vmem:[#allocation2 + $0x30] sm:$0x1]
      %v2870 = vsel %vm2790, 0, %v2869
      %2871 = vst [vmem:[#allocation2 + $0x30] sm:$0x1] %v2870
      %v2872 = vld [vmem:[#allocation2 + $0x3c] sm:$0x1]
      %v2873 = vsel %vm2790, 0, %v2872
      %2874 = vst [vmem:[#allocation2 + $0x3c] sm:$0x1] %v2873
      %v2875 = vld [vmem:[#allocation2 + $0x48] sm:$0x1]
      %v2876 = vsel %vm2790, 0, %v2875
      %2877 = vst [vmem:[#allocation2 + $0x48] sm:$0x1] %v2876
      %v2878 = vld [vmem:[#allocation2 + $0x54] sm:$0x1]
      %v2879 = vsel %vm2790, 0, %v2878
      %2880 = vst [vmem:[#allocation2 + $0x54] sm:$0x1] %v2879
      %v2881 = vld [vmem:[#allocation2 + $0x60] sm:$0x1]
      %v2882 = vsel %vm2790, 0, %v2881
      %2883 = vst [vmem:[#allocation2 + $0x60] sm:$0x1] %v2882
      %v2884 = vld [vmem:[#allocation2 + $0x6c] sm:$0x1]
      %v2885 = vsel %vm2790, 0, %v2884
      %2886 = vst [vmem:[#allocation2 + $0x6c] sm:$0x1] %v2885
      %vm2887 = vmand %vm2789, %vm2783
      %v2888 = vld [vmem:[#allocation2 + $0x8] sm:$0x1]
      %v2889 = vsel %vm2887, 0, %v2888
      %2890 = vst [vmem:[#allocation2 + $0x8] sm:$0x1] %v2889
      %v2891 = vld [vmem:[#allocation2 + $0x14] sm:$0x1]
      %v2892 = vsel %vm2887, 0, %v2891
      %2893 = vst [vmem:[#allocation2 + $0x14] sm:$0x1] %v2892
      %v2894 = vld [vmem:[#allocation2 + $0x20] sm:$0x1]
      %v2895 = vsel %vm2887, 0, %v2894
      %2896 = vst [vmem:[#allocation2 + $0x20] sm:$0x1] %v2895
      %v2897 = vld [vmem:[#allocation2 + $0x2c] sm:$0x1]
      %v2898 = vsel %vm2887, 0, %v2897
      %2899 = vst [vmem:[#allocation2 + $0x2c] sm:$0x1] %v2898
      %v2900 = vld [vmem:[#allocation2 + $0x38] sm:$0x1]
      %v2901 = vsel %vm2887, 0, %v2900
      %2902 = vst [vmem:[#allocation2 + $0x38] sm:$0x1] %v2901
      %v2903 = vld [vmem:[#allocation2 + $0x44] sm:$0x1]
      %v2904 = vsel %vm2887, 0, %v2903
      %2905 = vst [vmem:[#allocation2 + $0x44] sm:$0x1] %v2904
      %v2906 = vld [vmem:[#allocation2 + $0x50] sm:$0x1]
      %v2907 = vsel %vm2887, 0, %v2906
      %2908 = vst [vmem:[#allocation2 + $0x50] sm:$0x1] %v2907
      %v2909 = vld [vmem:[#allocation2 + $0x5c] sm:$0x1]
      %v2910 = vsel %vm2887, 0, %v2909
      %2911 = vst [vmem:[#allocation2 + $0x5c] sm:$0x1] %v2910
      %v2912 = vld [vmem:[#allocation2 + $0x68] sm:$0x1]
      %v2913 = vsel %vm2887, 0, %v2912
      %2914 = vst [vmem:[#allocation2 + $0x68] sm:$0x1] %v2913
      %v2915 = vld [vmem:[#allocation2 + $0x74] sm:$0x1]
      %v2916 = vsel %vm2887, 0, %v2915
      %2917 = vst [vmem:[#allocation2 + $0x74] sm:$0x1] %v2916
      %p2918 = scmp.eq.s32.totalorder %s21, 0
      // Predicated region
      $region41: #{tpu_custom_call.1} parent=39 // pred_check
        %p2919 = pneg %p2918
      $region42: #{tpu_custom_call.1} parent=39 // pred_check_branch
        %2921 = sbr.rel (%p2919) target = $region44
      $region43: #{tpu_custom_call.1} parent=39 // pred_region
        %2922 = vst.msk [vmem:[#allocation2] sm:$0xf] %vm275, 0
        %2923 = vst.msk [vmem:[#allocation2 + $0x4] sm:$0xf] %vm275, 0
        %vm2924 = vcmask 57344
        %2925 = vst.msk [vmem:[#allocation2 + $0x8] sm:$0x1] %vm2924, 0
      $region44: #{tpu_custom_call.1} parent=39 // pred_fallthru
        _
      %p2926 = scmp.eq.s32.totalorder %s21, 1
      // Predicated region
      $region45: #{tpu_custom_call.1} parent=39 // pred_check
        %p2927 = pneg %p2926
      $region46: #{tpu_custom_call.1} parent=39 // pred_check_branch
        %2929 = sbr.rel (%p2927) target = $region48
      $region47: #{tpu_custom_call.1} parent=39 // pred_region
        %s2930 = scalar_lea.vmem [#allocation2], 108
        %2931 = vst.msk [vmem:[%s2930] sm:$0xf] %vm275, 0
        %2932 = vst.msk [vmem:[%s2930 + $0x4] sm:$0xf] %vm275, 0
        %vm2933 = vcmask 57344
        %2934 = vst.msk [vmem:[%s2930 + $0x8] sm:$0x1] %vm2933, 0
      $region48: #{tpu_custom_call.1} parent=39 // pred_fallthru
        _
      %v2935 = vld [vmem:[#allocation2] sm:$0xf]
      %v2936 = vld [vmem:[#allocation2 + $0x4] sm:$0xf]
      %v2937 = vld [vmem:[#allocation2 + $0xc] sm:$0xf]
      %v2938 = vld [vmem:[#allocation2 + $0x10] sm:$0xf]
      %v2939 = vld [vmem:[#allocation2 + $0x18] sm:$0xf]
      %v2940 = vld [vmem:[#allocation2 + $0x1c] sm:$0xf]
      %v2941 = vld [vmem:[#allocation2 + $0x24] sm:$0xf]
      %v2942 = vld [vmem:[#allocation2 + $0x28] sm:$0xf]
      %v2943 = vld [vmem:[#allocation2 + $0x30] sm:$0xf]
      %v2944 = vld [vmem:[#allocation2 + $0x34] sm:$0xf]
      %v2945 = vld [vmem:[#allocation2 + $0x3c] sm:$0xf]
      %v2946 = vld [vmem:[#allocation2 + $0x40] sm:$0xf]
      %v2947 = vld [vmem:[#allocation2 + $0x48] sm:$0xf]
      %v2948 = vld [vmem:[#allocation2 + $0x4c] sm:$0xf]
      %v2949 = vld [vmem:[#allocation2 + $0x54] sm:$0xf]
      %v2950 = vld [vmem:[#allocation2 + $0x58] sm:$0xf]
      %2951 = vst.msk [vmem:[#allocation3] sm:$0xf] %vm275, %v2935
      %2952 = vst.msk [vmem:[#allocation3 + $0x4] sm:$0xf] %vm275, %v2936
      %2953 = vst.msk [vmem:[#allocation3 + $0x8] sm:$0xf] %vm275, %v2937
      %2954 = vst.msk [vmem:[#allocation3 + $0xc] sm:$0xf] %vm275, %v2938
      %2955 = vst.msk [vmem:[#allocation3 + $0x10] sm:$0xf] %vm275, %v2939
      %2956 = vst.msk [vmem:[#allocation3 + $0x14] sm:$0xf] %vm275, %v2940
      %2957 = vst.msk [vmem:[#allocation3 + $0x18] sm:$0xf] %vm275, %v2941
      %2958 = vst.msk [vmem:[#allocation3 + $0x1c] sm:$0xf] %vm275, %v2942
      %2959 = vst.msk [vmem:[#allocation3 + $0x20] sm:$0xf] %vm275, %v2943
      %2960 = vst.msk [vmem:[#allocation3 + $0x24] sm:$0xf] %vm275, %v2944
      %2961 = vst.msk [vmem:[#allocation3 + $0x28] sm:$0xf] %vm275, %v2945
      %2962 = vst.msk [vmem:[#allocation3 + $0x2c] sm:$0xf] %vm275, %v2946
      %2963 = vst.msk [vmem:[#allocation3 + $0x30] sm:$0xf] %vm275, %v2947
      %2964 = vst.msk [vmem:[#allocation3 + $0x34] sm:$0xf] %vm275, %v2948
      %2965 = vst.msk [vmem:[#allocation3 + $0x38] sm:$0xf] %vm275, %v2949
      %2966 = vst.msk [vmem:[#allocation3 + $0x3c] sm:$0xf] %vm275, %v2950
      %v2967 = vld [vmem:[#allocation2] sm:$0xf]
      %v2968 = vld [vmem:[#allocation2 + $0x4] sm:$0xf]
      %v2969 = vld [vmem:[#allocation2 + $0x8] sm:$0x1]
      %v2970 = vld [vmem:[#allocation2 + $0xc] sm:$0xf]
      %v2971 = vld [vmem:[#allocation2 + $0x10] sm:$0xf]
      %v2972 = vld [vmem:[#allocation2 + $0x14] sm:$0x1]
      %v2973 = vld [vmem:[#allocation2 + $0x18] sm:$0xf]
      %v2974 = vld [vmem:[#allocation2 + $0x1c] sm:$0xf]
      %v2975 = vld [vmem:[#allocation2 + $0x20] sm:$0x1]
      %v2976 = vld [vmem:[#allocation2 + $0x24] sm:$0xf]
      %v2977 = vld [vmem:[#allocation2 + $0x28] sm:$0xf]
      %v2978 = vld [vmem:[#allocation2 + $0x2c] sm:$0x1]
      %v2979 = vld [vmem:[#allocation2 + $0x30] sm:$0xf]
      %v2980 = vld [vmem:[#allocation2 + $0x34] sm:$0xf]
      %v2981 = vld [vmem:[#allocation2 + $0x38] sm:$0x1]
      %v2982 = vld [vmem:[#allocation2 + $0x3c] sm:$0xf]
      %v2983 = vld [vmem:[#allocation2 + $0x40] sm:$0xf]
      %v2984 = vld [vmem:[#allocation2 + $0x44] sm:$0x1]
      %v2985 = vld [vmem:[#allocation2 + $0x48] sm:$0xf]
      %v2986 = vld [vmem:[#allocation2 + $0x4c] sm:$0xf]
      %v2987 = vld [vmem:[#allocation2 + $0x50] sm:$0x1]
      %v2988 = vld [vmem:[#allocation2 + $0x54] sm:$0xf]
      %v2989 = vld [vmem:[#allocation2 + $0x58] sm:$0xf]
      %v2990 = vld [vmem:[#allocation2 + $0x5c] sm:$0x1]
      %v2992 = vshrl.u32 %v2967, 16
      %v2994 = vrot.slane %v2992, 4
      %v2995 = vshll.u32 %v2967, 16
      %v2997 = vrot.slane %v2995, 5
      %v2998 = vor.u32 %v2994, %v2997
      %v2999 = vrot.slane %v2998, 4
      %v3001 = vshll.u32 %v2968, 16
      %v3003 = vrot.slane %v3001, 5
      %v3004 = vsel %vm328, %v2999, %v3003
      %v3005 = vshrl.u32 %v2968, 16
      %v3007 = vrot.slane %v3005, 4
      %v3008 = vor.u32 %v3007, %v3003
      %v3009 = vrot.slane %v3008, 4
      %v3011 = vshll.u32 %v2969, 16
      %v3013 = vrot.slane %v3011, 5
      %v3014 = vsel %vm328, %v3009, %v3013
      %v3016 = vshrl.u32 %v2970, 16
      %v3018 = vrot.slane %v3016, 4
      %v3019 = vshll.u32 %v2970, 16
      %v3021 = vrot.slane %v3019, 5
      %v3022 = vor.u32 %v3018, %v3021
      %v3023 = vrot.slane %v3022, 4
      %v3025 = vshll.u32 %v2971, 16
      %v3027 = vrot.slane %v3025, 5
      %v3028 = vsel %vm328, %v3023, %v3027
      %v3029 = vshrl.u32 %v2971, 16
      %v3031 = vrot.slane %v3029, 4
      %v3032 = vor.u32 %v3031, %v3027
      %v3033 = vrot.slane %v3032, 4
      %v3035 = vshll.u32 %v2972, 16
      %v3037 = vrot.slane %v3035, 5
      %v3038 = vsel %vm328, %v3033, %v3037
      %v3040 = vshrl.u32 %v2973, 16
      %v3042 = vrot.slane %v3040, 4
      %v3043 = vshll.u32 %v2973, 16
      %v3045 = vrot.slane %v3043, 5
      %v3046 = vor.u32 %v3042, %v3045
      %v3047 = vrot.slane %v3046, 4
      %v3049 = vshll.u32 %v2974, 16
      %v3051 = vrot.slane %v3049, 5
      %v3052 = vsel %vm328, %v3047, %v3051
      %v3053 = vshrl.u32 %v2974, 16
      %v3055 = vrot.slane %v3053, 4
      %v3056 = vor.u32 %v3055, %v3051
      %v3057 = vrot.slane %v3056, 4
      %v3059 = vshll.u32 %v2975, 16
      %v3061 = vrot.slane %v3059, 5
      %v3062 = vsel %vm328, %v3057, %v3061
      %v3064 = vshrl.u32 %v2976, 16
      %v3066 = vrot.slane %v3064, 4
      %v3067 = vshll.u32 %v2976, 16
      %v3069 = vrot.slane %v3067, 5
      %v3070 = vor.u32 %v3066, %v3069
      %v3071 = vrot.slane %v3070, 4
      %v3073 = vshll.u32 %v2977, 16
      %v3075 = vrot.slane %v3073, 5
      %v3076 = vsel %vm328, %v3071, %v3075
      %v3077 = vshrl.u32 %v2977, 16
      %v3079 = vrot.slane %v3077, 4
      %v3080 = vor.u32 %v3079, %v3075
      %v3081 = vrot.slane %v3080, 4
      %v3083 = vshll.u32 %v2978, 16
      %v3085 = vrot.slane %v3083, 5
      %v3086 = vsel %vm328, %v3081, %v3085
      %v3088 = vshrl.u32 %v2979, 16
      %v3090 = vrot.slane %v3088, 4
      %v3091 = vshll.u32 %v2979, 16
      %v3093 = vrot.slane %v3091, 5
      %v3094 = vor.u32 %v3090, %v3093
      %v3095 = vrot.slane %v3094, 4
      %v3097 = vshll.u32 %v2980, 16
      %v3099 = vrot.slane %v3097, 5
      %v3100 = vsel %vm328, %v3095, %v3099
      %v3101 = vshrl.u32 %v2980, 16
      %v3103 = vrot.slane %v3101, 4
      %v3104 = vor.u32 %v3103, %v3099
      %v3105 = vrot.slane %v3104, 4
      %v3107 = vshll.u32 %v2981, 16
      %v3109 = vrot.slane %v3107, 5
      %v3110 = vsel %vm328, %v3105, %v3109
      %v3112 = vshrl.u32 %v2982, 16
      %v3114 = vrot.slane %v3112, 4
      %v3115 = vshll.u32 %v2982, 16
      %v3117 = vrot.slane %v3115, 5
      %v3118 = vor.u32 %v3114, %v3117
      %v3119 = vrot.slane %v3118, 4
      %v3121 = vshll.u32 %v2983, 16
      %v3123 = vrot.slane %v3121, 5
      %v3124 = vsel %vm328, %v3119, %v3123
      %v3125 = vshrl.u32 %v2983, 16
      %v3127 = vrot.slane %v3125, 4
      %v3128 = vor.u32 %v3127, %v3123
      %v3129 = vrot.slane %v3128, 4
      %v3131 = vshll.u32 %v2984, 16
      %v3133 = vrot.slane %v3131, 5
      %v3134 = vsel %vm328, %v3129, %v3133
      %v3136 = vshrl.u32 %v2985, 16
      %v3138 = vrot.slane %v3136, 4
      %v3139 = vshll.u32 %v2985, 16
      %v3141 = vrot.slane %v3139, 5
      %v3142 = vor.u32 %v3138, %v3141
      %v3143 = vrot.slane %v3142, 4
      %v3145 = vshll.u32 %v2986, 16
      %v3147 = vrot.slane %v3145, 5
      %v3148 = vsel %vm328, %v3143, %v3147
      %v3149 = vshrl.u32 %v2986, 16
      %v3151 = vrot.slane %v3149, 4
      %v3152 = vor.u32 %v3151, %v3147
      %v3153 = vrot.slane %v3152, 4
      %v3155 = vshll.u32 %v2987, 16
      %v3157 = vrot.slane %v3155, 5
      %v3158 = vsel %vm328, %v3153, %v3157
      %v3160 = vshrl.u32 %v2988, 16
      %v3162 = vrot.slane %v3160, 4
      %v3163 = vshll.u32 %v2988, 16
      %v3165 = vrot.slane %v3163, 5
      %v3166 = vor.u32 %v3162, %v3165
      %v3167 = vrot.slane %v3166, 4
      %v3169 = vshll.u32 %v2989, 16
      %v3171 = vrot.slane %v3169, 5
      %v3172 = vsel %vm328, %v3167, %v3171
      %v3173 = vshrl.u32 %v2989, 16
      %v3175 = vrot.slane %v3173, 4
      %v3176 = vor.u32 %v3175, %v3171
      %v3177 = vrot.slane %v3176, 4
      %v3179 = vshll.u32 %v2990, 16
      %v3181 = vrot.slane %v3179, 5
      %v3182 = vsel %vm328, %v3177, %v3181
      %3183 = vrot.lane.b32.xlu0 %v3004, 8
      %v3184 = vpop.permute.xlu0 %3183
      %3185 = vrot.lane.b32.xlu0 %v3014, 8
      %v3186 = vpop.permute.xlu0 %3185
      %3187 = vrot.lane.b32.xlu0 %v3028, 8
      %v3188 = vpop.permute.xlu0 %3187
      %3189 = vrot.lane.b32.xlu0 %v3038, 8
      %v3190 = vpop.permute.xlu0 %3189
      %3191 = vrot.lane.b32.xlu0 %v3052, 8
      %v3192 = vpop.permute.xlu0 %3191
      %3193 = vrot.lane.b32.xlu0 %v3062, 8
      %v3194 = vpop.permute.xlu0 %3193
      %3195 = vrot.lane.b32.xlu0 %v3076, 8
      %v3196 = vpop.permute.xlu0 %3195
      %3197 = vrot.lane.b32.xlu0 %v3086, 8
      %v3198 = vpop.permute.xlu0 %3197
      %3199 = vrot.lane.b32.xlu0 %v3100, 8
      %v3200 = vpop.permute.xlu0 %3199
      %3201 = vrot.lane.b32.xlu0 %v3110, 8
      %v3202 = vpop.permute.xlu0 %3201
      %3203 = vrot.lane.b32.xlu0 %v3124, 8
      %v3204 = vpop.permute.xlu0 %3203
      %3205 = vrot.lane.b32.xlu0 %v3134, 8
      %v3206 = vpop.permute.xlu0 %3205
      %3207 = vrot.lane.b32.xlu0 %v3148, 8
      %v3208 = vpop.permute.xlu0 %3207
      %3209 = vrot.lane.b32.xlu0 %v3158, 8
      %v3210 = vpop.permute.xlu0 %3209
      %3211 = vrot.lane.b32.xlu0 %v3172, 8
      %v3212 = vpop.permute.xlu0 %3211
      %3213 = vrot.lane.b32.xlu0 %v3182, 8
      %v3214 = vpop.permute.xlu0 %3213
      %3231 = vst.msk [vmem:[#allocation3] sm:$0xf] %vm629, %v3184
      %3232 = vst.msk [vmem:[#allocation3 + $0x4] sm:$0xf] %vm629, %v3186
      %3233 = vst.msk [vmem:[#allocation3 + $0x8] sm:$0xf] %vm629, %v3188
      %3234 = vst.msk [vmem:[#allocation3 + $0xc] sm:$0xf] %vm629, %v3190
      %3235 = vst.msk [vmem:[#allocation3 + $0x10] sm:$0xf] %vm629, %v3192
      %3236 = vst.msk [vmem:[#allocation3 + $0x14] sm:$0xf] %vm629, %v3194
      %3237 = vst.msk [vmem:[#allocation3 + $0x18] sm:$0xf] %vm629, %v3196
      %3238 = vst.msk [vmem:[#allocation3 + $0x1c] sm:$0xf] %vm629, %v3198
      %3239 = vst.msk [vmem:[#allocation3 + $0x20] sm:$0xf] %vm629, %v3200
      %3240 = vst.msk [vmem:[#allocation3 + $0x24] sm:$0xf] %vm629, %v3202
      %3241 = vst.msk [vmem:[#allocation3 + $0x28] sm:$0xf] %vm629, %v3204
      %3242 = vst.msk [vmem:[#allocation3 + $0x2c] sm:$0xf] %vm629, %v3206
      %3243 = vst.msk [vmem:[#allocation3 + $0x30] sm:$0xf] %vm629, %v3208
      %3244 = vst.msk [vmem:[#allocation3 + $0x34] sm:$0xf] %vm629, %v3210
      %3245 = vst.msk [vmem:[#allocation3 + $0x38] sm:$0xf] %vm629, %v3212
      %3246 = vst.msk [vmem:[#allocation3 + $0x3c] sm:$0xf] %vm629, %v3214
      %v3247 = vld [vmem:[#allocation2] sm:$0xe]
      %v3248 = vld [vmem:[#allocation2 + $0x4] sm:$0xf]
      %v3249 = vld [vmem:[#allocation2 + $0x8] sm:$0x1]
      %v3250 = vld [vmem:[#allocation2 + $0xc] sm:$0xe]
      %v3251 = vld [vmem:[#allocation2 + $0x10] sm:$0xf]
      %v3252 = vld [vmem:[#allocation2 + $0x14] sm:$0x1]
      %v3253 = vld [vmem:[#allocation2 + $0x18] sm:$0xe]
      %v3254 = vld [vmem:[#allocation2 + $0x1c] sm:$0xf]
      %v3255 = vld [vmem:[#allocation2 + $0x20] sm:$0x1]
      %v3256 = vld [vmem:[#allocation2 + $0x24] sm:$0xe]
      %v3257 = vld [vmem:[#allocation2 + $0x28] sm:$0xf]
      %v3258 = vld [vmem:[#allocation2 + $0x2c] sm:$0x1]
      %v3259 = vld [vmem:[#allocation2 + $0x30] sm:$0xe]
      %v3260 = vld [vmem:[#allocation2 + $0x34] sm:$0xf]
      %v3261 = vld [vmem:[#allocation2 + $0x38] sm:$0x1]
      %v3262 = vld [vmem:[#allocation2 + $0x3c] sm:$0xe]
      %v3263 = vld [vmem:[#allocation2 + $0x40] sm:$0xf]
      %v3264 = vld [vmem:[#allocation2 + $0x44] sm:$0x1]
      %v3265 = vld [vmem:[#allocation2 + $0x48] sm:$0xe]
      %v3266 = vld [vmem:[#allocation2 + $0x4c] sm:$0xf]
      %v3267 = vld [vmem:[#allocation2 + $0x50] sm:$0x1]
      %v3268 = vld [vmem:[#allocation2 + $0x54] sm:$0xe]
      %v3269 = vld [vmem:[#allocation2 + $0x58] sm:$0xf]
      %v3270 = vld [vmem:[#allocation2 + $0x5c] sm:$0x1]
      %v3295 = vrot.slane %v3247, 5
      %v3296 = vrot.slane %v3295, 4
      %v3297 = vrot.slane %v3248, 5
      %v3298 = vsel %vm712, %v3296, %v3297
      %v3299 = vrot.slane %v3297, 4
      %v3300 = vrot.slane %v3249, 5
      %v3301 = vsel %vm712, %v3299, %v3300
      %v3302 = vrot.slane %v3250, 5
      %v3303 = vrot.slane %v3302, 4
      %v3304 = vrot.slane %v3251, 5
      %v3305 = vsel %vm712, %v3303, %v3304
      %v3306 = vrot.slane %v3304, 4
      %v3307 = vrot.slane %v3252, 5
      %v3308 = vsel %vm712, %v3306, %v3307
      %v3309 = vrot.slane %v3253, 5
      %v3310 = vrot.slane %v3309, 4
      %v3311 = vrot.slane %v3254, 5
      %v3312 = vsel %vm712, %v3310, %v3311
      %v3313 = vrot.slane %v3311, 4
      %v3314 = vrot.slane %v3255, 5
      %v3315 = vsel %vm712, %v3313, %v3314
      %v3316 = vrot.slane %v3256, 5
      %v3317 = vrot.slane %v3316, 4
      %v3318 = vrot.slane %v3257, 5
      %v3319 = vsel %vm712, %v3317, %v3318
      %v3320 = vrot.slane %v3318, 4
      %v3321 = vrot.slane %v3258, 5
      %v3322 = vsel %vm712, %v3320, %v3321
      %v3323 = vrot.slane %v3259, 5
      %v3324 = vrot.slane %v3323, 4
      %v3325 = vrot.slane %v3260, 5
      %v3326 = vsel %vm712, %v3324, %v3325
      %v3327 = vrot.slane %v3325, 4
      %v3328 = vrot.slane %v3261, 5
      %v3329 = vsel %vm712, %v3327, %v3328
      %v3330 = vrot.slane %v3262, 5
      %v3331 = vrot.slane %v3330, 4
      %v3332 = vrot.slane %v3263, 5
      %v3333 = vsel %vm712, %v3331, %v3332
      %v3334 = vrot.slane %v3332, 4
      %v3335 = vrot.slane %v3264, 5
      %v3336 = vsel %vm712, %v3334, %v3335
      %v3337 = vrot.slane %v3265, 5
      %v3338 = vrot.slane %v3337, 4
      %v3339 = vrot.slane %v3266, 5
      %v3340 = vsel %vm712, %v3338, %v3339
      %v3341 = vrot.slane %v3339, 4
      %v3342 = vrot.slane %v3267, 5
      %v3343 = vsel %vm712, %v3341, %v3342
      %v3344 = vrot.slane %v3268, 5
      %v3345 = vrot.slane %v3344, 4
      %v3346 = vrot.slane %v3269, 5
      %v3347 = vsel %vm712, %v3345, %v3346
      %v3348 = vrot.slane %v3346, 4
      %v3349 = vrot.slane %v3270, 5
      %v3350 = vsel %vm712, %v3348, %v3349
      %3351 = vrot.lane.b32.xlu0 %v3298, 16
      %v3352 = vpop.permute.xlu0 %3351
      %3353 = vrot.lane.b32.xlu0 %v3301, 16
      %v3354 = vpop.permute.xlu0 %3353
      %3355 = vrot.lane.b32.xlu0 %v3305, 16
      %v3356 = vpop.permute.xlu0 %3355
      %3357 = vrot.lane.b32.xlu0 %v3308, 16
      %v3358 = vpop.permute.xlu0 %3357
      %3359 = vrot.lane.b32.xlu0 %v3312, 16
      %v3360 = vpop.permute.xlu0 %3359
      %3361 = vrot.lane.b32.xlu0 %v3315, 16
      %v3362 = vpop.permute.xlu0 %3361
      %3363 = vrot.lane.b32.xlu0 %v3319, 16
      %v3364 = vpop.permute.xlu0 %3363
      %3365 = vrot.lane.b32.xlu0 %v3322, 16
      %v3366 = vpop.permute.xlu0 %3365
      %3367 = vrot.lane.b32.xlu0 %v3326, 16
      %v3368 = vpop.permute.xlu0 %3367
      %3369 = vrot.lane.b32.xlu0 %v3329, 16
      %v3370 = vpop.permute.xlu0 %3369
      %3371 = vrot.lane.b32.xlu0 %v3333, 16
      %v3372 = vpop.permute.xlu0 %3371
      %3373 = vrot.lane.b32.xlu0 %v3336, 16
      %v3374 = vpop.permute.xlu0 %3373
      %3375 = vrot.lane.b32.xlu0 %v3340, 16
      %v3376 = vpop.permute.xlu0 %3375
      %3377 = vrot.lane.b32.xlu0 %v3343, 16
      %v3378 = vpop.permute.xlu0 %3377
      %3379 = vrot.lane.b32.xlu0 %v3347, 16
      %v3380 = vpop.permute.xlu0 %3379
      %3381 = vrot.lane.b32.xlu0 %v3350, 16
      %v3382 = vpop.permute.xlu0 %3381
      %3399 = vst.msk [vmem:[#allocation3] sm:$0xf] %vm843, %v3352
      %3400 = vst.msk [vmem:[#allocation3 + $0x4] sm:$0xf] %vm843, %v3354
      %3401 = vst.msk [vmem:[#allocation3 + $0x8] sm:$0xf] %vm843, %v3356
      %3402 = vst.msk [vmem:[#allocation3 + $0xc] sm:$0xf] %vm843, %v3358
      %3403 = vst.msk [vmem:[#allocation3 + $0x10] sm:$0xf] %vm843, %v3360
      %3404 = vst.msk [vmem:[#allocation3 + $0x14] sm:$0xf] %vm843, %v3362
      %3405 = vst.msk [vmem:[#allocation3 + $0x18] sm:$0xf] %vm843, %v3364
      %3406 = vst.msk [vmem:[#allocation3 + $0x1c] sm:$0xf] %vm843, %v3366
      %3407 = vst.msk [vmem:[#allocation3 + $0x20] sm:$0xf] %vm843, %v3368
      %3408 = vst.msk [vmem:[#allocation3 + $0x24] sm:$0xf] %vm843, %v3370
      %3409 = vst.msk [vmem:[#allocation3 + $0x28] sm:$0xf] %vm843, %v3372
      %3410 = vst.msk [vmem:[#allocation3 + $0x2c] sm:$0xf] %vm843, %v3374
      %3411 = vst.msk [vmem:[#allocation3 + $0x30] sm:$0xf] %vm843, %v3376
      %3412 = vst.msk [vmem:[#allocation3 + $0x34] sm:$0xf] %vm843, %v3378
      %3413 = vst.msk [vmem:[#allocation3 + $0x38] sm:$0xf] %vm843, %v3380
      %3414 = vst.msk [vmem:[#allocation3 + $0x3c] sm:$0xf] %vm843, %v3382
      %s3415 = scalar_lea.vmem [#allocation2], 12
      %v3416 = vld [vmem:[%s3415] sm:$0xf]
      %v3417 = vld [vmem:[%s3415 + $0x4] sm:$0xf]
      %v3418 = vld [vmem:[%s3415 + $0xc] sm:$0xf]
      %v3419 = vld [vmem:[%s3415 + $0x10] sm:$0xf]
      %v3420 = vld [vmem:[%s3415 + $0x18] sm:$0xf]
      %v3421 = vld [vmem:[%s3415 + $0x1c] sm:$0xf]
      %v3422 = vld [vmem:[%s3415 + $0x24] sm:$0xf]
      %v3423 = vld [vmem:[%s3415 + $0x28] sm:$0xf]
      %v3424 = vld [vmem:[%s3415 + $0x30] sm:$0xf]
      %v3425 = vld [vmem:[%s3415 + $0x34] sm:$0xf]
      %v3426 = vld [vmem:[%s3415 + $0x3c] sm:$0xf]
      %v3427 = vld [vmem:[%s3415 + $0x40] sm:$0xf]
      %v3428 = vld [vmem:[%s3415 + $0x48] sm:$0xf]
      %v3429 = vld [vmem:[%s3415 + $0x4c] sm:$0xf]
      %v3430 = vld [vmem:[%s3415 + $0x54] sm:$0xf]
      %v3431 = vld [vmem:[%s3415 + $0x58] sm:$0xf]
      %3448 = vrot.lane.b32.xlu0 %v3416, 24
      %v3449 = vpop.permute.xlu0 %3448
      %3450 = vrot.lane.b32.xlu0 %v3417, 24
      %v3451 = vpop.permute.xlu0 %3450
      %3452 = vrot.lane.b32.xlu0 %v3418, 24
      %v3453 = vpop.permute.xlu0 %3452
      %3454 = vrot.lane.b32.xlu0 %v3419, 24
      %v3455 = vpop.permute.xlu0 %3454
      %3456 = vrot.lane.b32.xlu0 %v3420, 24
      %v3457 = vpop.permute.xlu0 %3456
      %3458 = vrot.lane.b32.xlu0 %v3421, 24
      %v3459 = vpop.permute.xlu0 %3458
      %3460 = vrot.lane.b32.xlu0 %v3422, 24
      %v3461 = vpop.permute.xlu0 %3460
      %3462 = vrot.lane.b32.xlu0 %v3423, 24
      %v3463 = vpop.permute.xlu0 %3462
      %3464 = vrot.lane.b32.xlu0 %v3424, 24
      %v3465 = vpop.permute.xlu0 %3464
      %3466 = vrot.lane.b32.xlu0 %v3425, 24
      %v3467 = vpop.permute.xlu0 %3466
      %3468 = vrot.lane.b32.xlu0 %v3426, 24
      %v3469 = vpop.permute.xlu0 %3468
      %3470 = vrot.lane.b32.xlu0 %v3427, 24
      %v3471 = vpop.permute.xlu0 %3470
      %3472 = vrot.lane.b32.xlu0 %v3428, 24
      %v3473 = vpop.permute.xlu0 %3472
      %3474 = vrot.lane.b32.xlu0 %v3429, 24
      %v3475 = vpop.permute.xlu0 %3474
      %3476 = vrot.lane.b32.xlu0 %v3430, 24
      %v3477 = vpop.permute.xlu0 %3476
      %3478 = vrot.lane.b32.xlu0 %v3431, 24
      %v3479 = vpop.permute.xlu0 %3478
      %3496 = vst.msk [vmem:[#allocation3] sm:$0xf] %vm968, %v3449
      %3497 = vst.msk [vmem:[#allocation3 + $0x4] sm:$0xf] %vm968, %v3451
      %3498 = vst.msk [vmem:[#allocation3 + $0x8] sm:$0xf] %vm968, %v3453
      %3499 = vst.msk [vmem:[#allocation3 + $0xc] sm:$0xf] %vm968, %v3455
      %3500 = vst.msk [vmem:[#allocation3 + $0x10] sm:$0xf] %vm968, %v3457
      %3501 = vst.msk [vmem:[#allocation3 + $0x14] sm:$0xf] %vm968, %v3459
      %3502 = vst.msk [vmem:[#allocation3 + $0x18] sm:$0xf] %vm968, %v3461
      %3503 = vst.msk [vmem:[#allocation3 + $0x1c] sm:$0xf] %vm968, %v3463
      %3504 = vst.msk [vmem:[#allocation3 + $0x20] sm:$0xf] %vm968, %v3465
      %3505 = vst.msk [vmem:[#allocation3 + $0x24] sm:$0xf] %vm968, %v3467
      %3506 = vst.msk [vmem:[#allocation3 + $0x28] sm:$0xf] %vm968, %v3469
      %3507 = vst.msk [vmem:[#allocation3 + $0x2c] sm:$0xf] %vm968, %v3471
      %3508 = vst.msk [vmem:[#allocation3 + $0x30] sm:$0xf] %vm968, %v3473
      %3509 = vst.msk [vmem:[#allocation3 + $0x34] sm:$0xf] %vm968, %v3475
      %3510 = vst.msk [vmem:[#allocation3 + $0x38] sm:$0xf] %vm968, %v3477
      %3511 = vst.msk [vmem:[#allocation3 + $0x3c] sm:$0xf] %vm968, %v3479
      %v3512 = vld [vmem:[%s3415] sm:$0xf]
      %v3513 = vld [vmem:[%s3415 + $0x4] sm:$0xf]
      %v3514 = vld [vmem:[%s3415 + $0x8] sm:$0x1]
      %v3515 = vld [vmem:[%s3415 + $0xc] sm:$0xf]
      %v3516 = vld [vmem:[%s3415 + $0x10] sm:$0xf]
      %v3517 = vld [vmem:[%s3415 + $0x14] sm:$0x1]
      %v3518 = vld [vmem:[%s3415 + $0x18] sm:$0xf]
      %v3519 = vld [vmem:[%s3415 + $0x1c] sm:$0xf]
      %v3520 = vld [vmem:[%s3415 + $0x20] sm:$0x1]
      %v3521 = vld [vmem:[%s3415 + $0x24] sm:$0xf]
      %v3522 = vld [vmem:[%s3415 + $0x28] sm:$0xf]
      %v3523 = vld [vmem:[%s3415 + $0x2c] sm:$0x1]
      %v3524 = vld [vmem:[%s3415 + $0x30] sm:$0xf]
      %v3525 = vld [vmem:[%s3415 + $0x34] sm:$0xf]
      %v3526 = vld [vmem:[%s3415 + $0x38] sm:$0x1]
      %v3527 = vld [vmem:[%s3415 + $0x3c] sm:$0xf]
      %v3528 = vld [vmem:[%s3415 + $0x40] sm:$0xf]
      %v3529 = vld [vmem:[%s3415 + $0x44] sm:$0x1]
      %v3530 = vld [vmem:[%s3415 + $0x48] sm:$0xf]
      %v3531 = vld [vmem:[%s3415 + $0x4c] sm:$0xf]
      %v3532 = vld [vmem:[%s3415 + $0x50] sm:$0x1]
      %v3533 = vld [vmem:[%s3415 + $0x54] sm:$0xf]
      %v3534 = vld [vmem:[%s3415 + $0x58] sm:$0xf]
      %v3535 = vld [vmem:[%s3415 + $0x5c] sm:$0x1]
      %v3537 = vshrl.u32 %v3512, 16
      %v3539 = vrot.slane %v3537, 4
      %v3540 = vshll.u32 %v3512, 16
      %v3542 = vrot.slane %v3540, 5
      %v3543 = vor.u32 %v3539, %v3542
      %v3544 = vrot.slane %v3543, 4
      %v3546 = vshll.u32 %v3513, 16
      %v3548 = vrot.slane %v3546, 5
      %v3549 = vsel %vm328, %v3544, %v3548
      %v3550 = vshrl.u32 %v3513, 16
      %v3552 = vrot.slane %v3550, 4
      %v3553 = vor.u32 %v3552, %v3548
      %v3554 = vrot.slane %v3553, 4
      %v3556 = vshll.u32 %v3514, 16
      %v3558 = vrot.slane %v3556, 5
      %v3559 = vsel %vm328, %v3554, %v3558
      %v3561 = vshrl.u32 %v3515, 16
      %v3563 = vrot.slane %v3561, 4
      %v3564 = vshll.u32 %v3515, 16
      %v3566 = vrot.slane %v3564, 5
      %v3567 = vor.u32 %v3563, %v3566
      %v3568 = vrot.slane %v3567, 4
      %v3570 = vshll.u32 %v3516, 16
      %v3572 = vrot.slane %v3570, 5
      %v3573 = vsel %vm328, %v3568, %v3572
      %v3574 = vshrl.u32 %v3516, 16
      %v3576 = vrot.slane %v3574, 4
      %v3577 = vor.u32 %v3576, %v3572
      %v3578 = vrot.slane %v3577, 4
      %v3580 = vshll.u32 %v3517, 16
      %v3582 = vrot.slane %v3580, 5
      %v3583 = vsel %vm328, %v3578, %v3582
      %v3585 = vshrl.u32 %v3518, 16
      %v3587 = vrot.slane %v3585, 4
      %v3588 = vshll.u32 %v3518, 16
      %v3590 = vrot.slane %v3588, 5
      %v3591 = vor.u32 %v3587, %v3590
      %v3592 = vrot.slane %v3591, 4
      %v3594 = vshll.u32 %v3519, 16
      %v3596 = vrot.slane %v3594, 5
      %v3597 = vsel %vm328, %v3592, %v3596
      %v3598 = vshrl.u32 %v3519, 16
      %v3600 = vrot.slane %v3598, 4
      %v3601 = vor.u32 %v3600, %v3596
      %v3602 = vrot.slane %v3601, 4
      %v3604 = vshll.u32 %v3520, 16
      %v3606 = vrot.slane %v3604, 5
      %v3607 = vsel %vm328, %v3602, %v3606
      %v3609 = vshrl.u32 %v3521, 16
      %v3611 = vrot.slane %v3609, 4
      %v3612 = vshll.u32 %v3521, 16
      %v3614 = vrot.slane %v3612, 5
      %v3615 = vor.u32 %v3611, %v3614
      %v3616 = vrot.slane %v3615, 4
      %v3618 = vshll.u32 %v3522, 16
      %v3620 = vrot.slane %v3618, 5
      %v3621 = vsel %vm328, %v3616, %v3620
      %v3622 = vshrl.u32 %v3522, 16
      %v3624 = vrot.slane %v3622, 4
      %v3625 = vor.u32 %v3624, %v3620
      %v3626 = vrot.slane %v3625, 4
      %v3628 = vshll.u32 %v3523, 16
      %v3630 = vrot.slane %v3628, 5
      %v3631 = vsel %vm328, %v3626, %v3630
      %v3633 = vshrl.u32 %v3524, 16
      %v3635 = vrot.slane %v3633, 4
      %v3636 = vshll.u32 %v3524, 16
      %v3638 = vrot.slane %v3636, 5
      %v3639 = vor.u32 %v3635, %v3638
      %v3640 = vrot.slane %v3639, 4
      %v3642 = vshll.u32 %v3525, 16
      %v3644 = vrot.slane %v3642, 5
      %v3645 = vsel %vm328, %v3640, %v3644
      %v3646 = vshrl.u32 %v3525, 16
      %v3648 = vrot.slane %v3646, 4
      %v3649 = vor.u32 %v3648, %v3644
      %v3650 = vrot.slane %v3649, 4
      %v3652 = vshll.u32 %v3526, 16
      %v3654 = vrot.slane %v3652, 5
      %v3655 = vsel %vm328, %v3650, %v3654
      %v3657 = vshrl.u32 %v3527, 16
      %v3659 = vrot.slane %v3657, 4
      %v3660 = vshll.u32 %v3527, 16
      %v3662 = vrot.slane %v3660, 5
      %v3663 = vor.u32 %v3659, %v3662
      %v3664 = vrot.slane %v3663, 4
      %v3666 = vshll.u32 %v3528, 16
      %v3668 = vrot.slane %v3666, 5
      %v3669 = vsel %vm328, %v3664, %v3668
      %v3670 = vshrl.u32 %v3528, 16
      %v3672 = vrot.slane %v3670, 4
      %v3673 = vor.u32 %v3672, %v3668
      %v3674 = vrot.slane %v3673, 4
      %v3676 = vshll.u32 %v3529, 16
      %v3678 = vrot.slane %v3676, 5
      %v3679 = vsel %vm328, %v3674, %v3678
      %v3681 = vshrl.u32 %v3530, 16
      %v3683 = vrot.slane %v3681, 4
      %v3684 = vshll.u32 %v3530, 16
      %v3686 = vrot.slane %v3684, 5
      %v3687 = vor.u32 %v3683, %v3686
      %v3688 = vrot.slane %v3687, 4
      %v3690 = vshll.u32 %v3531, 16
      %v3692 = vrot.slane %v3690, 5
      %v3693 = vsel %vm328, %v3688, %v3692
      %v3694 = vshrl.u32 %v3531, 16
      %v3696 = vrot.slane %v3694, 4
      %v3697 = vor.u32 %v3696, %v3692
      %v3698 = vrot.slane %v3697, 4
      %v3700 = vshll.u32 %v3532, 16
      %v3702 = vrot.slane %v3700, 5
      %v3703 = vsel %vm328, %v3698, %v3702
      %v3705 = vshrl.u32 %v3533, 16
      %v3707 = vrot.slane %v3705, 4
      %v3708 = vshll.u32 %v3533, 16
      %v3710 = vrot.slane %v3708, 5
      %v3711 = vor.u32 %v3707, %v3710
      %v3712 = vrot.slane %v3711, 4
      %v3714 = vshll.u32 %v3534, 16
      %v3716 = vrot.slane %v3714, 5
      %v3717 = vsel %vm328, %v3712, %v3716
      %v3718 = vshrl.u32 %v3534, 16
      %v3720 = vrot.slane %v3718, 4
      %v3721 = vor.u32 %v3720, %v3716
      %v3722 = vrot.slane %v3721, 4
      %v3724 = vshll.u32 %v3535, 16
      %v3726 = vrot.slane %v3724, 5
      %v3727 = vsel %vm328, %v3722, %v3726
      %3728 = vrot.lane.b32.xlu0 %v3549, 32
      %v3729 = vpop.permute.xlu0 %3728
      %3730 = vrot.lane.b32.xlu0 %v3559, 32
      %v3731 = vpop.permute.xlu0 %3730
      %3732 = vrot.lane.b32.xlu0 %v3573, 32
      %v3733 = vpop.permute.xlu0 %3732
      %3734 = vrot.lane.b32.xlu0 %v3583, 32
      %v3735 = vpop.permute.xlu0 %3734
      %3736 = vrot.lane.b32.xlu0 %v3597, 32
      %v3737 = vpop.permute.xlu0 %3736
      %3738 = vrot.lane.b32.xlu0 %v3607, 32
      %v3739 = vpop.permute.xlu0 %3738
      %3740 = vrot.lane.b32.xlu0 %v3621, 32
      %v3741 = vpop.permute.xlu0 %3740
      %3742 = vrot.lane.b32.xlu0 %v3631, 32
      %v3743 = vpop.permute.xlu0 %3742
      %3744 = vrot.lane.b32.xlu0 %v3645, 32
      %v3745 = vpop.permute.xlu0 %3744
      %3746 = vrot.lane.b32.xlu0 %v3655, 32
      %v3747 = vpop.permute.xlu0 %3746
      %3748 = vrot.lane.b32.xlu0 %v3669, 32
      %v3749 = vpop.permute.xlu0 %3748
      %3750 = vrot.lane.b32.xlu0 %v3679, 32
      %v3751 = vpop.permute.xlu0 %3750
      %3752 = vrot.lane.b32.xlu0 %v3693, 32
      %v3753 = vpop.permute.xlu0 %3752
      %3754 = vrot.lane.b32.xlu0 %v3703, 32
      %v3755 = vpop.permute.xlu0 %3754
      %3756 = vrot.lane.b32.xlu0 %v3717, 32
      %v3757 = vpop.permute.xlu0 %3756
      %3758 = vrot.lane.b32.xlu0 %v3727, 32
      %v3759 = vpop.permute.xlu0 %3758
      %3776 = vst.msk [vmem:[#allocation3] sm:$0xf] %vm1319, %v3729
      %3777 = vst.msk [vmem:[#allocation3 + $0x4] sm:$0xf] %vm1319, %v3731
      %3778 = vst.msk [vmem:[#allocation3 + $0x8] sm:$0xf] %vm1319, %v3733
      %3779 = vst.msk [vmem:[#allocation3 + $0xc] sm:$0xf] %vm1319, %v3735
      %3780 = vst.msk [vmem:[#allocation3 + $0x10] sm:$0xf] %vm1319, %v3737
      %3781 = vst.msk [vmem:[#allocation3 + $0x14] sm:$0xf] %vm1319, %v3739
      %3782 = vst.msk [vmem:[#allocation3 + $0x18] sm:$0xf] %vm1319, %v3741
      %3783 = vst.msk [vmem:[#allocation3 + $0x1c] sm:$0xf] %vm1319, %v3743
      %3784 = vst.msk [vmem:[#allocation3 + $0x20] sm:$0xf] %vm1319, %v3745
      %3785 = vst.msk [vmem:[#allocation3 + $0x24] sm:$0xf] %vm1319, %v3747
      %3786 = vst.msk [vmem:[#allocation3 + $0x28] sm:$0xf] %vm1319, %v3749
      %3787 = vst.msk [vmem:[#allocation3 + $0x2c] sm:$0xf] %vm1319, %v3751
      %3788 = vst.msk [vmem:[#allocation3 + $0x30] sm:$0xf] %vm1319, %v3753
      %3789 = vst.msk [vmem:[#allocation3 + $0x34] sm:$0xf] %vm1319, %v3755
      %3790 = vst.msk [vmem:[#allocation3 + $0x38] sm:$0xf] %vm1319, %v3757
      %3791 = vst.msk [vmem:[#allocation3 + $0x3c] sm:$0xf] %vm1319, %v3759
      %v3792 = vld [vmem:[%s3415] sm:$0xe]
      %v3793 = vld [vmem:[%s3415 + $0x4] sm:$0xf]
      %v3794 = vld [vmem:[%s3415 + $0x8] sm:$0x1]
      %v3795 = vld [vmem:[%s3415 + $0xc] sm:$0xe]
      %v3796 = vld [vmem:[%s3415 + $0x10] sm:$0xf]
      %v3797 = vld [vmem:[%s3415 + $0x14] sm:$0x1]
      %v3798 = vld [vmem:[%s3415 + $0x18] sm:$0xe]
      %v3799 = vld [vmem:[%s3415 + $0x1c] sm:$0xf]
      %v3800 = vld [vmem:[%s3415 + $0x20] sm:$0x1]
      %v3801 = vld [vmem:[%s3415 + $0x24] sm:$0xe]
      %v3802 = vld [vmem:[%s3415 + $0x28] sm:$0xf]
      %v3803 = vld [vmem:[%s3415 + $0x2c] sm:$0x1]
      %v3804 = vld [vmem:[%s3415 + $0x30] sm:$0xe]
      %v3805 = vld [vmem:[%s3415 + $0x34] sm:$0xf]
      %v3806 = vld [vmem:[%s3415 + $0x38] sm:$0x1]
      %v3807 = vld [vmem:[%s3415 + $0x3c] sm:$0xe]
      %v3808 = vld [vmem:[%s3415 + $0x40] sm:$0xf]
      %v3809 = vld [vmem:[%s3415 + $0x44] sm:$0x1]
      %v3810 = vld [vmem:[%s3415 + $0x48] sm:$0xe]
      %v3811 = vld [vmem:[%s3415 + $0x4c] sm:$0xf]
      %v3812 = vld [vmem:[%s3415 + $0x50] sm:$0x1]
      %v3813 = vld [vmem:[%s3415 + $0x54] sm:$0xe]
      %v3814 = vld [vmem:[%s3415 + $0x58] sm:$0xf]
      %v3815 = vld [vmem:[%s3415 + $0x5c] sm:$0x1]
      %v3840 = vrot.slane %v3792, 5
      %v3841 = vrot.slane %v3840, 4
      %v3842 = vrot.slane %v3793, 5
      %v3843 = vsel %vm712, %v3841, %v3842
      %v3844 = vrot.slane %v3842, 4
      %v3845 = vrot.slane %v3794, 5
      %v3846 = vsel %vm712, %v3844, %v3845
      %v3847 = vrot.slane %v3795, 5
      %v3848 = vrot.slane %v3847, 4
      %v3849 = vrot.slane %v3796, 5
      %v3850 = vsel %vm712, %v3848, %v3849
      %v3851 = vrot.slane %v3849, 4
      %v3852 = vrot.slane %v3797, 5
      %v3853 = vsel %vm712, %v3851, %v3852
      %v3854 = vrot.slane %v3798, 5
      %v3855 = vrot.slane %v3854, 4
      %v3856 = vrot.slane %v3799, 5
      %v3857 = vsel %vm712, %v3855, %v3856
      %v3858 = vrot.slane %v3856, 4
      %v3859 = vrot.slane %v3800, 5
      %v3860 = vsel %vm712, %v3858, %v3859
      %v3861 = vrot.slane %v3801, 5
      %v3862 = vrot.slane %v3861, 4
      %v3863 = vrot.slane %v3802, 5
      %v3864 = vsel %vm712, %v3862, %v3863
      %v3865 = vrot.slane %v3863, 4
      %v3866 = vrot.slane %v3803, 5
      %v3867 = vsel %vm712, %v3865, %v3866
      %v3868 = vrot.slane %v3804, 5
      %v3869 = vrot.slane %v3868, 4
      %v3870 = vrot.slane %v3805, 5
      %v3871 = vsel %vm712, %v3869, %v3870
      %v3872 = vrot.slane %v3870, 4
      %v3873 = vrot.slane %v3806, 5
      %v3874 = vsel %vm712, %v3872, %v3873
      %v3875 = vrot.slane %v3807, 5
      %v3876 = vrot.slane %v3875, 4
      %v3877 = vrot.slane %v3808, 5
      %v3878 = vsel %vm712, %v3876, %v3877
      %v3879 = vrot.slane %v3877, 4
      %v3880 = vrot.slane %v3809, 5
      %v3881 = vsel %vm712, %v3879, %v3880
      %v3882 = vrot.slane %v3810, 5
      %v3883 = vrot.slane %v3882, 4
      %v3884 = vrot.slane %v3811, 5
      %v3885 = vsel %vm712, %v3883, %v3884
      %v3886 = vrot.slane %v3884, 4
      %v3887 = vrot.slane %v3812, 5
      %v3888 = vsel %vm712, %v3886, %v3887
      %v3889 = vrot.slane %v3813, 5
      %v3890 = vrot.slane %v3889, 4
      %v3891 = vrot.slane %v3814, 5
      %v3892 = vsel %vm712, %v3890, %v3891
      %v3893 = vrot.slane %v3891, 4
      %v3894 = vrot.slane %v3815, 5
      %v3895 = vsel %vm712, %v3893, %v3894
      %3896 = vrot.lane.b32.xlu0 %v3843, 40
      %v3897 = vpop.permute.xlu0 %3896
      %3898 = vrot.lane.b32.xlu0 %v3846, 40
      %v3899 = vpop.permute.xlu0 %3898
      %3900 = vrot.lane.b32.xlu0 %v3850, 40
      %v3901 = vpop.permute.xlu0 %3900
      %3902 = vrot.lane.b32.xlu0 %v3853, 40
      %v3903 = vpop.permute.xlu0 %3902
      %3904 = vrot.lane.b32.xlu0 %v3857, 40
      %v3905 = vpop.permute.xlu0 %3904
      %3906 = vrot.lane.b32.xlu0 %v3860, 40
      %v3907 = vpop.permute.xlu0 %3906
      %3908 = vrot.lane.b32.xlu0 %v3864, 40
      %v3909 = vpop.permute.xlu0 %3908
      %3910 = vrot.lane.b32.xlu0 %v3867, 40
      %v3911 = vpop.permute.xlu0 %3910
      %3912 = vrot.lane.b32.xlu0 %v3871, 40
      %v3913 = vpop.permute.xlu0 %3912
      %3914 = vrot.lane.b32.xlu0 %v3874, 40
      %v3915 = vpop.permute.xlu0 %3914
      %3916 = vrot.lane.b32.xlu0 %v3878, 40
      %v3917 = vpop.permute.xlu0 %3916
      %3918 = vrot.lane.b32.xlu0 %v3881, 40
      %v3919 = vpop.permute.xlu0 %3918
      %3920 = vrot.lane.b32.xlu0 %v3885, 40
      %v3921 = vpop.permute.xlu0 %3920
      %3922 = vrot.lane.b32.xlu0 %v3888, 40
      %v3923 = vpop.permute.xlu0 %3922
      %3924 = vrot.lane.b32.xlu0 %v3892, 40
      %v3925 = vpop.permute.xlu0 %3924
      %3926 = vrot.lane.b32.xlu0 %v3895, 40
      %v3927 = vpop.permute.xlu0 %3926
      %3944 = vst.msk [vmem:[#allocation3] sm:$0xf] %vm1530, %v3897
      %3945 = vst.msk [vmem:[#allocation3 + $0x4] sm:$0xf] %vm1530, %v3899
      %3946 = vst.msk [vmem:[#allocation3 + $0x8] sm:$0xf] %vm1530, %v3901
      %3947 = vst.msk [vmem:[#allocation3 + $0xc] sm:$0xf] %vm1530, %v3903
      %3948 = vst.msk [vmem:[#allocation3 + $0x10] sm:$0xf] %vm1530, %v3905
      %3949 = vst.msk [vmem:[#allocation3 + $0x14] sm:$0xf] %vm1530, %v3907
      %3950 = vst.msk [vmem:[#allocation3 + $0x18] sm:$0xf] %vm1530, %v3909
      %3951 = vst.msk [vmem:[#allocation3 + $0x1c] sm:$0xf] %vm1530, %v3911
      %3952 = vst.msk [vmem:[#allocation3 + $0x20] sm:$0xf] %vm1530, %v3913
      %3953 = vst.msk [vmem:[#allocation3 + $0x24] sm:$0xf] %vm1530, %v3915
      %3954 = vst.msk [vmem:[#allocation3 + $0x28] sm:$0xf] %vm1530, %v3917
      %3955 = vst.msk [vmem:[#allocation3 + $0x2c] sm:$0xf] %vm1530, %v3919
      %3956 = vst.msk [vmem:[#allocation3 + $0x30] sm:$0xf] %vm1530, %v3921
      %3957 = vst.msk [vmem:[#allocation3 + $0x34] sm:$0xf] %vm1530, %v3923
      %3958 = vst.msk [vmem:[#allocation3 + $0x38] sm:$0xf] %vm1530, %v3925
      %3959 = vst.msk [vmem:[#allocation3 + $0x3c] sm:$0xf] %vm1530, %v3927
      %s3960 = scalar_lea.vmem [#allocation2], 24
      %v3961 = vld [vmem:[%s3960] sm:$0xf]
      %v3962 = vld [vmem:[%s3960 + $0x4] sm:$0xf]
      %v3963 = vld [vmem:[%s3960 + $0xc] sm:$0xf]
      %v3964 = vld [vmem:[%s3960 + $0x10] sm:$0xf]
      %v3965 = vld [vmem:[%s3960 + $0x18] sm:$0xf]
      %v3966 = vld [vmem:[%s3960 + $0x1c] sm:$0xf]
      %v3967 = vld [vmem:[%s3960 + $0x24] sm:$0xf]
      %v3968 = vld [vmem:[%s3960 + $0x28] sm:$0xf]
      %v3969 = vld [vmem:[%s3960 + $0x30] sm:$0xf]
      %v3970 = vld [vmem:[%s3960 + $0x34] sm:$0xf]
      %v3971 = vld [vmem:[%s3960 + $0x3c] sm:$0xf]
      %v3972 = vld [vmem:[%s3960 + $0x40] sm:$0xf]
      %v3973 = vld [vmem:[%s3960 + $0x48] sm:$0xf]
      %v3974 = vld [vmem:[%s3960 + $0x4c] sm:$0xf]
      %v3975 = vld [vmem:[%s3960 + $0x54] sm:$0xf]
      %v3976 = vld [vmem:[%s3960 + $0x58] sm:$0xf]
      %3993 = vrot.lane.b32.xlu0 %v3961, 48
      %v3994 = vpop.permute.xlu0 %3993
      %3995 = vrot.lane.b32.xlu0 %v3962, 48
      %v3996 = vpop.permute.xlu0 %3995
      %3997 = vrot.lane.b32.xlu0 %v3963, 48
      %v3998 = vpop.permute.xlu0 %3997
      %3999 = vrot.lane.b32.xlu0 %v3964, 48
      %v4000 = vpop.permute.xlu0 %3999
      %4001 = vrot.lane.b32.xlu0 %v3965, 48
      %v4002 = vpop.permute.xlu0 %4001
      %4003 = vrot.lane.b32.xlu0 %v3966, 48
      %v4004 = vpop.permute.xlu0 %4003
      %4005 = vrot.lane.b32.xlu0 %v3967, 48
      %v4006 = vpop.permute.xlu0 %4005
      %4007 = vrot.lane.b32.xlu0 %v3968, 48
      %v4008 = vpop.permute.xlu0 %4007
      %4009 = vrot.lane.b32.xlu0 %v3969, 48
      %v4010 = vpop.permute.xlu0 %4009
      %4011 = vrot.lane.b32.xlu0 %v3970, 48
      %v4012 = vpop.permute.xlu0 %4011
      %4013 = vrot.lane.b32.xlu0 %v3971, 48
      %v4014 = vpop.permute.xlu0 %4013
      %4015 = vrot.lane.b32.xlu0 %v3972, 48
      %v4016 = vpop.permute.xlu0 %4015
      %4017 = vrot.lane.b32.xlu0 %v3973, 48
      %v4018 = vpop.permute.xlu0 %4017
      %4019 = vrot.lane.b32.xlu0 %v3974, 48
      %v4020 = vpop.permute.xlu0 %4019
      %4021 = vrot.lane.b32.xlu0 %v3975, 48
      %v4022 = vpop.permute.xlu0 %4021
      %4023 = vrot.lane.b32.xlu0 %v3976, 48
      %v4024 = vpop.permute.xlu0 %4023
      %4041 = vst.msk [vmem:[#allocation3] sm:$0xf] %vm1655, %v3994
      %4042 = vst.msk [vmem:[#allocation3 + $0x4] sm:$0xf] %vm1655, %v3996
      %4043 = vst.msk [vmem:[#allocation3 + $0x8] sm:$0xf] %vm1655, %v3998
      %4044 = vst.msk [vmem:[#allocation3 + $0xc] sm:$0xf] %vm1655, %v4000
      %4045 = vst.msk [vmem:[#allocation3 + $0x10] sm:$0xf] %vm1655, %v4002
      %4046 = vst.msk [vmem:[#allocation3 + $0x14] sm:$0xf] %vm1655, %v4004
      %4047 = vst.msk [vmem:[#allocation3 + $0x18] sm:$0xf] %vm1655, %v4006
      %4048 = vst.msk [vmem:[#allocation3 + $0x1c] sm:$0xf] %vm1655, %v4008
      %4049 = vst.msk [vmem:[#allocation3 + $0x20] sm:$0xf] %vm1655, %v4010
      %4050 = vst.msk [vmem:[#allocation3 + $0x24] sm:$0xf] %vm1655, %v4012
      %4051 = vst.msk [vmem:[#allocation3 + $0x28] sm:$0xf] %vm1655, %v4014
      %4052 = vst.msk [vmem:[#allocation3 + $0x2c] sm:$0xf] %vm1655, %v4016
      %4053 = vst.msk [vmem:[#allocation3 + $0x30] sm:$0xf] %vm1655, %v4018
      %4054 = vst.msk [vmem:[#allocation3 + $0x34] sm:$0xf] %vm1655, %v4020
      %4055 = vst.msk [vmem:[#allocation3 + $0x38] sm:$0xf] %vm1655, %v4022
      %4056 = vst.msk [vmem:[#allocation3 + $0x3c] sm:$0xf] %vm1655, %v4024
      %v4057 = vld [vmem:[%s3960] sm:$0xf]
      %v4058 = vld [vmem:[%s3960 + $0x4] sm:$0xf]
      %v4059 = vld [vmem:[%s3960 + $0x8] sm:$0x1]
      %v4060 = vld [vmem:[%s3960 + $0xc] sm:$0xf]
      %v4061 = vld [vmem:[%s3960 + $0x10] sm:$0xf]
      %v4062 = vld [vmem:[%s3960 + $0x14] sm:$0x1]
      %v4063 = vld [vmem:[%s3960 + $0x18] sm:$0xf]
      %v4064 = vld [vmem:[%s3960 + $0x1c] sm:$0xf]
      %v4065 = vld [vmem:[%s3960 + $0x20] sm:$0x1]
      %v4066 = vld [vmem:[%s3960 + $0x24] sm:$0xf]
      %v4067 = vld [vmem:[%s3960 + $0x28] sm:$0xf]
      %v4068 = vld [vmem:[%s3960 + $0x2c] sm:$0x1]
      %v4069 = vld [vmem:[%s3960 + $0x30] sm:$0xf]
      %v4070 = vld [vmem:[%s3960 + $0x34] sm:$0xf]
      %v4071 = vld [vmem:[%s3960 + $0x38] sm:$0x1]
      %v4072 = vld [vmem:[%s3960 + $0x3c] sm:$0xf]
      %v4073 = vld [vmem:[%s3960 + $0x40] sm:$0xf]
      %v4074 = vld [vmem:[%s3960 + $0x44] sm:$0x1]
      %v4075 = vld [vmem:[%s3960 + $0x48] sm:$0xf]
      %v4076 = vld [vmem:[%s3960 + $0x4c] sm:$0xf]
      %v4077 = vld [vmem:[%s3960 + $0x50] sm:$0x1]
      %v4078 = vld [vmem:[%s3960 + $0x54] sm:$0xf]
      %v4079 = vld [vmem:[%s3960 + $0x58] sm:$0xf]
      %v4080 = vld [vmem:[%s3960 + $0x5c] sm:$0x1]
      %v4082 = vshrl.u32 %v4057, 16
      %v4084 = vrot.slane %v4082, 4
      %v4085 = vshll.u32 %v4057, 16
      %v4087 = vrot.slane %v4085, 5
      %v4088 = vor.u32 %v4084, %v4087
      %v4089 = vrot.slane %v4088, 4
      %v4091 = vshll.u32 %v4058, 16
      %v4093 = vrot.slane %v4091, 5
      %v4094 = vsel %vm328, %v4089, %v4093
      %v4095 = vshrl.u32 %v4058, 16
      %v4097 = vrot.slane %v4095, 4
      %v4098 = vor.u32 %v4097, %v4093
      %v4099 = vrot.slane %v4098, 4
      %v4101 = vshll.u32 %v4059, 16
      %v4103 = vrot.slane %v4101, 5
      %v4104 = vsel %vm328, %v4099, %v4103
      %v4106 = vshrl.u32 %v4060, 16
      %v4108 = vrot.slane %v4106, 4
      %v4109 = vshll.u32 %v4060, 16
      %v4111 = vrot.slane %v4109, 5
      %v4112 = vor.u32 %v4108, %v4111
      %v4113 = vrot.slane %v4112, 4
      %v4115 = vshll.u32 %v4061, 16
      %v4117 = vrot.slane %v4115, 5
      %v4118 = vsel %vm328, %v4113, %v4117
      %v4119 = vshrl.u32 %v4061, 16
      %v4121 = vrot.slane %v4119, 4
      %v4122 = vor.u32 %v4121, %v4117
      %v4123 = vrot.slane %v4122, 4
      %v4125 = vshll.u32 %v4062, 16
      %v4127 = vrot.slane %v4125, 5
      %v4128 = vsel %vm328, %v4123, %v4127
      %v4130 = vshrl.u32 %v4063, 16
      %v4132 = vrot.slane %v4130, 4
      %v4133 = vshll.u32 %v4063, 16
      %v4135 = vrot.slane %v4133, 5
      %v4136 = vor.u32 %v4132, %v4135
      %v4137 = vrot.slane %v4136, 4
      %v4139 = vshll.u32 %v4064, 16
      %v4141 = vrot.slane %v4139, 5
      %v4142 = vsel %vm328, %v4137, %v4141
      %v4143 = vshrl.u32 %v4064, 16
      %v4145 = vrot.slane %v4143, 4
      %v4146 = vor.u32 %v4145, %v4141
      %v4147 = vrot.slane %v4146, 4
      %v4149 = vshll.u32 %v4065, 16
      %v4151 = vrot.slane %v4149, 5
      %v4152 = vsel %vm328, %v4147, %v4151
      %v4154 = vshrl.u32 %v4066, 16
      %v4156 = vrot.slane %v4154, 4
      %v4157 = vshll.u32 %v4066, 16
      %v4159 = vrot.slane %v4157, 5
      %v4160 = vor.u32 %v4156, %v4159
      %v4161 = vrot.slane %v4160, 4
      %v4163 = vshll.u32 %v4067, 16
      %v4165 = vrot.slane %v4163, 5
      %v4166 = vsel %vm328, %v4161, %v4165
      %v4167 = vshrl.u32 %v4067, 16
      %v4169 = vrot.slane %v4167, 4
      %v4170 = vor.u32 %v4169, %v4165
      %v4171 = vrot.slane %v4170, 4
      %v4173 = vshll.u32 %v4068, 16
      %v4175 = vrot.slane %v4173, 5
      %v4176 = vsel %vm328, %v4171, %v4175
      %v4178 = vshrl.u32 %v4069, 16
      %v4180 = vrot.slane %v4178, 4
      %v4181 = vshll.u32 %v4069, 16
      %v4183 = vrot.slane %v4181, 5
      %v4184 = vor.u32 %v4180, %v4183
      %v4185 = vrot.slane %v4184, 4
      %v4187 = vshll.u32 %v4070, 16
      %v4189 = vrot.slane %v4187, 5
      %v4190 = vsel %vm328, %v4185, %v4189
      %v4191 = vshrl.u32 %v4070, 16
      %v4193 = vrot.slane %v4191, 4
      %v4194 = vor.u32 %v4193, %v4189
      %v4195 = vrot.slane %v4194, 4
      %v4197 = vshll.u32 %v4071, 16
      %v4199 = vrot.slane %v4197, 5
      %v4200 = vsel %vm328, %v4195, %v4199
      %v4202 = vshrl.u32 %v4072, 16
      %v4204 = vrot.slane %v4202, 4
      %v4205 = vshll.u32 %v4072, 16
      %v4207 = vrot.slane %v4205, 5
      %v4208 = vor.u32 %v4204, %v4207
      %v4209 = vrot.slane %v4208, 4
      %v4211 = vshll.u32 %v4073, 16
      %v4213 = vrot.slane %v4211, 5
      %v4214 = vsel %vm328, %v4209, %v4213
      %v4215 = vshrl.u32 %v4073, 16
      %v4217 = vrot.slane %v4215, 4
      %v4218 = vor.u32 %v4217, %v4213
      %v4219 = vrot.slane %v4218, 4
      %v4221 = vshll.u32 %v4074, 16
      %v4223 = vrot.slane %v4221, 5
      %v4224 = vsel %vm328, %v4219, %v4223
      %v4226 = vshrl.u32 %v4075, 16
      %v4228 = vrot.slane %v4226, 4
      %v4229 = vshll.u32 %v4075, 16
      %v4231 = vrot.slane %v4229, 5
      %v4232 = vor.u32 %v4228, %v4231
      %v4233 = vrot.slane %v4232, 4
      %v4235 = vshll.u32 %v4076, 16
      %v4237 = vrot.slane %v4235, 5
      %v4238 = vsel %vm328, %v4233, %v4237
      %v4239 = vshrl.u32 %v4076, 16
      %v4241 = vrot.slane %v4239, 4
      %v4242 = vor.u32 %v4241, %v4237
      %v4243 = vrot.slane %v4242, 4
      %v4245 = vshll.u32 %v4077, 16
      %v4247 = vrot.slane %v4245, 5
      %v4248 = vsel %vm328, %v4243, %v4247
      %v4250 = vshrl.u32 %v4078, 16
      %v4252 = vrot.slane %v4250, 4
      %v4253 = vshll.u32 %v4078, 16
      %v4255 = vrot.slane %v4253, 5
      %v4256 = vor.u32 %v4252, %v4255
      %v4257 = vrot.slane %v4256, 4
      %v4259 = vshll.u32 %v4079, 16
      %v4261 = vrot.slane %v4259, 5
      %v4262 = vsel %vm328, %v4257, %v4261
      %v4263 = vshrl.u32 %v4079, 16
      %v4265 = vrot.slane %v4263, 4
      %v4266 = vor.u32 %v4265, %v4261
      %v4267 = vrot.slane %v4266, 4
      %v4269 = vshll.u32 %v4080, 16
      %v4271 = vrot.slane %v4269, 5
      %v4272 = vsel %vm328, %v4267, %v4271
      %4273 = vrot.lane.b32.xlu0 %v4094, 56
      %v4274 = vpop.permute.xlu0 %4273
      %4275 = vrot.lane.b32.xlu0 %v4104, 56
      %v4276 = vpop.permute.xlu0 %4275
      %4277 = vrot.lane.b32.xlu0 %v4118, 56
      %v4278 = vpop.permute.xlu0 %4277
      %4279 = vrot.lane.b32.xlu0 %v4128, 56
      %v4280 = vpop.permute.xlu0 %4279
      %4281 = vrot.lane.b32.xlu0 %v4142, 56
      %v4282 = vpop.permute.xlu0 %4281
      %4283 = vrot.lane.b32.xlu0 %v4152, 56
      %v4284 = vpop.permute.xlu0 %4283
      %4285 = vrot.lane.b32.xlu0 %v4166, 56
      %v4286 = vpop.permute.xlu0 %4285
      %4287 = vrot.lane.b32.xlu0 %v4176, 56
      %v4288 = vpop.permute.xlu0 %4287
      %4289 = vrot.lane.b32.xlu0 %v4190, 56
      %v4290 = vpop.permute.xlu0 %4289
      %4291 = vrot.lane.b32.xlu0 %v4200, 56
      %v4292 = vpop.permute.xlu0 %4291
      %4293 = vrot.lane.b32.xlu0 %v4214, 56
      %v4294 = vpop.permute.xlu0 %4293
      %4295 = vrot.lane.b32.xlu0 %v4224, 56
      %v4296 = vpop.permute.xlu0 %4295
      %4297 = vrot.lane.b32.xlu0 %v4238, 56
      %v4298 = vpop.permute.xlu0 %4297
      %4299 = vrot.lane.b32.xlu0 %v4248, 56
      %v4300 = vpop.permute.xlu0 %4299
      %4301 = vrot.lane.b32.xlu0 %v4262, 56
      %v4302 = vpop.permute.xlu0 %4301
      %4303 = vrot.lane.b32.xlu0 %v4272, 56
      %v4304 = vpop.permute.xlu0 %4303
      %4321 = vst.msk [vmem:[#allocation3] sm:$0xf] %vm2006, %v4274
      %4322 = vst.msk [vmem:[#allocation3 + $0x4] sm:$0xf] %vm2006, %v4276
      %4323 = vst.msk [vmem:[#allocation3 + $0x8] sm:$0xf] %vm2006, %v4278
      %4324 = vst.msk [vmem:[#allocation3 + $0xc] sm:$0xf] %vm2006, %v4280
      %4325 = vst.msk [vmem:[#allocation3 + $0x10] sm:$0xf] %vm2006, %v4282
      %4326 = vst.msk [vmem:[#allocation3 + $0x14] sm:$0xf] %vm2006, %v4284
      %4327 = vst.msk [vmem:[#allocation3 + $0x18] sm:$0xf] %vm2006, %v4286
      %4328 = vst.msk [vmem:[#allocation3 + $0x1c] sm:$0xf] %vm2006, %v4288
      %4329 = vst.msk [vmem:[#allocation3 + $0x20] sm:$0xf] %vm2006, %v4290
      %4330 = vst.msk [vmem:[#allocation3 + $0x24] sm:$0xf] %vm2006, %v4292
      %4331 = vst.msk [vmem:[#allocation3 + $0x28] sm:$0xf] %vm2006, %v4294
      %4332 = vst.msk [vmem:[#allocation3 + $0x2c] sm:$0xf] %vm2006, %v4296
      %4333 = vst.msk [vmem:[#allocation3 + $0x30] sm:$0xf] %vm2006, %v4298
      %4334 = vst.msk [vmem:[#allocation3 + $0x34] sm:$0xf] %vm2006, %v4300
      %4335 = vst.msk [vmem:[#allocation3 + $0x38] sm:$0xf] %vm2006, %v4302
      %4336 = vst.msk [vmem:[#allocation3 + $0x3c] sm:$0xf] %vm2006, %v4304
      %v4337 = vld [vmem:[%s3960] sm:$0xe]
      %v4338 = vld [vmem:[%s3960 + $0x4] sm:$0xf]
      %v4339 = vld [vmem:[%s3960 + $0x8] sm:$0x1]
      %v4340 = vld [vmem:[%s3960 + $0xc] sm:$0xe]
      %v4341 = vld [vmem:[%s3960 + $0x10] sm:$0xf]
      %v4342 = vld [vmem:[%s3960 + $0x14] sm:$0x1]
      %v4343 = vld [vmem:[%s3960 + $0x18] sm:$0xe]
      %v4344 = vld [vmem:[%s3960 + $0x1c] sm:$0xf]
      %v4345 = vld [vmem:[%s3960 + $0x20] sm:$0x1]
      %v4346 = vld [vmem:[%s3960 + $0x24] sm:$0xe]
      %v4347 = vld [vmem:[%s3960 + $0x28] sm:$0xf]
      %v4348 = vld [vmem:[%s3960 + $0x2c] sm:$0x1]
      %v4349 = vld [vmem:[%s3960 + $0x30] sm:$0xe]
      %v4350 = vld [vmem:[%s3960 + $0x34] sm:$0xf]
      %v4351 = vld [vmem:[%s3960 + $0x38] sm:$0x1]
      %v4352 = vld [vmem:[%s3960 + $0x3c] sm:$0xe]
      %v4353 = vld [vmem:[%s3960 + $0x40] sm:$0xf]
      %v4354 = vld [vmem:[%s3960 + $0x44] sm:$0x1]
      %v4355 = vld [vmem:[%s3960 + $0x48] sm:$0xe]
      %v4356 = vld [vmem:[%s3960 + $0x4c] sm:$0xf]
      %v4357 = vld [vmem:[%s3960 + $0x50] sm:$0x1]
      %v4358 = vld [vmem:[%s3960 + $0x54] sm:$0xe]
      %v4359 = vld [vmem:[%s3960 + $0x58] sm:$0xf]
      %v4360 = vld [vmem:[%s3960 + $0x5c] sm:$0x1]
      %v4385 = vrot.slane %v4337, 5
      %v4386 = vrot.slane %v4385, 4
      %v4387 = vrot.slane %v4338, 5
      %v4388 = vsel %vm712, %v4386, %v4387
      %v4389 = vrot.slane %v4387, 4
      %v4390 = vrot.slane %v4339, 5
      %v4391 = vsel %vm712, %v4389, %v4390
      %v4392 = vrot.slane %v4340, 5
      %v4393 = vrot.slane %v4392, 4
      %v4394 = vrot.slane %v4341, 5
      %v4395 = vsel %vm712, %v4393, %v4394
      %v4396 = vrot.slane %v4394, 4
      %v4397 = vrot.slane %v4342, 5
      %v4398 = vsel %vm712, %v4396, %v4397
      %v4399 = vrot.slane %v4343, 5
      %v4400 = vrot.slane %v4399, 4
      %v4401 = vrot.slane %v4344, 5
      %v4402 = vsel %vm712, %v4400, %v4401
      %v4403 = vrot.slane %v4401, 4
      %v4404 = vrot.slane %v4345, 5
      %v4405 = vsel %vm712, %v4403, %v4404
      %v4406 = vrot.slane %v4346, 5
      %v4407 = vrot.slane %v4406, 4
      %v4408 = vrot.slane %v4347, 5
      %v4409 = vsel %vm712, %v4407, %v4408
      %v4410 = vrot.slane %v4408, 4
      %v4411 = vrot.slane %v4348, 5
      %v4412 = vsel %vm712, %v4410, %v4411
      %v4413 = vrot.slane %v4349, 5
      %v4414 = vrot.slane %v4413, 4
      %v4415 = vrot.slane %v4350, 5
      %v4416 = vsel %vm712, %v4414, %v4415
      %v4417 = vrot.slane %v4415, 4
      %v4418 = vrot.slane %v4351, 5
      %v4419 = vsel %vm712, %v4417, %v4418
      %v4420 = vrot.slane %v4352, 5
      %v4421 = vrot.slane %v4420, 4
      %v4422 = vrot.slane %v4353, 5
      %v4423 = vsel %vm712, %v4421, %v4422
      %v4424 = vrot.slane %v4422, 4
      %v4425 = vrot.slane %v4354, 5
      %v4426 = vsel %vm712, %v4424, %v4425
      %v4427 = vrot.slane %v4355, 5
      %v4428 = vrot.slane %v4427, 4
      %v4429 = vrot.slane %v4356, 5
      %v4430 = vsel %vm712, %v4428, %v4429
      %v4431 = vrot.slane %v4429, 4
      %v4432 = vrot.slane %v4357, 5
      %v4433 = vsel %vm712, %v4431, %v4432
      %v4434 = vrot.slane %v4358, 5
      %v4435 = vrot.slane %v4434, 4
      %v4436 = vrot.slane %v4359, 5
      %v4437 = vsel %vm712, %v4435, %v4436
      %v4438 = vrot.slane %v4436, 4
      %v4439 = vrot.slane %v4360, 5
      %v4440 = vsel %vm712, %v4438, %v4439
      %4441 = vrot.lane.b32.xlu0 %v4388, 64
      %v4442 = vpop.permute.xlu0 %4441
      %4443 = vrot.lane.b32.xlu0 %v4391, 64
      %v4444 = vpop.permute.xlu0 %4443
      %4445 = vrot.lane.b32.xlu0 %v4395, 64
      %v4446 = vpop.permute.xlu0 %4445
      %4447 = vrot.lane.b32.xlu0 %v4398, 64
      %v4448 = vpop.permute.xlu0 %4447
      %4449 = vrot.lane.b32.xlu0 %v4402, 64
      %v4450 = vpop.permute.xlu0 %4449
      %4451 = vrot.lane.b32.xlu0 %v4405, 64
      %v4452 = vpop.permute.xlu0 %4451
      %4453 = vrot.lane.b32.xlu0 %v4409, 64
      %v4454 = vpop.permute.xlu0 %4453
      %4455 = vrot.lane.b32.xlu0 %v4412, 64
      %v4456 = vpop.permute.xlu0 %4455
      %4457 = vrot.lane.b32.xlu0 %v4416, 64
      %v4458 = vpop.permute.xlu0 %4457
      %4459 = vrot.lane.b32.xlu0 %v4419, 64
      %v4460 = vpop.permute.xlu0 %4459
      %4461 = vrot.lane.b32.xlu0 %v4423, 64
      %v4462 = vpop.permute.xlu0 %4461
      %4463 = vrot.lane.b32.xlu0 %v4426, 64
      %v4464 = vpop.permute.xlu0 %4463
      %4465 = vrot.lane.b32.xlu0 %v4430, 64
      %v4466 = vpop.permute.xlu0 %4465
      %4467 = vrot.lane.b32.xlu0 %v4433, 64
      %v4468 = vpop.permute.xlu0 %4467
      %4469 = vrot.lane.b32.xlu0 %v4437, 64
      %v4470 = vpop.permute.xlu0 %4469
      %4471 = vrot.lane.b32.xlu0 %v4440, 64
      %v4472 = vpop.permute.xlu0 %4471
      %4489 = vst.msk [vmem:[#allocation3] sm:$0xf] %vm2217, %v4442
      %4490 = vst.msk [vmem:[#allocation3 + $0x4] sm:$0xf] %vm2217, %v4444
      %4491 = vst.msk [vmem:[#allocation3 + $0x8] sm:$0xf] %vm2217, %v4446
      %4492 = vst.msk [vmem:[#allocation3 + $0xc] sm:$0xf] %vm2217, %v4448
      %4493 = vst.msk [vmem:[#allocation3 + $0x10] sm:$0xf] %vm2217, %v4450
      %4494 = vst.msk [vmem:[#allocation3 + $0x14] sm:$0xf] %vm2217, %v4452
      %4495 = vst.msk [vmem:[#allocation3 + $0x18] sm:$0xf] %vm2217, %v4454
      %4496 = vst.msk [vmem:[#allocation3 + $0x1c] sm:$0xf] %vm2217, %v4456
      %4497 = vst.msk [vmem:[#allocation3 + $0x20] sm:$0xf] %vm2217, %v4458
      %4498 = vst.msk [vmem:[#allocation3 + $0x24] sm:$0xf] %vm2217, %v4460
      %4499 = vst.msk [vmem:[#allocation3 + $0x28] sm:$0xf] %vm2217, %v4462
      %4500 = vst.msk [vmem:[#allocation3 + $0x2c] sm:$0xf] %vm2217, %v4464
      %4501 = vst.msk [vmem:[#allocation3 + $0x30] sm:$0xf] %vm2217, %v4466
      %4502 = vst.msk [vmem:[#allocation3 + $0x34] sm:$0xf] %vm2217, %v4468
      %4503 = vst.msk [vmem:[#allocation3 + $0x38] sm:$0xf] %vm2217, %v4470
      %4504 = vst.msk [vmem:[#allocation3 + $0x3c] sm:$0xf] %vm2217, %v4472
      %v4505 = vld [vmem:[#allocation3] sm:$0xf]
      %v4506 = vld [vmem:[#allocation3 + $0x4] sm:$0xf]
      %v4507 = vld [vmem:[#allocation3 + $0x8] sm:$0xf]
      %v4508 = vld [vmem:[#allocation3 + $0xc] sm:$0xf]
      %v4509 = vld [vmem:[#allocation3 + $0x10] sm:$0xf]
      %v4510 = vld [vmem:[#allocation3 + $0x14] sm:$0xf]
      %v4511 = vld [vmem:[#allocation3 + $0x18] sm:$0xf]
      %v4512 = vld [vmem:[#allocation3 + $0x1c] sm:$0xf]
      %v4513 = vld [vmem:[#allocation3 + $0x20] sm:$0xf]
      %v4514 = vld [vmem:[#allocation3 + $0x24] sm:$0xf]
      %v4515 = vld [vmem:[#allocation3 + $0x28] sm:$0xf]
      %v4516 = vld [vmem:[#allocation3 + $0x2c] sm:$0xf]
      %v4517 = vld [vmem:[#allocation3 + $0x30] sm:$0xf]
      %v4518 = vld [vmem:[#allocation3 + $0x34] sm:$0xf]
      %v4519 = vld [vmem:[#allocation3 + $0x38] sm:$0xf]
      %v4520 = vld [vmem:[#allocation3 + $0x3c] sm:$0xf]
      %v4521 = vld [vmem:[%s3] sm:$0xf]
      %v4522 = vld [vmem:[%s3 + $0x4] sm:$0xf]
      %v4523 = vld [vmem:[%s3 + $0x8] sm:$0xf]
      %v4524 = vld [vmem:[%s3 + $0xc] sm:$0xf]
      %v4525 = vld [vmem:[%s3 + $0x10] sm:$0xf]
      %v4526 = vld [vmem:[%s3 + $0x14] sm:$0xf]
      %v4527 = vld [vmem:[%s3 + $0x18] sm:$0xf]
      %v4528 = vld [vmem:[%s3 + $0x1c] sm:$0xf]
      %v4529 = vld [vmem:[%s3 + $0x20] sm:$0xf]
      %v4530 = vld [vmem:[%s4] sm:$0x1]
      %v4532 = vlaneseq
      %v4533 = vshrl.u32 %v4532, 7
      %v4534 = vsub.s32 0, %v4533
      %v4535 = vrot.slane %v4530, %v4534
      %v4553 = vunpack.c.l.b16 %v4505
      %v4554 = vunpack.c.l.b16 %v4506
      %v4555 = vunpack.c.l.b16 %v4507
      %v4556 = vunpack.c.l.b16 %v4508
      %v4557 = vunpack.c.l.b16 %v4509
      %v4558 = vunpack.c.l.b16 %v4510
      %v4559 = vunpack.c.l.b16 %v4511
      %v4560 = vunpack.c.l.b16 %v4512
      %v4561 = vunpack.c.l.b16 %v4513
      %v4562 = vunpack.c.l.b16 %v4514
      %v4563 = vunpack.c.l.b16 %v4515
      %v4564 = vunpack.c.l.b16 %v4516
      %v4565 = vunpack.c.l.b16 %v4517
      %v4566 = vunpack.c.l.b16 %v4518
      %v4567 = vunpack.c.l.b16 %v4519
      %v4568 = vunpack.c.l.b16 %v4520
      %v4569 = vpack.c.b16 %v4554, %v4553
      %v4570 = vpack.c.b16 %v4556, %v4555
      %v4571 = vpack.c.b16 %v4558, %v4557
      %v4572 = vpack.c.b16 %v4560, %v4559
      %v4573 = vpack.c.b16 %v4562, %v4561
      %v4574 = vpack.c.b16 %v4564, %v4563
      %v4575 = vpack.c.b16 %v4566, %v4565
      %v4576 = vpack.c.b16 %v4568, %v4567
      %v4586 = vunpack.c.l.b16 %v4521
      %v4587 = vunpack.c.l.b16 %v4522
      %v4588 = vunpack.c.l.b16 %v4523
      %v4589 = vunpack.c.l.b16 %v4524
      %v4590 = vunpack.c.l.b16 %v4525
      %v4591 = vunpack.c.l.b16 %v4526
      %v4592 = vunpack.c.l.b16 %v4527
      %v4593 = vunpack.c.l.b16 %v4528
      %v4594 = vunpack.c.l.b16 %v4529
      %v4595 = vpack.c.b16 %v4587, %v4586
      %v4596 = vpack.c.b16 %v4589, %v4588
      %v4597 = vpack.c.b16 %v4591, %v4590
      %v4598 = vpack.c.b16 %v4593, %v4592
      %v4599 = vpack.c.b16 %v4594, %v4594
      %v4605 = vsel %vm2351, %v4569, 0
      %v4608 = vsel %vm2351, %v4570, 0
      %v4611 = vsel %vm2351, %v4571, 0
      %v4614 = vsel %vm2351, %v4572, 0
      %v4617 = vsel %vm2351, %v4573, 0
      %v4620 = vsel %vm2351, %v4574, 0
      %v4623 = vsel %vm2351, %v4575, 0
      %v4626 = vsel %vm2351, %v4576, 0
      %v4629 = vsel %vm2382, %v4599, 0
      %4631 = vmatprep.subr.bf16.mxu0 0
      %4632 = vmatpush1.bf16.msra.mxu0 0
      %4633 = vmatprep.subr.bf16.mxu0 0
      %4634 = vmatpush1.bf16.msra.mxu0 0
      %4635 = vmatprep.subr.bf16.mxu0 0
      %4636 = vmatpush1.bf16.msra.mxu0 0
      %4637 = vmatprep.subr.bf16.mxu0 0
      %4638 = vmatpush1.bf16.msra.mxu0 %v4629
      %4639 = vmatprep.subr.bf16.mxu0 0
      %4640 = vmatpush1.bf16.msra.mxu0 %v4598
      %4641 = vmatprep.subr.bf16.mxu0 0
      %4642 = vmatpush1.bf16.msra.mxu0 %v4597
      %4643 = vmatprep.subr.bf16.mxu0 0
      %4644 = vmatpush1.bf16.msra.mxu0 %v4596
      %4645 = vmatprep.subr.bf16.mxu0 0
      %4646 = vmatpush1.bf16.msra.mxu0 %v4595
      %4647 = vmatprep.subr.bf16.mxu0 0
      %4648 = vmatpush2.bf16.msra.mxu0 0
      %4649 = vmatprep.subr.bf16.mxu0 0
      %4650 = vmatpush2.bf16.msra.mxu0 0
      %4651 = vmatprep.subr.bf16.mxu0 0
      %4652 = vmatpush2.bf16.msra.mxu0 0
      %4653 = vmatprep.subr.bf16.mxu0 0
      %4654 = vmatpush2.bf16.msra.mxu0 0
      %4655 = vmatprep.subr.bf16.mxu0 0
      %4656 = vmatpush2.bf16.msra.mxu0 0
      %4657 = vmatprep.subr.bf16.mxu0 0
      %4658 = vmatpush2.bf16.msra.mxu0 0
      %4659 = vmatprep.subr.bf16.mxu0 0
      %4660 = vmatpush2.bf16.msra.mxu0 0
      %4661 = vmatprep.subr.bf16.mxu0 0
      %4662 = vmatpush2.bf16.msra.mxu0 0
      %4663 = vmatprep.mubr.bf16.mxu0 0
      %4664 = vmatmul.mubr.bf16.gmra.mxu0 %v4605
      %v4665 = vpop.f32.mrf.mxu0
      %v4666 = vadd.f32 %v4535, %v4665
      %v4667 = vpop.f32.mrf.mxu0
      %v4668 = vpop.f32.mrf.mxu0
      %v4669 = vadd.f32 %v4535, %v4668
      %v4670 = vpop.f32.mrf.mxu0
      %4671 = vmatprep.mubr.bf16.mxu0 0
      %4672 = vmatmul.mubr.bf16.gmra.mxu0 %v4608
      %v4673 = vpop.f32.mrf.mxu0
      %v4674 = vadd.f32 %v4535, %v4673
      %v4675 = vpop.f32.mrf.mxu0
      %v4676 = vpop.f32.mrf.mxu0
      %v4677 = vadd.f32 %v4535, %v4676
      %v4678 = vpop.f32.mrf.mxu0
      %4679 = vmatprep.mubr.bf16.mxu0 0
      %4680 = vmatmul.mubr.bf16.gmra.mxu0 %v4611
      %v4681 = vpop.f32.mrf.mxu0
      %v4682 = vadd.f32 %v4535, %v4681
      %v4683 = vpop.f32.mrf.mxu0
      %v4684 = vpop.f32.mrf.mxu0
      %v4685 = vadd.f32 %v4535, %v4684
      %v4686 = vpop.f32.mrf.mxu0
      %4687 = vmatprep.mubr.bf16.mxu0 0
      %4688 = vmatmul.mubr.bf16.gmra.mxu0 %v4614
      %v4689 = vpop.f32.mrf.mxu0
      %v4690 = vadd.f32 %v4535, %v4689
      %v4691 = vpop.f32.mrf.mxu0
      %v4692 = vpop.f32.mrf.mxu0
      %v4693 = vadd.f32 %v4535, %v4692
      %v4694 = vpop.f32.mrf.mxu0
      %4695 = vmatprep.mubr.bf16.mxu0 0
      %4696 = vmatmul.mubr.bf16.gmra.mxu0 %v4617
      %v4697 = vpop.f32.mrf.mxu0
      %v4698 = vadd.f32 %v4535, %v4697
      %v4699 = vpop.f32.mrf.mxu0
      %v4700 = vpop.f32.mrf.mxu0
      %v4701 = vadd.f32 %v4535, %v4700
      %v4702 = vpop.f32.mrf.mxu0
      %4703 = vmatprep.mubr.bf16.mxu0 0
      %4704 = vmatmul.mubr.bf16.gmra.mxu0 %v4620
      %v4705 = vpop.f32.mrf.mxu0
      %v4706 = vadd.f32 %v4535, %v4705
      %v4707 = vpop.f32.mrf.mxu0
      %v4708 = vpop.f32.mrf.mxu0
      %v4709 = vadd.f32 %v4535, %v4708
      %v4710 = vpop.f32.mrf.mxu0
      %4711 = vmatprep.mubr.bf16.mxu0 0
      %4712 = vmatmul.mubr.bf16.gmra.mxu0 %v4623
      %v4713 = vpop.f32.mrf.mxu0
      %v4714 = vadd.f32 %v4535, %v4713
      %v4715 = vpop.f32.mrf.mxu0
      %v4716 = vpop.f32.mrf.mxu0
      %v4717 = vadd.f32 %v4535, %v4716
      %v4718 = vpop.f32.mrf.mxu0
      %4719 = vmatprep.mubr.bf16.mxu0 0
      %4720 = vmatmul.mubr.bf16.gmra.mxu0 %v4626
      %v4721 = vpop.f32.mrf.mxu0
      %v4722 = vadd.f32 %v4535, %v4721
      %v4723 = vpop.f32.mrf.mxu0
      %v4724 = vpop.f32.mrf.mxu0
      %v4725 = vadd.f32 %v4535, %v4724
      %v4726 = vpop.f32.mrf.mxu0
      %4727 = vdwg.mxu0
      %v4728 = vld [vmem:[%s1554] sm:$0xf]
      %v4729 = vld [vmem:[%s1554 + $0x4] sm:$0xf]
      %v4730 = vld [vmem:[%s1554 + $0x8] sm:$0x1]
      %v4731 = vld [vmem:[%s1554 + $0xc] sm:$0xf]
      %v4732 = vld [vmem:[%s1554 + $0x10] sm:$0xf]
      %v4733 = vld [vmem:[%s1554 + $0x14] sm:$0x1]
      %v4734 = vld [vmem:[%s1554 + $0x18] sm:$0xf]
      %v4735 = vld [vmem:[%s1554 + $0x1c] sm:$0xf]
      %v4736 = vld [vmem:[%s1554 + $0x20] sm:$0x1]
      %v4737 = vld [vmem:[%s1554 + $0x24] sm:$0xf]
      %v4738 = vld [vmem:[%s1554 + $0x28] sm:$0xf]
      %v4739 = vld [vmem:[%s1554 + $0x2c] sm:$0x1]
      %v4740 = vld [vmem:[%s1554 + $0x30] sm:$0xf]
      %v4741 = vld [vmem:[%s1554 + $0x34] sm:$0xf]
      %v4742 = vld [vmem:[%s1554 + $0x38] sm:$0x1]
      %v4743 = vld [vmem:[%s1554 + $0x3c] sm:$0xf]
      %v4744 = vld [vmem:[%s1554 + $0x40] sm:$0xf]
      %v4745 = vld [vmem:[%s1554 + $0x44] sm:$0x1]
      %v4746 = vld [vmem:[%s1554 + $0x48] sm:$0xf]
      %v4747 = vld [vmem:[%s1554 + $0x4c] sm:$0xf]
      %v4748 = vld [vmem:[%s1554 + $0x50] sm:$0x1]
      %v4749 = vld [vmem:[%s1554 + $0x54] sm:$0xf]
      %v4750 = vld [vmem:[%s1554 + $0x58] sm:$0xf]
      %v4751 = vld [vmem:[%s1554 + $0x5c] sm:$0x1]
      %v4753 = vshrl.u32 %v4728, 16
      %v4755 = vrot.slane %v4753, 4
      %v4756 = vshll.u32 %v4728, 16
      %v4758 = vrot.slane %v4756, 5
      %v4759 = vor.u32 %v4755, %v4758
      %v4760 = vrot.slane %v4759, 4
      %v4762 = vshll.u32 %v4729, 16
      %v4764 = vrot.slane %v4762, 5
      %v4765 = vsel %vm328, %v4760, %v4764
      %v4766 = vshrl.u32 %v4729, 16
      %v4768 = vrot.slane %v4766, 4
      %v4769 = vor.u32 %v4768, %v4764
      %v4770 = vrot.slane %v4769, 4
      %v4772 = vshll.u32 %v4730, 16
      %v4774 = vrot.slane %v4772, 5
      %v4775 = vsel %vm328, %v4770, %v4774
      %v4777 = vshrl.u32 %v4731, 16
      %v4779 = vrot.slane %v4777, 4
      %v4780 = vshll.u32 %v4731, 16
      %v4782 = vrot.slane %v4780, 5
      %v4783 = vor.u32 %v4779, %v4782
      %v4784 = vrot.slane %v4783, 4
      %v4786 = vshll.u32 %v4732, 16
      %v4788 = vrot.slane %v4786, 5
      %v4789 = vsel %vm328, %v4784, %v4788
      %v4790 = vshrl.u32 %v4732, 16
      %v4792 = vrot.slane %v4790, 4
      %v4793 = vor.u32 %v4792, %v4788
      %v4794 = vrot.slane %v4793, 4
      %v4796 = vshll.u32 %v4733, 16
      %v4798 = vrot.slane %v4796, 5
      %v4799 = vsel %vm328, %v4794, %v4798
      %v4801 = vshrl.u32 %v4734, 16
      %v4803 = vrot.slane %v4801, 4
      %v4804 = vshll.u32 %v4734, 16
      %v4806 = vrot.slane %v4804, 5
      %v4807 = vor.u32 %v4803, %v4806
      %v4808 = vrot.slane %v4807, 4
      %v4810 = vshll.u32 %v4735, 16
      %v4812 = vrot.slane %v4810, 5
      %v4813 = vsel %vm328, %v4808, %v4812
      %v4814 = vshrl.u32 %v4735, 16
      %v4816 = vrot.slane %v4814, 4
      %v4817 = vor.u32 %v4816, %v4812
      %v4818 = vrot.slane %v4817, 4
      %v4820 = vshll.u32 %v4736, 16
      %v4822 = vrot.slane %v4820, 5
      %v4823 = vsel %vm328, %v4818, %v4822
      %v4825 = vshrl.u32 %v4737, 16
      %v4827 = vrot.slane %v4825, 4
      %v4828 = vshll.u32 %v4737, 16
      %v4830 = vrot.slane %v4828, 5
      %v4831 = vor.u32 %v4827, %v4830
      %v4832 = vrot.slane %v4831, 4
      %v4834 = vshll.u32 %v4738, 16
      %v4836 = vrot.slane %v4834, 5
      %v4837 = vsel %vm328, %v4832, %v4836
      %v4838 = vshrl.u32 %v4738, 16
      %v4840 = vrot.slane %v4838, 4
      %v4841 = vor.u32 %v4840, %v4836
      %v4842 = vrot.slane %v4841, 4
      %v4844 = vshll.u32 %v4739, 16
      %v4846 = vrot.slane %v4844, 5
      %v4847 = vsel %vm328, %v4842, %v4846
      %v4849 = vshrl.u32 %v4740, 16
      %v4851 = vrot.slane %v4849, 4
      %v4852 = vshll.u32 %v4740, 16
      %v4854 = vrot.slane %v4852, 5
      %v4855 = vor.u32 %v4851, %v4854
      %v4856 = vrot.slane %v4855, 4
      %v4858 = vshll.u32 %v4741, 16
      %v4860 = vrot.slane %v4858, 5
      %v4861 = vsel %vm328, %v4856, %v4860
      %v4862 = vshrl.u32 %v4741, 16
      %v4864 = vrot.slane %v4862, 4
      %v4865 = vor.u32 %v4864, %v4860
      %v4866 = vrot.slane %v4865, 4
      %v4868 = vshll.u32 %v4742, 16
      %v4870 = vrot.slane %v4868, 5
      %v4871 = vsel %vm328, %v4866, %v4870
      %v4873 = vshrl.u32 %v4743, 16
      %v4875 = vrot.slane %v4873, 4
      %v4876 = vshll.u32 %v4743, 16
      %v4878 = vrot.slane %v4876, 5
      %v4879 = vor.u32 %v4875, %v4878
      %v4880 = vrot.slane %v4879, 4
      %v4882 = vshll.u32 %v4744, 16
      %v4884 = vrot.slane %v4882, 5
      %v4885 = vsel %vm328, %v4880, %v4884
      %v4886 = vshrl.u32 %v4744, 16
      %v4888 = vrot.slane %v4886, 4
      %v4889 = vor.u32 %v4888, %v4884
      %v4890 = vrot.slane %v4889, 4
      %v4892 = vshll.u32 %v4745, 16
      %v4894 = vrot.slane %v4892, 5
      %v4895 = vsel %vm328, %v4890, %v4894
      %v4897 = vshrl.u32 %v4746, 16
      %v4899 = vrot.slane %v4897, 4
      %v4900 = vshll.u32 %v4746, 16
      %v4902 = vrot.slane %v4900, 5
      %v4903 = vor.u32 %v4899, %v4902
      %v4904 = vrot.slane %v4903, 4
      %v4906 = vshll.u32 %v4747, 16
      %v4908 = vrot.slane %v4906, 5
      %v4909 = vsel %vm328, %v4904, %v4908
      %v4910 = vshrl.u32 %v4747, 16
      %v4912 = vrot.slane %v4910, 4
      %v4913 = vor.u32 %v4912, %v4908
      %v4914 = vrot.slane %v4913, 4
      %v4916 = vshll.u32 %v4748, 16
      %v4918 = vrot.slane %v4916, 5
      %v4919 = vsel %vm328, %v4914, %v4918
      %v4921 = vshrl.u32 %v4749, 16
      %v4923 = vrot.slane %v4921, 4
      %v4924 = vshll.u32 %v4749, 16
      %v4926 = vrot.slane %v4924, 5
      %v4927 = vor.u32 %v4923, %v4926
      %v4928 = vrot.slane %v4927, 4
      %v4930 = vshll.u32 %v4750, 16
      %v4932 = vrot.slane %v4930, 5
      %v4933 = vsel %vm328, %v4928, %v4932
      %v4934 = vshrl.u32 %v4750, 16
      %v4936 = vrot.slane %v4934, 4
      %v4937 = vor.u32 %v4936, %v4932
      %v4938 = vrot.slane %v4937, 4
      %v4940 = vshll.u32 %v4751, 16
      %v4942 = vrot.slane %v4940, 5
      %v4943 = vsel %vm328, %v4938, %v4942
      %v4960 = vunpack.c.l.bf16 %v4765
      %v4961 = vunpack.c.l.bf16 %v4775
      %v4962 = vunpack.c.l.bf16 %v4789
      %v4963 = vunpack.c.l.bf16 %v4799
      %v4964 = vunpack.c.l.bf16 %v4813
      %v4965 = vunpack.c.l.bf16 %v4823
      %v4966 = vunpack.c.l.bf16 %v4837
      %v4967 = vunpack.c.l.bf16 %v4847
      %v4968 = vunpack.c.l.bf16 %v4861
      %v4969 = vunpack.c.l.bf16 %v4871
      %v4970 = vunpack.c.l.bf16 %v4885
      %v4971 = vunpack.c.l.bf16 %v4895
      %v4972 = vunpack.c.l.bf16 %v4909
      %v4973 = vunpack.c.l.bf16 %v4919
      %v4974 = vunpack.c.l.bf16 %v4933
      %v4975 = vunpack.c.l.bf16 %v4943
      %v4976 = vadd.f32 %v4666, %v4960
      %v4977 = vadd.f32 %v4669, %v4961
      %v4978 = vadd.f32 %v4674, %v4962
      %v4979 = vadd.f32 %v4677, %v4963
      %v4980 = vadd.f32 %v4682, %v4964
      %v4981 = vadd.f32 %v4685, %v4965
      %v4982 = vadd.f32 %v4690, %v4966
      %v4983 = vadd.f32 %v4693, %v4967
      %v4984 = vadd.f32 %v4698, %v4968
      %v4985 = vadd.f32 %v4701, %v4969
      %v4986 = vadd.f32 %v4706, %v4970
      %v4987 = vadd.f32 %v4709, %v4971
      %v4988 = vadd.f32 %v4714, %v4972
      %v4989 = vadd.f32 %v4717, %v4973
      %v4990 = vadd.f32 %v4722, %v4974
      %v4991 = vadd.f32 %v4725, %v4975
      %v4992 = vmax.f32 %v4976, 0.0
      %v4993 = vmax.f32 %v4977, 0.0
      %v4994 = vmax.f32 %v4978, 0.0
      %v4995 = vmax.f32 %v4979, 0.0
      %v4996 = vmax.f32 %v4980, 0.0
      %v4997 = vmax.f32 %v4981, 0.0
      %v4998 = vmax.f32 %v4982, 0.0
      %v4999 = vmax.f32 %v4983, 0.0
      %v5000 = vmax.f32 %v4984, 0.0
      %v5001 = vmax.f32 %v4985, 0.0
      %v5002 = vmax.f32 %v4986, 0.0
      %v5003 = vmax.f32 %v4987, 0.0
      %v5004 = vmax.f32 %v4988, 0.0
      %v5005 = vmax.f32 %v4989, 0.0
      %v5006 = vmax.f32 %v4990, 0.0
      %v5007 = vmax.f32 %v4991, 0.0
      %v5008 = vpack.c.bf16 %v4993, %v4992
      %v5009 = vpack.c.bf16 %v4995, %v4994
      %v5010 = vpack.c.bf16 %v4997, %v4996
      %v5011 = vpack.c.bf16 %v4999, %v4998
      %v5012 = vpack.c.bf16 %v5001, %v5000
      %v5013 = vpack.c.bf16 %v5003, %v5002
      %v5014 = vpack.c.bf16 %v5005, %v5004
      %v5015 = vpack.c.bf16 %v5007, %v5006
      %v5024 = vunpack.c.l.b16 %v5008
      %v5025 = vunpack.c.h.b16 %v5008
      %v5026 = vunpack.c.l.b16 %v5009
      %v5027 = vunpack.c.h.b16 %v5009
      %v5028 = vunpack.c.l.b16 %v5010
      %v5029 = vunpack.c.h.b16 %v5010
      %v5030 = vunpack.c.l.b16 %v5011
      %v5031 = vunpack.c.h.b16 %v5011
      %v5032 = vunpack.c.l.b16 %v5012
      %v5033 = vunpack.c.h.b16 %v5012
      %v5034 = vunpack.c.l.b16 %v5013
      %v5035 = vunpack.c.h.b16 %v5013
      %v5036 = vunpack.c.l.b16 %v5014
      %v5037 = vunpack.c.h.b16 %v5014
      %v5038 = vunpack.c.l.b16 %v5015
      %v5039 = vunpack.c.h.b16 %v5015
      %v5040 = vpack.c.b16 %v5024, %v5024
      %v5041 = vpack.c.b16 %v5025, %v5025
      %v5042 = vpack.c.b16 %v5026, %v5026
      %v5043 = vpack.c.b16 %v5027, %v5027
      %v5044 = vpack.c.b16 %v5028, %v5028
      %v5045 = vpack.c.b16 %v5029, %v5029
      %v5046 = vpack.c.b16 %v5030, %v5030
      %v5047 = vpack.c.b16 %v5031, %v5031
      %v5048 = vpack.c.b16 %v5032, %v5032
      %v5049 = vpack.c.b16 %v5033, %v5033
      %v5050 = vpack.c.b16 %v5034, %v5034
      %v5051 = vpack.c.b16 %v5035, %v5035
      %v5052 = vpack.c.b16 %v5036, %v5036
      %v5053 = vpack.c.b16 %v5037, %v5037
      %v5054 = vpack.c.b16 %v5038, %v5038
      %v5055 = vpack.c.b16 %v5039, %v5039
      %5072 = vst.msk [vmem:[%s248] sm:$0xf] %vm275, %v5040
      %5073 = vst.msk [vmem:[%s248 + $0x4] sm:$0xf] %vm275, %v5041
      %5074 = vst.msk [vmem:[%s248 + $0x8] sm:$0xf] %vm275, %v5042
      %5075 = vst.msk [vmem:[%s248 + $0xc] sm:$0xf] %vm275, %v5043
      %5076 = vst.msk [vmem:[%s248 + $0x10] sm:$0xf] %vm275, %v5044
      %5077 = vst.msk [vmem:[%s248 + $0x14] sm:$0xf] %vm275, %v5045
      %5078 = vst.msk [vmem:[%s248 + $0x18] sm:$0xf] %vm275, %v5046
      %5079 = vst.msk [vmem:[%s248 + $0x1c] sm:$0xf] %vm275, %v5047
      %5080 = vst.msk [vmem:[%s248 + $0x20] sm:$0xf] %vm275, %v5048
      %5081 = vst.msk [vmem:[%s248 + $0x24] sm:$0xf] %vm275, %v5049
      %5082 = vst.msk [vmem:[%s248 + $0x28] sm:$0xf] %vm275, %v5050
      %5083 = vst.msk [vmem:[%s248 + $0x2c] sm:$0xf] %vm275, %v5051
      %5084 = vst.msk [vmem:[%s248 + $0x30] sm:$0xf] %vm275, %v5052
      %5085 = vst.msk [vmem:[%s248 + $0x34] sm:$0xf] %vm275, %v5053
      %5086 = vst.msk [vmem:[%s248 + $0x38] sm:$0xf] %vm275, %v5054
      %5087 = vst.msk [vmem:[%s248 + $0x3c] sm:$0xf] %vm275, %v5055
      %s5088 = smul.u32 8, %s21
      %p5089 = scmp.lt.s32.totalorder %s20, 1
      %s5090 = scalar_select %p5089, %s20, 1
      %p5091 = scmp.lt.s32.totalorder %s5088, 15
      %s5092 = scalar_select %p5091, %s5088, 15
      %s5093 = smul.addr %s5092, 2
      %s5094 = smul.addr %s5090, 32
      %s5095 = sadd.s32 %s5093, %s5094
      %s5096 = smul.addr %s5095, 4
      %s5097 = scalar_lea.vmem %s5, %s5096
      // Predicated region
      $region49: #{tpu_custom_call.1} parent=39 // pred_check
        %p5098 = pneg %p158
      $region50: #{tpu_custom_call.1} parent=39 // pred_check_branch
        %5100 = sbr.rel (%p5098) target = $region52
      $region51: #{tpu_custom_call.1} parent=39 // pred_region
        %s5101 = smul.u32 8, %s21
      $region52: #{tpu_custom_call.1} parent=39 // pred_fallthru
        _
    $region40: #{tpu_custom_call.1} parent=5 // pred_fallthru
      _
    %p5102 = scmp.le.s32.totalorder 2, %s11
    // Predicated region
    $region53: #{tpu_custom_call.1} parent=5 // pred_check
      %p5103 = pneg %p5102
    $region54: #{tpu_custom_call.1} parent=5 // pred_check_branch
      %5105 = sbr.rel (%p5103) target = $region56
    $region55: #{tpu_custom_call.1} parent=5 // pred_region
      %s5106 = ssub.s32 %s11, 2
      // Predicated region
      $region57: #{tpu_custom_call.1} parent=55 // pred_check
        %p5107 = pneg %p164
      $region58: #{tpu_custom_call.1} parent=55 // pred_check_branch
        %5109 = sbr.rel (%p5107) target = $region60
      $region59: #{tpu_custom_call.1} parent=55 // pred_region
        %s5110 = smul.u32 8, %s23
        %p5111 = scmp.lt.s32.totalorder %s22, 1
        %s5112 = scalar_select %p5111, %s22, 1
        %p5113 = scmp.lt.s32.totalorder %s5110, 15
        %s5114 = scalar_select %p5113, %s5110, 15
        %s5115 = smul.addr %s5114, 2
        %s5116 = smul.addr %s5112, 32
        %s5117 = sadd.s32 %s5115, %s5116
        %s5118 = smul.addr %s5117, 4
        %s5119 = scalar_lea.vmem %s5, %s5118
      $region60: #{tpu_custom_call.1} parent=55 // pred_fallthru
        _
    $region56: #{tpu_custom_call.1} parent=5 // pred_fallthru
      _
  $region6: #{tpu_custom_call.1} parent=0 // loop_footer
    %s15 = sadd.s32 1, %s11
  $region7: #{tpu_custom_call.1} parent=0 // loop_footer_branch
    %10 = sbr.rel target = $region3
  $region8: #{tpu_custom_call.1} parent=0 // loop_exit
    _

</llo_original>
